<compile_context>
chip_gen: v7x
topology: tpu7x:2x2x1
jax: 0.10.0
libtpu: 0.0.40
codegen_flags: <defaults>
</compile_context>

<pallas_src>
import jax
import jax.numpy as jnp
from jax.experimental import pallas as pl
from jax.experimental.pallas import tpu as pltpu


# ----------------------------------------------------------------------------
# Fused kernel: one batch element per grid step.
# ----------------------------------------------------------------------------
def _survival_fused_kernel(x_ref, age_ref, uw_ref, ub_ref, rw_ref, rb_ref,
                           w1b_ref, w1a_ref, b1_ref, w2_ref, b2_ref, o_ref):
    # ---- Unet3D stand-in: 1x1x1 conv, channels-first, spatial lane-dense ----
    # (C_out, C_in) @ (C_in, DHW) -> (C_out, DHW)
    y = jnp.dot(uw_ref[...], x_ref[...], preferred_element_type=jnp.float32)
    y = y + ub_ref[...]                                        # bias (C_out, 1)

    # ---- ResNet1D stand-in: linear over the age sequence ----
    age_feat = (jnp.dot(age_ref[...], rw_ref[...],
                        preferred_element_type=jnp.float32)
                + rb_ref[...])                                  # (1, 10)

    # ---- fc1 without the concat ----
    # Brain part: contraction over (C_out, DHW) as VPU multiply + lane reduce.
    # w1b_ref is (10, C_out, DHW), lane-dense; y broadcasts over the lead dim.
    prod = w1b_ref[...] * y[None, :, :]                         # (10, C_out, DHW)
    hb = jnp.sum(prod, axis=-1)                                 # (10, C_out)
    h_brain = jnp.sum(hb, axis=-1).reshape(1, -1)               # (1, 10)
    # Age part + bias.
    h = (h_brain
         + jnp.dot(age_feat, w1a_ref[...], preferred_element_type=jnp.float32)
         + b1_ref[...])                                         # (1, 10)

    # ---- fc2 ----
    o_ref[...] = (jnp.dot(h, w2_ref[...], preferred_element_type=jnp.float32)
                  + b2_ref[...])                                # (1, 5)


# ----------------------------------------------------------------------------
# Parameters. fc1 is logically Linear(20490, 10); it is stored pre-split into
# a lane-dense brain block (10, C_out, DHW) and a tiny age block (10, 10).
# ----------------------------------------------------------------------------
def init_params(brain_input_channels=4, unet_out_channels=5,
                spatial=(16, 16, 16), age_len=8):
    D, H, W = spatial
    DHW = D * H * W
    brain_flat = unet_out_channels * DHW          # 20480 with defaults
    fc1_in = brain_flat + 10                      # 20490 -> Linear(20490, 10)

    key = jax.random.PRNGKey(42)
    ks = jax.random.split(key, 8)
    scale = 0.02

    # Logical fc1 weight in (in_features, out_features) orientation.
    fc1_w = scale * jax.random.normal(ks[4], (fc1_in, 10), jnp.float32)

    params = {
        # Unet3D stand-in: 1x1x1 conv, channels-first weight (C_out, C_in)
        "unet_w": scale * jax.random.normal(
            ks[0], (unet_out_channels, brain_input_channels), jnp.float32),
        "unet_b": scale * jax.random.normal(
            ks[1], (unet_out_channels, 1), jnp.float32),
        # ResNet1D stand-in: linear age_len -> 10
        "res_w": scale * jax.random.normal(ks[2], (age_len, 10), jnp.float32),
        "res_b": scale * jax.random.normal(ks[3], (1, 10), jnp.float32),
        # fc1 split + lane-dense layout:
        #   w1_brain[j, c, p] == fc1_w[c*DHW + p, j]  (matches channel-major flatten)
        "w1_brain": fc1_w[:brain_flat, :].T.reshape(10, unet_out_channels, DHW),
        "w1_age": fc1_w[brain_flat:, :],            # (10, 10)
        "b1": scale * jax.random.normal(ks[5], (1, 10), jnp.float32),
        # fc2: Linear(10, 5)
        "w2": scale * jax.random.normal(ks[6], (10, 5), jnp.float32),
        "b2": scale * jax.random.normal(ks[7], (1, 5), jnp.float32),
    }
    return params


# ----------------------------------------------------------------------------
# Forward pass: one pallas_call, grid over batch.
# ----------------------------------------------------------------------------
@jax.jit
def survival_net_forward(params, brain_scan, age_vector):
    # brain_scan: (B, C_in, D, H, W) [NCDHW], age_vector: (B, 1, L)
    B, C_in, D, H, W = brain_scan.shape
    DHW = D * H * W
    L = age_vector.shape[-1]
    C_out = params["unet_w"].shape[0]

    x = brain_scan.reshape(B, C_in, DHW)   # contiguous view, no transpose

    out3 = pl.pallas_call(
        _survival_fused_kernel,
        out_shape=jax.ShapeDtypeStruct((B, 1, 5), jnp.float32),
        grid_spec=pltpu.PrefetchScalarGridSpec(
            num_scalar_prefetch=0,
            grid=(B,),
            in_specs=[
                pl.BlockSpec((None, C_in, DHW), lambda b: (b, 0, 0)),    # brain
                pl.BlockSpec((None, 1, L), lambda b: (b, 0, 0)),         # age
                pl.BlockSpec((C_out, C_in), lambda b: (0, 0)),           # unet_w
                pl.BlockSpec((C_out, 1), lambda b: (0, 0)),              # unet_b
                pl.BlockSpec((L, 10), lambda b: (0, 0)),                 # res_w
                pl.BlockSpec((1, 10), lambda b: (0, 0)),                 # res_b
                pl.BlockSpec((10, C_out, DHW), lambda b: (0, 0, 0)),     # w1_brain
                pl.BlockSpec((10, 10), lambda b: (0, 0)),                # w1_age
                pl.BlockSpec((1, 10), lambda b: (0, 0)),                 # b1
                pl.BlockSpec((10, 5), lambda b: (0, 0)),                 # w2
                pl.BlockSpec((1, 5), lambda b: (0, 0)),                  # b2
            ],
            out_specs=pl.BlockSpec((None, 1, 5), lambda b: (b, 0, 0)),
        ),
        compiler_params=pltpu.CompilerParams(
            dimension_semantics=("parallel",),
        ),
    )(x, age_vector,
      params["unet_w"], params["unet_b"],
      params["res_w"], params["res_b"],
      params["w1_brain"], params["w1_age"], params["b1"],
      params["w2"], params["b2"])

    return out3.reshape(B, 5)


# ----------------------------------------------------------------------------
# Pure-JAX reference (same math, torch-equivalent flatten/concat semantics).
# ----------------------------------------------------------------------------
def reference_forward(params, brain_scan, age_vector):
    hp = jax.lax.Precision.HIGHEST
    B, C_in, D, H, W = brain_scan.shape
    DHW = D * H * W
    C_out = params["unet_w"].shape[0]

    x = brain_scan.reshape(B, C_in, DHW)
    y = jnp.einsum("oc,bcp->bop", params["unet_w"], x,
                   precision=hp) + params["unet_b"][None]       # (B, C_out, DHW)
    brain_feat = y.reshape(B, C_out * DHW)                      # channel-major flatten
    age_feat = jnp.dot(age_vector.reshape(B, -1), params["res_w"],
                       precision=hp) + params["res_b"]          # (B, 10)
    w1_brain_2d = params["w1_brain"].reshape(10, C_out * DHW)
    h = (jnp.dot(brain_feat, w1_brain_2d.T, precision=hp)
         + jnp.dot(age_feat, params["w1_age"], precision=hp)
         + params["b1"])
    return jnp.dot(h, params["w2"], precision=hp) + params["b2"]


if __name__ == "__main__":
    B, C_in, D, H, W = 2, 4, 16, 16, 16   # 5 out-channels * 16^3 = 20480 brain feats
    L = 8                                 # age sequence length

    key = jax.random.PRNGKey(0)
    k1, k2 = jax.random.split(key)
    brain_scan = jax.random.normal(k1, (B, C_in, D, H, W), jnp.float32)
    age_vector = jax.random.normal(k2, (B, 1, L), jnp.float32)

    params = init_params(brain_input_channels=C_in, unet_out_channels=5,
                         spatial=(D, H, W), age_len=L)

    out = survival_net_forward(params, brain_scan, age_vector)
    out = jax.block_until_ready(out)
    assert out.shape == (B, 5), out.shape

    ref = reference_forward(params, brain_scan, age_vector)
    assert jnp.allclose(out, ref, rtol=1e-3, atol=1e-3), \
        float(jnp.max(jnp.abs(out - ref)))

    print("KERNEL_OK")
</pallas_src>

<mosaic_0001>
module attributes {stable_mosaic.version = 11 : i64} {
  func.func @_survival_fused_kernel(%arg0: i32, %arg1: memref<1x4x4096xf32, #tpu.memory_space<vmem>>, %arg2: memref<1x1x8xf32, #tpu.memory_space<vmem>>, %arg3: memref<5x4xf32, #tpu.memory_space<vmem>>, %arg4: memref<5x1xf32, #tpu.memory_space<vmem>>, %arg5: memref<8x10xf32, #tpu.memory_space<vmem>>, %arg6: memref<1x10xf32, #tpu.memory_space<vmem>>, %arg7: memref<10x5x4096xf32, #tpu.memory_space<vmem>>, %arg8: memref<10x10xf32, #tpu.memory_space<vmem>>, %arg9: memref<1x10xf32, #tpu.memory_space<vmem>>, %arg10: memref<10x5xf32, #tpu.memory_space<vmem>>, %arg11: memref<1x5xf32, #tpu.memory_space<vmem>>, %arg12: memref<1x1x5xf32, #tpu.memory_space<vmem>>) attributes {dimension_semantics = [#tpu.dimension_semantics<parallel>], iteration_bounds = array<i64: 2>, scalar_prefetch = 0 : i64, scratch_operands = 0 : i64, tpu.core_type = #tpu.core_type<tc>, window_params = [{transform_indices = @transform_0, window_bounds = array<i64: 1, 4, 4096>}, {transform_indices = @transform_1, window_bounds = array<i64: 1, 1, 8>}, {pipeline_mode = #tpu.pipeline_mode<synchronous>, transform_indices = @transform_2, window_bounds = array<i64: 5, 4>}, {pipeline_mode = #tpu.pipeline_mode<synchronous>, transform_indices = @transform_3, window_bounds = array<i64: 5, 1>}, {pipeline_mode = #tpu.pipeline_mode<synchronous>, transform_indices = @transform_4, window_bounds = array<i64: 8, 10>}, {pipeline_mode = #tpu.pipeline_mode<synchronous>, transform_indices = @transform_5, window_bounds = array<i64: 1, 10>}, {pipeline_mode = #tpu.pipeline_mode<synchronous>, transform_indices = @transform_6, window_bounds = array<i64: 10, 5, 4096>}, {pipeline_mode = #tpu.pipeline_mode<synchronous>, transform_indices = @transform_7, window_bounds = array<i64: 10, 10>}, {pipeline_mode = #tpu.pipeline_mode<synchronous>, transform_indices = @transform_8, window_bounds = array<i64: 1, 10>}, {pipeline_mode = #tpu.pipeline_mode<synchronous>, transform_indices = @transform_9, window_bounds = array<i64: 10, 5>}, {pipeline_mode = #tpu.pipeline_mode<synchronous>, transform_indices = @transform_10, window_bounds = array<i64: 1, 5>}, {transform_indices = @transform_11, window_bounds = array<i64: 1, 1, 5>}]} {
    %c0 = arith.constant 0 : index
    %c0_0 = arith.constant 0 : index
    %0 = vector.load %arg3[%c0, %c0_0] : memref<5x4xf32, #tpu.memory_space<vmem>>, vector<5x4xf32>
    %c0_1 = arith.constant 0 : index
    %c0_2 = arith.constant 0 : index
    %c0_3 = arith.constant 0 : index
    %1 = vector.load %arg1[%c0_1, %c0_2, %c0_3] : memref<1x4x4096xf32, #tpu.memory_space<vmem>>, vector<1x4x4096xf32>
    %2 = vector.shape_cast %1 : vector<1x4x4096xf32> to vector<4x4096xf32>
    %cst = arith.constant dense<0.000000e+00> : vector<5x4096xf32>
    %3 = tpu.matmul %0, %2, %cst {dimension_numbers = #tpu.dot_dimension_numbers<[1], [0], [0], [1], [0, 0, 1, 1], [], []>} : vector<5x4xf32>, vector<4x4096xf32>, vector<5x4096xf32> -> vector<5x4096xf32>
    %c0_4 = arith.constant 0 : index
    %c0_5 = arith.constant 0 : index
    %4 = vector.load %arg4[%c0_4, %c0_5] : memref<5x1xf32, #tpu.memory_space<vmem>>, vector<5x1xf32>
    %5 = vector.broadcast %4 : vector<5x1xf32> to vector<5x4096xf32>
    %6 = arith.addf %3, %5 : vector<5x4096xf32>
    %c0_6 = arith.constant 0 : index
    %c0_7 = arith.constant 0 : index
    %c0_8 = arith.constant 0 : index
    %7 = vector.load %arg2[%c0_6, %c0_7, %c0_8] : memref<1x1x8xf32, #tpu.memory_space<vmem>>, vector<1x1x8xf32>
    %8 = vector.shape_cast %7 : vector<1x1x8xf32> to vector<1x8xf32>
    %c0_9 = arith.constant 0 : index
    %c0_10 = arith.constant 0 : index
    %9 = vector.load %arg5[%c0_9, %c0_10] : memref<8x10xf32, #tpu.memory_space<vmem>>, vector<8x10xf32>
    %cst_11 = arith.constant dense<0.000000e+00> : vector<1x10xf32>
    %10 = tpu.matmul %8, %9, %cst_11 {dimension_numbers = #tpu.dot_dimension_numbers<[1], [0], [0], [1], [0, 0, 1, 1], [], []>} : vector<1x8xf32>, vector<8x10xf32>, vector<1x10xf32> -> vector<1x10xf32>
    %c0_12 = arith.constant 0 : index
    %c0_13 = arith.constant 0 : index
    %11 = vector.load %arg6[%c0_12, %c0_13] : memref<1x10xf32, #tpu.memory_space<vmem>>, vector<1x10xf32>
    %12 = arith.addf %10, %11 : vector<1x10xf32>
    %c0_14 = arith.constant 0 : index
    %c0_15 = arith.constant 0 : index
    %c0_16 = arith.constant 0 : index
    %13 = vector.load %arg7[%c0_14, %c0_15, %c0_16] : memref<10x5x4096xf32, #tpu.memory_space<vmem>>, vector<10x5x4096xf32>
    %14 = vector.shape_cast %6 : vector<5x4096xf32> to vector<1x5x4096xf32>
    %15 = vector.broadcast %14 : vector<1x5x4096xf32> to vector<10x5x4096xf32>
    %16 = arith.mulf %13, %15 : vector<10x5x4096xf32>
    %cst_17 = arith.constant dense<0.000000e+00> : vector<10x5xf32>
    %17 = vector.multi_reduction <add>, %16, %cst_17 [2] : vector<10x5x4096xf32> to vector<10x5xf32>
    %cst_18 = arith.constant dense<0.000000e+00> : vector<10xf32>
    %18 = vector.multi_reduction <add>, %17, %cst_18 [1] : vector<10x5xf32> to vector<10xf32>
    %19 = vector.shape_cast %18 : vector<10xf32> to vector<1x10xf32>
    %c0_19 = arith.constant 0 : index
    %c0_20 = arith.constant 0 : index
    %20 = vector.load %arg8[%c0_19, %c0_20] : memref<10x10xf32, #tpu.memory_space<vmem>>, vector<10x10xf32>
    %cst_21 = arith.constant dense<0.000000e+00> : vector<1x10xf32>
    %21 = tpu.matmul %12, %20, %cst_21 {dimension_numbers = #tpu.dot_dimension_numbers<[1], [0], [0], [1], [0, 0, 1, 1], [], []>} : vector<1x10xf32>, vector<10x10xf32>, vector<1x10xf32> -> vector<1x10xf32>
    %22 = arith.addf %19, %21 : vector<1x10xf32>
    %c0_22 = arith.constant 0 : index
    %c0_23 = arith.constant 0 : index
    %23 = vector.load %arg9[%c0_22, %c0_23] : memref<1x10xf32, #tpu.memory_space<vmem>>, vector<1x10xf32>
    %24 = arith.addf %22, %23 : vector<1x10xf32>
    %c0_24 = arith.constant 0 : index
    %c0_25 = arith.constant 0 : index
    %25 = vector.load %arg10[%c0_24, %c0_25] : memref<10x5xf32, #tpu.memory_space<vmem>>, vector<10x5xf32>
    %cst_26 = arith.constant dense<0.000000e+00> : vector<1x5xf32>
    %26 = tpu.matmul %24, %25, %cst_26 {dimension_numbers = #tpu.dot_dimension_numbers<[1], [0], [0], [1], [0, 0, 1, 1], [], []>} : vector<1x10xf32>, vector<10x5xf32>, vector<1x5xf32> -> vector<1x5xf32>
    %c0_27 = arith.constant 0 : index
    %c0_28 = arith.constant 0 : index
    %27 = vector.load %arg11[%c0_27, %c0_28] : memref<1x5xf32, #tpu.memory_space<vmem>>, vector<1x5xf32>
    %28 = arith.addf %26, %27 : vector<1x5xf32>
    %c0_29 = arith.constant 0 : index
    %c0_30 = arith.constant 0 : index
    %c0_31 = arith.constant 0 : index
    %29 = vector.load %arg12[%c0_29, %c0_30, %c0_31] : memref<1x1x5xf32, #tpu.memory_space<vmem>>, vector<1x1x5xf32>
    %30 = vector.shape_cast %29 : vector<1x1x5xf32> to vector<1x5xf32>
    %31 = vector.shape_cast %28 : vector<1x5xf32> to vector<1x1x5xf32>
    tpu.vector_store %arg12[%c0_29, %c0_30, %c0_31], %31 {strides = array<i32>} : memref<1x1x5xf32, #tpu.memory_space<vmem>>, vector<1x1x5xf32>,
    return
  }
  func.func @transform_0(%arg0: i32) -> (i32, i32, i32) {
    %c0_i32 = arith.constant 0 : i32
    %c0_i32_0 = arith.constant 0 : i32
    %c0_i32_1 = arith.constant 0 : i32
    return %arg0, %c0_i32, %c0_i32_0 : i32, i32, i32
  }
  func.func @transform_1(%arg0: i32) -> (i32, i32, i32) {
    %c0_i32 = arith.constant 0 : i32
    %c0_i32_0 = arith.constant 0 : i32
    %c0_i32_1 = arith.constant 0 : i32
    return %arg0, %c0_i32, %c0_i32_0 : i32, i32, i32
  }
  func.func @transform_2(%arg0: i32) -> (i32, i32) {
    %c0_i32 = arith.constant 0 : i32
    %c0_i32_0 = arith.constant 0 : i32
    %c0_i32_1 = arith.constant 0 : i32
    return %c0_i32, %c0_i32_0 : i32, i32
  }
  func.func @transform_3(%arg0: i32) -> (i32, i32) {
    %c0_i32 = arith.constant 0 : i32
    %c0_i32_0 = arith.constant 0 : i32
    %c0_i32_1 = arith.constant 0 : i32
    return %c0_i32, %c0_i32_0 : i32, i32
  }
  func.func @transform_4(%arg0: i32) -> (i32, i32) {
    %c0_i32 = arith.constant 0 : i32
    %c0_i32_0 = arith.constant 0 : i32
    %c0_i32_1 = arith.constant 0 : i32
    return %c0_i32, %c0_i32_0 : i32, i32
  }
  func.func @transform_5(%arg0: i32) -> (i32, i32) {
    %c0_i32 = arith.constant 0 : i32
    %c0_i32_0 = arith.constant 0 : i32
    %c0_i32_1 = arith.constant 0 : i32
    return %c0_i32, %c0_i32_0 : i32, i32
  }
  func.func @transform_6(%arg0: i32) -> (i32, i32, i32) {
    %c0_i32 = arith.constant 0 : i32
    %c0_i32_0 = arith.constant 0 : i32
    %c0_i32_1 = arith.constant 0 : i32
    %c0_i32_2 = arith.constant 0 : i32
    return %c0_i32, %c0_i32_0, %c0_i32_1 : i32, i32, i32
  }
  func.func @transform_7(%arg0: i32) -> (i32, i32) {
    %c0_i32 = arith.constant 0 : i32
    %c0_i32_0 = arith.constant 0 : i32
    %c0_i32_1 = arith.constant 0 : i32
    return %c0_i32, %c0_i32_0 : i32, i32
  }
  func.func @transform_8(%arg0: i32) -> (i32, i32) {
    %c0_i32 = arith.constant 0 : i32
    %c0_i32_0 = arith.constant 0 : i32
    %c0_i32_1 = arith.constant 0 : i32
    return %c0_i32, %c0_i32_0 : i32, i32
  }
  func.func @transform_9(%arg0: i32) -> (i32, i32) {
    %c0_i32 = arith.constant 0 : i32
    %c0_i32_0 = arith.constant 0 : i32
    %c0_i32_1 = arith.constant 0 : i32
    return %c0_i32, %c0_i32_0 : i32, i32
  }
  func.func @transform_10(%arg0: i32) -> (i32, i32) {
    %c0_i32 = arith.constant 0 : i32
    %c0_i32_0 = arith.constant 0 : i32
    %c0_i32_1 = arith.constant 0 : i32
    return %c0_i32, %c0_i32_0 : i32, i32
  }
  func.func @transform_11(%arg0: i32) -> (i32, i32, i32) {
    %c0_i32 = arith.constant 0 : i32
    %c0_i32_0 = arith.constant 0 : i32
    %c0_i32_1 = arith.constant 0 : i32
    return %arg0, %c0_i32, %c0_i32_0 : i32, i32, i32
  }
}

</mosaic_0001>

<llo_original>
// kernel: survival_net_forward.1
$region0: #{survival_net_forward.1}
  #allocation0 [shape = 'u32[]', space=smem, size = 0x4, offset = 0x4, fixed_abs, tag = 'smem constant byte address 0x4 - core index']
  #allocation1 [shape = 'u32[144,128]{1,0:T(1,128)}', space=vmem, size = 0x12000, scoped, tag = 'internal scratch']
  %s0 = inlined_call_operand.vmem [shape: f32[2,4,4096], index: 0, kind: input, shape index: {}]
  %s1 = inlined_call_operand.hbm [shape: f32[2,1,8], index: 1, kind: input, shape index: {}]
  %s2 = inlined_call_operand.vmem [shape: f32[5,4], index: 2, kind: input, shape index: {}]
  %s3 = inlined_call_operand.vmem [shape: f32[5,1], index: 3, kind: input, shape index: {}]
  %s4 = inlined_call_operand.hbm [shape: f32[8,10], index: 4, kind: input, shape index: {}]
  %s5 = inlined_call_operand.hbm [shape: f32[1,10], index: 5, kind: input, shape index: {}]
  %s6 = inlined_call_operand.hbm [shape: f32[10,5,4096], index: 6, kind: input, shape index: {}]
  %s7 = inlined_call_operand.hbm [shape: f32[10,10], index: 7, kind: input, shape index: {}]
  %s8 = inlined_call_operand.hbm [shape: f32[1,10], index: 8, kind: input, shape index: {}]
  %s9 = inlined_call_operand.vmem [shape: f32[10,5], index: 9, kind: input, shape index: {}]
  %s10 = inlined_call_operand.hbm [shape: f32[1,5], index: 10, kind: input, shape index: {}]
  %s11 = inlined_call_operand.hbm [shape: f32[2,1,5], index: 11, kind: output, shape index: {}]
  %s12 = sld [smem:[#allocation0]]
  $region105: #{survival_net_forward.1} parent=0
    _
  %s14 = ssub.s32 1, %s12
  %s15 = scalar_select 0, %s14, %s12
  $region1: #{survival_net_forward.1} parent=0
    #allocation2 [shape = 'u8[1024]{0}', space=vmem, size = 0x400, scoped, tag = 'input window, operand 1']
    #allocation3 [shape = 's32[2]{0}', space=sflag, size = 0x8, scoped, tag = 'scoped memory for survival_net_forward.1']
    #allocation4 [shape = 's32[2]{0}', space=sflag, size = 0x8, scoped, tag = 'scoped memory for survival_net_forward.1']
    #allocation5 [shape = 'u8[4096]{0}', space=vmem, size = 0x1000, scoped, tag = 'input window, operand 4, single buffered']
    #allocation6 [shape = 's32[1]{0}', space=sflag, size = 0x4, scoped, tag = 'scoped memory for survival_net_forward.1']
    #allocation7 [shape = 'u8[512]{0}', space=vmem, size = 0x400, scoped, tag = 'input window, operand 5, single buffered']
    #allocation8 [shape = 'u8[1310720]{0}', space=vmem, size = 0x140000, scoped, tag = 'input window, operand 6, single buffered']
    #allocation9 [shape = 's32[1]{0}', space=sflag, size = 0x4, scoped, tag = 'scoped memory for survival_net_forward.1']
    #allocation10 [shape = 'u8[8192]{0}', space=vmem, size = 0x2000, scoped, tag = 'input window, operand 7, single buffered']
    #allocation11 [shape = 'u8[512]{0}', space=vmem, size = 0x400, scoped, tag = 'input window, operand 8, single buffered']
    #allocation12 [shape = 's32[1]{0}', space=sflag, size = 0x4, scoped, tag = 'scoped memory for survival_net_forward.1']
    #allocation13 [shape = 'u8[512]{0}', space=vmem, size = 0x400, scoped, tag = 'input window, operand 10, single buffered']
    #allocation14 [shape = 'u8[1024]{0}', space=vmem, size = 0x400, scoped, tag = 'output window, operand 0']
    %16 = vsyncpa [#allocation3], 0
    %s17 = scalar_lea.sflag [#allocation3], 1
    %18 = vsyncpa %s17, 0
    %19 = vsyncpa [#allocation6], 0
    %20 = vsyncpa [#allocation9], 0
    %21 = vsyncpa [#allocation12], 0
    %22 = vsyncpa [#allocation4], 0
    %s23 = scalar_lea.sflag [#allocation4], 1
    %24 = vsyncpa %s23, 0
    loop: start=0, step=1, limit=4
    $region2: #{survival_net_forward.1} parent=1 // loop_pre_header
      _
    $region3: #{survival_net_forward.1} parent=1 // loop_header
      %s26 = sphi 0, %s30
      %p27 = scmp.ge.s32.totalorder %s26, 4
      %s36 = sphi 0, %s38
      %s39 = sphi 0, %s36
      %s40 = sphi 0, %s39
      %s56 = sphi 0, %s40
      %s62 = sphi 0, %s64
      %s65 = sphi 0, %s62
      %s66 = sphi 0, %s65
      %s82 = sphi 0, %s66
      %s86 = sphi 0, %s86
      %s88 = sphi 0, %s86
      %s89 = sphi 0, %s88
      %s103 = sphi 0, %s89
      %s107 = sphi 0, %s107
      %s109 = sphi 0, %s107
      %s110 = sphi 0, %s109
      %s124 = sphi 0, %s110
      %s128 = sphi 0, %s128
      %s130 = sphi 0, %s128
      %s131 = sphi 0, %s130
      %s145 = sphi 0, %s131
      %s149 = sphi 0, %s149
      %s151 = sphi 0, %s149
      %s152 = sphi 0, %s151
      %s166 = sphi 0, %s152
      %s170 = sphi 0, %s170
      %s172 = sphi 0, %s170
      %s173 = sphi 0, %s172
      %s187 = sphi 0, %s173
      %s191 = sphi 0, %s191
      %s193 = sphi 0, %s191
      %s194 = sphi 0, %s193
      %s208 = sphi 0, %s194
      %s212 = sphi 0, %s212
      %s214 = sphi 0, %s212
      %s215 = sphi 0, %s214
      %s229 = sphi 0, %s215
      %s233 = sphi 0, %s233
      %s235 = sphi 0, %s233
      %s236 = sphi 0, %s235
      %s250 = sphi 0, %s236
      %s254 = sphi 0, %s254
      %s256 = sphi 0, %s254
      %s257 = sphi 0, %s256
      %s271 = sphi 0, %s257
      %s277 = sphi 0, %s279
      %s280 = sphi 0, %s277
      %s281 = sphi 0, %s280
      %s297 = sphi 0, %s281
    $region4: #{survival_net_forward.1} parent=1 // loop_header_branch
      %29 = sbr.rel (%p27) target = $region8
    $region5: #{survival_net_forward.1} parent=1 // loop_body
      %s31 = ssub.s32 %s26, 1
      %s32 = ssub.s32 %s26, 2
      %s33 = sadd.s32 %s26, 1
      %s34 = ssub.s32 %s26, %s33
      %p35 = scmp.eq.s32.totalorder %s34, 0
      %s37 = sadd.s32 %s36, 1
      %s38 = scalar_select %p35, %s36, %s37
      %p41 = pneg %p35
      %p42 = scmp.eq.s32.totalorder %s26, 1
      %p43 = por %p41, %p42
      %p44 = scmp.ne.s32.totalorder %s36, %s39
      %p45 = scmp.eq.s32.totalorder %s26, 0
      %p46 = por %p44, %p45
      %p47 = scmp.ne.s32.totalorder %s36, %s39
      %p48 = scmp.eq.s32.totalorder %s31, 1
      %p49 = por %p47, %p48
      %p50 = scmp.ne.s32.totalorder %s39, %s40
      %p51 = scmp.eq.s32.totalorder %s31, 0
      %p52 = por %p50, %p51
      %p53 = scmp.ne.s32.totalorder %s39, %s40
      %p54 = scmp.eq.s32.totalorder %s32, 1
      %p55 = por %p53, %p54
      %p57 = scmp.ne.s32.totalorder %s40, %s56
      %p58 = scmp.eq.s32.totalorder %s32, 0
      %p59 = por %p57, %p58
      %s60 = ssub.s32 %s26, %s33
      %p61 = scmp.eq.s32.totalorder %s60, 0
      %s63 = sadd.s32 %s62, 1
      %s64 = scalar_select %p61, %s62, %s63
      %p67 = pneg %p61
      %p68 = scmp.eq.s32.totalorder %s26, 1
      %p69 = por %p67, %p68
      %p70 = scmp.ne.s32.totalorder %s62, %s65
      %p71 = scmp.eq.s32.totalorder %s26, 0
      %p72 = por %p70, %p71
      %p73 = scmp.ne.s32.totalorder %s62, %s65
      %p74 = scmp.eq.s32.totalorder %s31, 1
      %p75 = por %p73, %p74
      %p76 = scmp.ne.s32.totalorder %s65, %s66
      %p77 = scmp.eq.s32.totalorder %s31, 0
      %p78 = por %p76, %p77
      %p79 = scmp.ne.s32.totalorder %s65, %s66
      %p80 = scmp.eq.s32.totalorder %s32, 1
      %p81 = por %p79, %p80
      %p83 = scmp.ne.s32.totalorder %s66, %s82
      %p84 = scmp.eq.s32.totalorder %s32, 0
      %p85 = por %p83, %p84
      %s87 = sadd.s32 %s86, 1
      %p90 = scmp.eq.s32.totalorder %s26, 1
      %p91 = scmp.ne.s32.totalorder %s86, %s88
      %p92 = scmp.eq.s32.totalorder %s26, 0
      %p93 = por %p91, %p92
      %p94 = scmp.ne.s32.totalorder %s86, %s88
      %p95 = scmp.eq.s32.totalorder %s31, 1
      %p96 = por %p94, %p95
      %p97 = scmp.ne.s32.totalorder %s88, %s89
      %p98 = scmp.eq.s32.totalorder %s31, 0
      %p99 = por %p97, %p98
      %p100 = scmp.ne.s32.totalorder %s88, %s89
      %p101 = scmp.eq.s32.totalorder %s32, 1
      %p102 = por %p100, %p101
      %p104 = scmp.ne.s32.totalorder %s89, %s103
      %p105 = scmp.eq.s32.totalorder %s32, 0
      %p106 = por %p104, %p105
      %s108 = sadd.s32 %s107, 1
      %p111 = scmp.eq.s32.totalorder %s26, 1
      %p112 = scmp.ne.s32.totalorder %s107, %s109
      %p113 = scmp.eq.s32.totalorder %s26, 0
      %p114 = por %p112, %p113
      %p115 = scmp.ne.s32.totalorder %s107, %s109
      %p116 = scmp.eq.s32.totalorder %s31, 1
      %p117 = por %p115, %p116
      %p118 = scmp.ne.s32.totalorder %s109, %s110
      %p119 = scmp.eq.s32.totalorder %s31, 0
      %p120 = por %p118, %p119
      %p121 = scmp.ne.s32.totalorder %s109, %s110
      %p122 = scmp.eq.s32.totalorder %s32, 1
      %p123 = por %p121, %p122
      %p125 = scmp.ne.s32.totalorder %s110, %s124
      %p126 = scmp.eq.s32.totalorder %s32, 0
      %p127 = por %p125, %p126
      %s129 = sadd.s32 %s128, 1
      %p132 = scmp.eq.s32.totalorder %s26, 1
      %p133 = scmp.ne.s32.totalorder %s128, %s130
      %p134 = scmp.eq.s32.totalorder %s26, 0
      %p135 = por %p133, %p134
      %p136 = scmp.ne.s32.totalorder %s128, %s130
      %p137 = scmp.eq.s32.totalorder %s31, 1
      %p138 = por %p136, %p137
      %p139 = scmp.ne.s32.totalorder %s130, %s131
      %p140 = scmp.eq.s32.totalorder %s31, 0
      %p141 = por %p139, %p140
      %p142 = scmp.ne.s32.totalorder %s130, %s131
      %p143 = scmp.eq.s32.totalorder %s32, 1
      %p144 = por %p142, %p143
      %p146 = scmp.ne.s32.totalorder %s131, %s145
      %p147 = scmp.eq.s32.totalorder %s32, 0
      %p148 = por %p146, %p147
      %s150 = sadd.s32 %s149, 1
      %p153 = scmp.eq.s32.totalorder %s26, 1
      %p154 = scmp.ne.s32.totalorder %s149, %s151
      %p155 = scmp.eq.s32.totalorder %s26, 0
      %p156 = por %p154, %p155
      %p157 = scmp.ne.s32.totalorder %s149, %s151
      %p158 = scmp.eq.s32.totalorder %s31, 1
      %p159 = por %p157, %p158
      %p160 = scmp.ne.s32.totalorder %s151, %s152
      %p161 = scmp.eq.s32.totalorder %s31, 0
      %p162 = por %p160, %p161
      %p163 = scmp.ne.s32.totalorder %s151, %s152
      %p164 = scmp.eq.s32.totalorder %s32, 1
      %p165 = por %p163, %p164
      %p167 = scmp.ne.s32.totalorder %s152, %s166
      %p168 = scmp.eq.s32.totalorder %s32, 0
      %p169 = por %p167, %p168
      %s171 = sadd.s32 %s170, 1
      %p174 = scmp.eq.s32.totalorder %s26, 1
      %p175 = scmp.ne.s32.totalorder %s170, %s172
      %p176 = scmp.eq.s32.totalorder %s26, 0
      %p177 = por %p175, %p176
      %p178 = scmp.ne.s32.totalorder %s170, %s172
      %p179 = scmp.eq.s32.totalorder %s31, 1
      %p180 = por %p178, %p179
      %p181 = scmp.ne.s32.totalorder %s172, %s173
      %p182 = scmp.eq.s32.totalorder %s31, 0
      %p183 = por %p181, %p182
      %p184 = scmp.ne.s32.totalorder %s172, %s173
      %p185 = scmp.eq.s32.totalorder %s32, 1
      %p186 = por %p184, %p185
      %p188 = scmp.ne.s32.totalorder %s173, %s187
      %p189 = scmp.eq.s32.totalorder %s32, 0
      %p190 = por %p188, %p189
      %s192 = sadd.s32 %s191, 1
      %p195 = scmp.eq.s32.totalorder %s26, 1
      %p196 = scmp.ne.s32.totalorder %s191, %s193
      %p197 = scmp.eq.s32.totalorder %s26, 0
      %p198 = por %p196, %p197
      %p199 = scmp.ne.s32.totalorder %s191, %s193
      %p200 = scmp.eq.s32.totalorder %s31, 1
      %p201 = por %p199, %p200
      %p202 = scmp.ne.s32.totalorder %s193, %s194
      %p203 = scmp.eq.s32.totalorder %s31, 0
      %p204 = por %p202, %p203
      %p205 = scmp.ne.s32.totalorder %s193, %s194
      %p206 = scmp.eq.s32.totalorder %s32, 1
      %p207 = por %p205, %p206
      %p209 = scmp.ne.s32.totalorder %s194, %s208
      %p210 = scmp.eq.s32.totalorder %s32, 0
      %p211 = por %p209, %p210
      %s213 = sadd.s32 %s212, 1
      %p216 = scmp.eq.s32.totalorder %s26, 1
      %p217 = scmp.ne.s32.totalorder %s212, %s214
      %p218 = scmp.eq.s32.totalorder %s26, 0
      %p219 = por %p217, %p218
      %p220 = scmp.ne.s32.totalorder %s212, %s214
      %p221 = scmp.eq.s32.totalorder %s31, 1
      %p222 = por %p220, %p221
      %p223 = scmp.ne.s32.totalorder %s214, %s215
      %p224 = scmp.eq.s32.totalorder %s31, 0
      %p225 = por %p223, %p224
      %p226 = scmp.ne.s32.totalorder %s214, %s215
      %p227 = scmp.eq.s32.totalorder %s32, 1
      %p228 = por %p226, %p227
      %p230 = scmp.ne.s32.totalorder %s215, %s229
      %p231 = scmp.eq.s32.totalorder %s32, 0
      %p232 = por %p230, %p231
      %s234 = sadd.s32 %s233, 1
      %p237 = scmp.eq.s32.totalorder %s26, 1
      %p238 = scmp.ne.s32.totalorder %s233, %s235
      %p239 = scmp.eq.s32.totalorder %s26, 0
      %p240 = por %p238, %p239
      %p241 = scmp.ne.s32.totalorder %s233, %s235
      %p242 = scmp.eq.s32.totalorder %s31, 1
      %p243 = por %p241, %p242
      %p244 = scmp.ne.s32.totalorder %s235, %s236
      %p245 = scmp.eq.s32.totalorder %s31, 0
      %p246 = por %p244, %p245
      %p247 = scmp.ne.s32.totalorder %s235, %s236
      %p248 = scmp.eq.s32.totalorder %s32, 1
      %p249 = por %p247, %p248
      %p251 = scmp.ne.s32.totalorder %s236, %s250
      %p252 = scmp.eq.s32.totalorder %s32, 0
      %p253 = por %p251, %p252
      %s255 = sadd.s32 %s254, 1
      %p258 = scmp.eq.s32.totalorder %s26, 1
      %p259 = scmp.ne.s32.totalorder %s254, %s256
      %p260 = scmp.eq.s32.totalorder %s26, 0
      %p261 = por %p259, %p260
      %p262 = scmp.ne.s32.totalorder %s254, %s256
      %p263 = scmp.eq.s32.totalorder %s31, 1
      %p264 = por %p262, %p263
      %p265 = scmp.ne.s32.totalorder %s256, %s257
      %p266 = scmp.eq.s32.totalorder %s31, 0
      %p267 = por %p265, %p266
      %p268 = scmp.ne.s32.totalorder %s256, %s257
      %p269 = scmp.eq.s32.totalorder %s32, 1
      %p270 = por %p268, %p269
      %p272 = scmp.ne.s32.totalorder %s257, %s271
      %p273 = scmp.eq.s32.totalorder %s32, 0
      %p274 = por %p272, %p273
      %s275 = ssub.s32 %s26, %s33
      %p276 = scmp.eq.s32.totalorder %s275, 0
      %s278 = sadd.s32 %s277, 1
      %s279 = scalar_select %p276, %s277, %s278
      %p282 = pneg %p276
      %p283 = scmp.eq.s32.totalorder %s26, 1
      %p284 = por %p282, %p283
      %p285 = scmp.ne.s32.totalorder %s277, %s280
      %p286 = scmp.eq.s32.totalorder %s26, 0
      %p287 = por %p285, %p286
      %p288 = scmp.ne.s32.totalorder %s277, %s280
      %p289 = scmp.eq.s32.totalorder %s31, 1
      %p290 = por %p288, %p289
      %p291 = scmp.ne.s32.totalorder %s280, %s281
      %p292 = scmp.eq.s32.totalorder %s31, 0
      %p293 = por %p291, %p292
      %p294 = scmp.ne.s32.totalorder %s280, %s281
      %p295 = scmp.eq.s32.totalorder %s32, 1
      %p296 = por %p294, %p295
      %p298 = scmp.ne.s32.totalorder %s281, %s297
      %p299 = scmp.eq.s32.totalorder %s32, 0
      %p300 = por %p298, %p299
      %p301 = scmp.le.s32.totalorder 1, %s26
      %p302 = scmp.lt.s32.totalorder %s26, 3
      %p303 = pnand %p301, %p302
      %p304 = pneg %p303
      // Predicated region
      $region9: #{survival_net_forward.1} parent=5 // pred_check
        _
      $region10: #{survival_net_forward.1} parent=5 // pred_check_branch
        %306 = sbr.rel (%p303) target = $region12
      $region11: #{survival_net_forward.1} parent=5 // pred_region
        %s307 = ssub.s32 %s26, 1
        // Predicated region
        $region13: #{survival_net_forward.1} parent=11 // pred_check
          %p308 = pneg %p99
        $region14: #{survival_net_forward.1} parent=11 // pred_check_branch
          %310 = sbr.rel (%p308) target = $region16
        $region15: #{survival_net_forward.1} parent=11 // pred_region
          _
        $region16: #{survival_net_forward.1} parent=11 // pred_fallthru
          _
        // Predicated region
        $region17: #{survival_net_forward.1} parent=11 // pred_check
          %p311 = pneg %p120
        $region18: #{survival_net_forward.1} parent=11 // pred_check_branch
          %313 = sbr.rel (%p311) target = $region20
        $region19: #{survival_net_forward.1} parent=11 // pred_region
          _
        $region20: #{survival_net_forward.1} parent=11 // pred_fallthru
          _
        // Predicated region
        $region21: #{survival_net_forward.1} parent=11 // pred_check
          %p314 = pneg %p141
        $region22: #{survival_net_forward.1} parent=11 // pred_check_branch
          %316 = sbr.rel (%p314) target = $region24
        $region23: #{survival_net_forward.1} parent=11 // pred_region
          %s318 = ssub.s32 128, 128
          %319 = vsyncadd [#allocation6], %s318
          %s321 = sshll.u32 [#allocation5], 4
          %s322 = int_to_ptr.vmem [resolvable:$true] %s321
          %324 = dma.hbm_to_vmem [thread:$0]  %s4, 128, %s322, [#allocation6]
        $region24: #{survival_net_forward.1} parent=11 // pred_fallthru
          _
        // Predicated region
        $region25: #{survival_net_forward.1} parent=11 // pred_check
          %p325 = pneg %p162
        $region26: #{survival_net_forward.1} parent=11 // pred_check_branch
          %327 = sbr.rel (%p325) target = $region28
        $region27: #{survival_net_forward.1} parent=11 // pred_region
          %s329 = ssub.s32 16, 16
          %330 = vsyncadd [#allocation6], %s329
          %s332 = sshll.u32 [#allocation7], 4
          %s333 = int_to_ptr.vmem [resolvable:$true] %s332
          %335 = dma.hbm_to_vmem [thread:$0]  %s5, 16, %s333, [#allocation6]
        $region28: #{survival_net_forward.1} parent=11 // pred_fallthru
          _
        // Predicated region
        $region29: #{survival_net_forward.1} parent=11 // pred_check
          %p336 = pneg %p183
        $region30: #{survival_net_forward.1} parent=11 // pred_check_branch
          %338 = sbr.rel (%p336) target = $region32
        $region31: #{survival_net_forward.1} parent=11 // pred_region
          %s340 = ssub.s32 40960, 40960
          %341 = vsyncadd [#allocation9], %s340
          %s342 = sshll.u32 [#allocation8], 4
          %s343 = int_to_ptr.vmem [resolvable:$true] %s342
          %348 = dma.hbm_to_vmem [thread:$0]  %s6, 40960, %s343, [#allocation9], 4096, 4096, 256
        $region32: #{survival_net_forward.1} parent=11 // pred_fallthru
          _
        // Predicated region
        $region33: #{survival_net_forward.1} parent=11 // pred_check
          %p349 = pneg %p204
        $region34: #{survival_net_forward.1} parent=11 // pred_check_branch
          %351 = sbr.rel (%p349) target = $region36
        $region35: #{survival_net_forward.1} parent=11 // pred_region
          %s353 = ssub.s32 256, 256
          %354 = vsyncadd [#allocation9], %s353
          %s355 = sshll.u32 [#allocation10], 4
          %s356 = int_to_ptr.vmem [resolvable:$true] %s355
          %361 = dma.hbm_to_vmem [thread:$0]  %s7, 256, %s356, [#allocation9], 128, 128, 8
        $region36: #{survival_net_forward.1} parent=11 // pred_fallthru
          _
        // Predicated region
        $region37: #{survival_net_forward.1} parent=11 // pred_check
          %p362 = pneg %p225
        $region38: #{survival_net_forward.1} parent=11 // pred_check_branch
          %364 = sbr.rel (%p362) target = $region40
        $region39: #{survival_net_forward.1} parent=11 // pred_region
          %s366 = ssub.s32 16, 16
          %367 = vsyncadd [#allocation12], %s366
          %s369 = sshll.u32 [#allocation11], 4
          %s370 = int_to_ptr.vmem [resolvable:$true] %s369
          %372 = dma.hbm_to_vmem [thread:$0]  %s8, 16, %s370, [#allocation12]
        $region40: #{survival_net_forward.1} parent=11 // pred_fallthru
          _
        // Predicated region
        $region41: #{survival_net_forward.1} parent=11 // pred_check
          %p373 = pneg %p246
        $region42: #{survival_net_forward.1} parent=11 // pred_check_branch
          %375 = sbr.rel (%p373) target = $region44
        $region43: #{survival_net_forward.1} parent=11 // pred_region
          _
        $region44: #{survival_net_forward.1} parent=11 // pred_fallthru
          _
        // Predicated region
        $region45: #{survival_net_forward.1} parent=11 // pred_check
          %p376 = pneg %p267
        $region46: #{survival_net_forward.1} parent=11 // pred_check_branch
          %378 = sbr.rel (%p376) target = $region48
        $region47: #{survival_net_forward.1} parent=11 // pred_region
          %s380 = ssub.s32 16, 16
          %381 = vsyncadd [#allocation12], %s380
          %s383 = sshll.u32 [#allocation13], 4
          %s384 = int_to_ptr.vmem [resolvable:$true] %s383
          %386 = dma.hbm_to_vmem [thread:$0]  %s10, 16, %s384, [#allocation12]
        $region48: #{survival_net_forward.1} parent=11 // pred_fallthru
          _
      $region12: #{survival_net_forward.1} parent=5 // pred_fallthru
        _
      %p387 = scmp.lt.s32.totalorder %s26, 2
      // Predicated region
      $region49: #{survival_net_forward.1} parent=5 // pred_check
        %p388 = pneg %p387
      $region50: #{survival_net_forward.1} parent=5 // pred_check_branch
        %390 = sbr.rel (%p388) target = $region52
      $region51: #{survival_net_forward.1} parent=5 // pred_region
        // Predicated region
        $region53: #{survival_net_forward.1} parent=51 // pred_check
          %p391 = pneg %p46
        $region54: #{survival_net_forward.1} parent=51 // pred_check_branch
          %393 = sbr.rel (%p391) target = $region56
        $region55: #{survival_net_forward.1} parent=51 // pred_region
          %p394 = scmp.lt.s32.totalorder %s26, 1
          %s395 = scalar_select %p394, %s26, 1
          %s396 = smul.addr %s395, 32
          %s397 = smul.addr %s396, 4
          %s398 = scalar_lea.vmem %s0, %s397
        $region56: #{survival_net_forward.1} parent=51 // pred_fallthru
          _
        // Predicated region
        $region57: #{survival_net_forward.1} parent=51 // pred_check
          %p399 = pneg %p72
        $region58: #{survival_net_forward.1} parent=51 // pred_check_branch
          %401 = sbr.rel (%p399) target = $region60
        $region59: #{survival_net_forward.1} parent=51 // pred_region
          %s402 = sand.u32 %s62, 1
          %s403 = scalar_lea.sflag [#allocation3], %s402
          %s404 = sand.u32 %s62, 1
          %s405 = scalar_lea.vmem [#allocation2], %s404
          %s407 = ssub.s32 16, 16
          %408 = vsyncadd %s403, %s407
          %s409 = smul.addr %s26, 16
          %s410 = scalar_lea.hbm %s1, %s409
          %s412 = sshll.u32 %s405, 4
          %s413 = int_to_ptr.vmem [resolvable:$true] %s412
          %415 = dma.hbm_to_vmem [thread:$0]  %s410, 16, %s413, %s403
        $region60: #{survival_net_forward.1} parent=51 // pred_fallthru
          _
      $region52: #{survival_net_forward.1} parent=5 // pred_fallthru
        _
      %p416 = scmp.le.s32.totalorder 1, %s26
      %p417 = scmp.lt.s32.totalorder %s26, 3
      %p418 = pnand %p416, %p417
      %p419 = pneg %p418
      // Predicated region
      $region61: #{survival_net_forward.1} parent=5 // pred_check
        _
      $region62: #{survival_net_forward.1} parent=5 // pred_check_branch
        %421 = sbr.rel (%p418) target = $region64
      $region63: #{survival_net_forward.1} parent=5 // pred_region
        %s422 = ssub.s32 %s26, 1
        %s423 = sand.u32 %s65, 1
        %s424 = scalar_lea.sflag [#allocation3], %s423
        %s425 = sand.u32 %s65, 1
        %s426 = scalar_lea.vmem [#allocation2], %s425
        // Predicated region
        $region65: #{survival_net_forward.1} parent=63 // pred_check
          %p427 = pneg %p78
        $region66: #{survival_net_forward.1} parent=63 // pred_check_branch
          %429 = sbr.rel (%p427) target = $region68
        $region67: #{survival_net_forward.1} parent=63 // pred_region
          %430 = dma.done %s424, 16
        $region68: #{survival_net_forward.1} parent=63 // pred_fallthru
          _
        // Predicated region
        $region69: #{survival_net_forward.1} parent=63 // pred_check
          %p431 = pneg %p141
        $region70: #{survival_net_forward.1} parent=63 // pred_check_branch
          %433 = sbr.rel (%p431) target = $region72
        $region71: #{survival_net_forward.1} parent=63 // pred_region
          %434 = dma.done [#allocation6], 128
        $region72: #{survival_net_forward.1} parent=63 // pred_fallthru
          _
        // Predicated region
        $region73: #{survival_net_forward.1} parent=63 // pred_check
          %p435 = pneg %p162
        $region74: #{survival_net_forward.1} parent=63 // pred_check_branch
          %437 = sbr.rel (%p435) target = $region76
        $region75: #{survival_net_forward.1} parent=63 // pred_region
          %438 = dma.done [#allocation6], 16
        $region76: #{survival_net_forward.1} parent=63 // pred_fallthru
          _
        // Predicated region
        $region77: #{survival_net_forward.1} parent=63 // pred_check
          %p439 = pneg %p183
        $region78: #{survival_net_forward.1} parent=63 // pred_check_branch
          %441 = sbr.rel (%p439) target = $region80
        $region79: #{survival_net_forward.1} parent=63 // pred_region
          %442 = dma.done [#allocation9], 40960
        $region80: #{survival_net_forward.1} parent=63 // pred_fallthru
          _
        // Predicated region
        $region81: #{survival_net_forward.1} parent=63 // pred_check
          %p443 = pneg %p204
        $region82: #{survival_net_forward.1} parent=63 // pred_check_branch
          %445 = sbr.rel (%p443) target = $region84
        $region83: #{survival_net_forward.1} parent=63 // pred_region
          %446 = dma.done [#allocation9], 256
        $region84: #{survival_net_forward.1} parent=63 // pred_fallthru
          _
        // Predicated region
        $region85: #{survival_net_forward.1} parent=63 // pred_check
          %p447 = pneg %p225
        $region86: #{survival_net_forward.1} parent=63 // pred_check_branch
          %449 = sbr.rel (%p447) target = $region88
        $region87: #{survival_net_forward.1} parent=63 // pred_region
          %450 = dma.done [#allocation12], 16
        $region88: #{survival_net_forward.1} parent=63 // pred_fallthru
          _
        // Predicated region
        $region89: #{survival_net_forward.1} parent=63 // pred_check
          %p451 = pneg %p267
        $region90: #{survival_net_forward.1} parent=63 // pred_check_branch
          %453 = sbr.rel (%p451) target = $region92
        $region91: #{survival_net_forward.1} parent=63 // pred_region
          %454 = dma.done [#allocation12], 16
        $region92: #{survival_net_forward.1} parent=63 // pred_fallthru
          _
        %p455 = scmp.lt.s32.totalorder %s31, 1
        %s456 = scalar_select %p455, %s31, 1
        %s457 = smul.addr %s456, 32
        %s458 = smul.addr %s457, 4
        %s459 = scalar_lea.vmem %s0, %s458
        %p460 = pneg %p52
        %p461 = pneg %p49
        %s462 = sand.u32 %s65, 1
        %s463 = scalar_lea.sflag [#allocation3], %s462
        %s464 = sand.u32 %s65, 1
        %s465 = scalar_lea.vmem [#allocation2], %s464
        %p466 = pneg %p78
        %p467 = pneg %p75
        %p468 = pneg %p99
        %p469 = pneg %p96
        %p470 = pneg %p120
        %p471 = pneg %p117
        %p472 = pneg %p141
        %p473 = pneg %p138
        %p474 = pneg %p162
        %p475 = pneg %p159
        %p476 = pneg %p183
        %p477 = pneg %p180
        %p478 = pneg %p204
        %p479 = pneg %p201
        %p480 = pneg %p225
        %p481 = pneg %p222
        %p482 = pneg %p246
        %p483 = pneg %p243
        %p484 = pneg %p267
        %p485 = pneg %p264
        %p486 = pneg %p293
        %p487 = pneg %p290
        %s488 = sand.u32 %s280, 1
        %s489 = scalar_lea.sflag [#allocation4], %s488
        %s490 = sand.u32 %s280, 1
        %s491 = scalar_lea.vmem [#allocation14], %s490
        %p492 = scmp.lt.s32.totalorder %s31, 1
        %s493 = scalar_select %p492, %s31, 1
        %s494 = smul.addr %s493, 32
        %s495 = smul.addr %s494, 4
        %s496 = scalar_lea.vmem %s0, %s495
        %v497 = vld [vmem:[%s2] sm:$0x1f]
        %v498 = vld [vmem:[%s496] sm:$0xff]
        %v499 = vld [vmem:[%s496 + $0x8] sm:$0xff]
        %v500 = vld [vmem:[%s496 + $0x10] sm:$0xff]
        %v501 = vld [vmem:[%s496 + $0x18] sm:$0xff]
        %v502 = vld [vmem:[%s496 + $0x20] sm:$0xff]
        %v503 = vld [vmem:[%s496 + $0x28] sm:$0xff]
        %v504 = vld [vmem:[%s496 + $0x30] sm:$0xff]
        %v505 = vld [vmem:[%s496 + $0x38] sm:$0xff]
        %v506 = vld [vmem:[%s496 + $0x40] sm:$0xff]
        %v507 = vld [vmem:[%s496 + $0x48] sm:$0xff]
        %v508 = vld [vmem:[%s496 + $0x50] sm:$0xff]
        %v509 = vld [vmem:[%s496 + $0x58] sm:$0xff]
        %v510 = vld [vmem:[%s496 + $0x60] sm:$0xff]
        %v511 = vld [vmem:[%s496 + $0x68] sm:$0xff]
        %v512 = vld [vmem:[%s496 + $0x70] sm:$0xff]
        %v513 = vld [vmem:[%s496 + $0x78] sm:$0xff]
        %v514 = vld [vmem:[%s3] sm:$0x1f]
        %516 = vset.pattern.permute.xlu0 0
        %517 = vperm.xlu0 %516, %v514
        %v518 = vpop.permute.xlu0 %517
        %v536 = vcombine.high %v498, %v498
        %v537 = vcombine.high %v499, %v499
        %v538 = vcombine.high %v500, %v500
        %v539 = vcombine.high %v501, %v501
        %v540 = vcombine.high %v502, %v502
        %v541 = vcombine.high %v503, %v503
        %v542 = vcombine.high %v504, %v504
        %v543 = vcombine.high %v505, %v505
        %v544 = vcombine.high %v506, %v506
        %v545 = vcombine.high %v507, %v507
        %v546 = vcombine.high %v508, %v508
        %v547 = vcombine.high %v509, %v509
        %v548 = vcombine.high %v510, %v510
        %v549 = vcombine.high %v511, %v511
        %v550 = vcombine.high %v512, %v512
        %v551 = vcombine.high %v513, %v513
        %vm552 = vcmask 31744
        %v554 = vsel %vm552, %v497, 0
        %vm556 = vcmask 1043456
        %v557 = vsel %vm556, %v498, 0
        %v559 = vsel %vm556, %v536, 0
        %v561 = vsel %vm556, %v499, 0
        %v563 = vsel %vm556, %v537, 0
        %v565 = vsel %vm556, %v500, 0
        %v567 = vsel %vm556, %v538, 0
        %v569 = vsel %vm556, %v501, 0
        %v571 = vsel %vm556, %v539, 0
        %v573 = vsel %vm556, %v502, 0
        %v575 = vsel %vm556, %v540, 0
        %v577 = vsel %vm556, %v503, 0
        %v579 = vsel %vm556, %v541, 0
        %v581 = vsel %vm556, %v504, 0
        %v583 = vsel %vm556, %v542, 0
        %v585 = vsel %vm556, %v505, 0
        %v587 = vsel %vm556, %v543, 0
        %v589 = vsel %vm556, %v506, 0
        %v591 = vsel %vm556, %v544, 0
        %v593 = vsel %vm556, %v507, 0
        %v595 = vsel %vm556, %v545, 0
        %v597 = vsel %vm556, %v508, 0
        %v599 = vsel %vm556, %v546, 0
        %v601 = vsel %vm556, %v509, 0
        %v603 = vsel %vm556, %v547, 0
        %v605 = vsel %vm556, %v510, 0
        %v607 = vsel %vm556, %v548, 0
        %v609 = vsel %vm556, %v511, 0
        %v611 = vsel %vm556, %v549, 0
        %v613 = vsel %vm556, %v512, 0
        %v615 = vsel %vm556, %v550, 0
        %v617 = vsel %vm556, %v513, 0
        %v619 = vsel %vm556, %v551, 0
        %621 = vmatprep.subr.mxu0 %v559
        %622 = vmatpush1.msra.mxu0 %v557
        %623 = vmatprep.subr.mxu0 0.0
        %624 = vmatpush1.msra.mxu0 0.0
        %625 = vmatprep.subr.mxu0 0.0
        %626 = vmatpush1.msra.mxu0 0.0
        %627 = vmatprep.subr.mxu0 0.0
        %628 = vmatpush1.msra.mxu0 0.0
        %629 = vmatprep.subr.mxu0 0.0
        %630 = vmatpush1.msra.mxu0 0.0
        %631 = vmatprep.subr.mxu0 0.0
        %632 = vmatpush1.msra.mxu0 0.0
        %633 = vmatprep.subr.mxu0 0.0
        %634 = vmatpush1.msra.mxu0 0.0
        %635 = vmatprep.subr.mxu0 0.0
        %636 = vmatpush1.msra.mxu0 0.0
        %637 = vmatprep.subr.mxu0 0.0
        %638 = vmatpush1.msra.mxu0 0.0
        %639 = vmatprep.subr.mxu0 0.0
        %640 = vmatpush1.msra.mxu0 0.0
        %641 = vmatprep.subr.mxu0 0.0
        %642 = vmatpush1.msra.mxu0 0.0
        %643 = vmatprep.subr.mxu0 0.0
        %644 = vmatpush1.msra.mxu0 0.0
        %645 = vmatprep.subr.mxu0 0.0
        %646 = vmatpush1.msra.mxu0 0.0
        %647 = vmatprep.subr.mxu0 0.0
        %648 = vmatpush1.msra.mxu0 0.0
        %649 = vmatprep.subr.mxu0 0.0
        %650 = vmatpush1.msra.mxu0 0.0
        %651 = vmatprep.subr.mxu0 0.0
        %652 = vmatpush1.msra.mxu0 0.0
        %653 = vmatprep.subr.mxu0 0.0
        %654 = vmatpush1.msra.mxu0 0.0
        %655 = vmatprep.subr.mxu0 0.0
        %656 = vmatpush1.msra.mxu0 0.0
        %657 = vmatprep.subr.mxu0 0.0
        %658 = vmatpush1.msra.mxu0 0.0
        %659 = vmatprep.subr.mxu0 0.0
        %660 = vmatpush1.msra.mxu0 0.0
        %661 = vmatprep.subr.mxu0 0.0
        %662 = vmatpush1.msra.mxu0 0.0
        %663 = vmatprep.subr.mxu0 0.0
        %664 = vmatpush1.msra.mxu0 0.0
        %665 = vmatprep.subr.mxu0 0.0
        %666 = vmatpush1.msra.mxu0 0.0
        %667 = vmatprep.subr.mxu0 0.0
        %668 = vmatpush1.msra.mxu0 0.0
        %669 = vmatprep.subr.mxu0 0.0
        %670 = vmatpush1.msra.mxu0 0.0
        %671 = vmatprep.subr.mxu0 0.0
        %672 = vmatpush1.msra.mxu0 0.0
        %673 = vmatprep.subr.mxu0 0.0
        %674 = vmatpush1.msra.mxu0 0.0
        %675 = vmatprep.subr.mxu0 0.0
        %676 = vmatpush1.msra.mxu0 0.0
        %677 = vmatprep.subr.mxu0 0.0
        %678 = vmatpush1.msra.mxu0 0.0
        %679 = vmatprep.subr.mxu0 0.0
        %680 = vmatpush1.msra.mxu0 0.0
        %681 = vmatprep.subr.mxu0 0.0
        %682 = vmatpush1.msra.mxu0 0.0
        %683 = vmatprep.subr.mxu0 0.0
        %684 = vmatpush1.msra.mxu0 0.0
        %685 = vmatprep.mubr.f32.mxu0 0.0
        %686 = vmatmul.mubr.f32.gmra.mrb[0].mxu0 %v554
        %v687 = vpop.f32.mrb[0].mxu0
        %v688 = vadd.f32 %v518, %v687
        %v689 = vpop.f32.mrb[0].mxu0
        %v690 = vadd.f32 %v518, %v689
        %691 = vdwg.mxu0
        %692 = vmatprep.subr.mxu0 %v563
        %693 = vmatpush1.msra.mxu0 %v561
        %694 = vmatprep.subr.mxu0 0.0
        %695 = vmatpush1.msra.mxu0 0.0
        %696 = vmatprep.subr.mxu0 0.0
        %697 = vmatpush1.msra.mxu0 0.0
        %698 = vmatprep.subr.mxu0 0.0
        %699 = vmatpush1.msra.mxu0 0.0
        %700 = vmatprep.subr.mxu0 0.0
        %701 = vmatpush1.msra.mxu0 0.0
        %702 = vmatprep.subr.mxu0 0.0
        %703 = vmatpush1.msra.mxu0 0.0
        %704 = vmatprep.subr.mxu0 0.0
        %705 = vmatpush1.msra.mxu0 0.0
        %706 = vmatprep.subr.mxu0 0.0
        %707 = vmatpush1.msra.mxu0 0.0
        %708 = vmatprep.subr.mxu0 0.0
        %709 = vmatpush1.msra.mxu0 0.0
        %710 = vmatprep.subr.mxu0 0.0
        %711 = vmatpush1.msra.mxu0 0.0
        %712 = vmatprep.subr.mxu0 0.0
        %713 = vmatpush1.msra.mxu0 0.0
        %714 = vmatprep.subr.mxu0 0.0
        %715 = vmatpush1.msra.mxu0 0.0
        %716 = vmatprep.subr.mxu0 0.0
        %717 = vmatpush1.msra.mxu0 0.0
        %718 = vmatprep.subr.mxu0 0.0
        %719 = vmatpush1.msra.mxu0 0.0
        %720 = vmatprep.subr.mxu0 0.0
        %721 = vmatpush1.msra.mxu0 0.0
        %722 = vmatprep.subr.mxu0 0.0
        %723 = vmatpush1.msra.mxu0 0.0
        %724 = vmatprep.subr.mxu0 0.0
        %725 = vmatpush1.msra.mxu0 0.0
        %726 = vmatprep.subr.mxu0 0.0
        %727 = vmatpush1.msra.mxu0 0.0
        %728 = vmatprep.subr.mxu0 0.0
        %729 = vmatpush1.msra.mxu0 0.0
        %730 = vmatprep.subr.mxu0 0.0
        %731 = vmatpush1.msra.mxu0 0.0
        %732 = vmatprep.subr.mxu0 0.0
        %733 = vmatpush1.msra.mxu0 0.0
        %734 = vmatprep.subr.mxu0 0.0
        %735 = vmatpush1.msra.mxu0 0.0
        %736 = vmatprep.subr.mxu0 0.0
        %737 = vmatpush1.msra.mxu0 0.0
        %738 = vmatprep.subr.mxu0 0.0
        %739 = vmatpush1.msra.mxu0 0.0
        %740 = vmatprep.subr.mxu0 0.0
        %741 = vmatpush1.msra.mxu0 0.0
        %742 = vmatprep.subr.mxu0 0.0
        %743 = vmatpush1.msra.mxu0 0.0
        %744 = vmatprep.subr.mxu0 0.0
        %745 = vmatpush1.msra.mxu0 0.0
        %746 = vmatprep.subr.mxu0 0.0
        %747 = vmatpush1.msra.mxu0 0.0
        %748 = vmatprep.subr.mxu0 0.0
        %749 = vmatpush1.msra.mxu0 0.0
        %750 = vmatprep.subr.mxu0 0.0
        %751 = vmatpush1.msra.mxu0 0.0
        %752 = vmatprep.subr.mxu0 0.0
        %753 = vmatpush1.msra.mxu0 0.0
        %754 = vmatprep.subr.mxu0 0.0
        %755 = vmatpush1.msra.mxu0 0.0
        %756 = vmatprep.mubr.f32.mxu0 0.0
        %757 = vmatmul.mubr.f32.gmra.mrb[0].mxu0 %v554
        %v758 = vpop.f32.mrb[0].mxu0
        %v759 = vadd.f32 %v518, %v758
        %v760 = vpop.f32.mrb[0].mxu0
        %v761 = vadd.f32 %v518, %v760
        %762 = vdwg.mxu0
        %763 = vmatprep.subr.mxu0 %v567
        %764 = vmatpush1.msra.mxu0 %v565
        %765 = vmatprep.subr.mxu0 0.0
        %766 = vmatpush1.msra.mxu0 0.0
        %767 = vmatprep.subr.mxu0 0.0
        %768 = vmatpush1.msra.mxu0 0.0
        %769 = vmatprep.subr.mxu0 0.0
        %770 = vmatpush1.msra.mxu0 0.0
        %771 = vmatprep.subr.mxu0 0.0
        %772 = vmatpush1.msra.mxu0 0.0
        %773 = vmatprep.subr.mxu0 0.0
        %774 = vmatpush1.msra.mxu0 0.0
        %775 = vmatprep.subr.mxu0 0.0
        %776 = vmatpush1.msra.mxu0 0.0
        %777 = vmatprep.subr.mxu0 0.0
        %778 = vmatpush1.msra.mxu0 0.0
        %779 = vmatprep.subr.mxu0 0.0
        %780 = vmatpush1.msra.mxu0 0.0
        %781 = vmatprep.subr.mxu0 0.0
        %782 = vmatpush1.msra.mxu0 0.0
        %783 = vmatprep.subr.mxu0 0.0
        %784 = vmatpush1.msra.mxu0 0.0
        %785 = vmatprep.subr.mxu0 0.0
        %786 = vmatpush1.msra.mxu0 0.0
        %787 = vmatprep.subr.mxu0 0.0
        %788 = vmatpush1.msra.mxu0 0.0
        %789 = vmatprep.subr.mxu0 0.0
        %790 = vmatpush1.msra.mxu0 0.0
        %791 = vmatprep.subr.mxu0 0.0
        %792 = vmatpush1.msra.mxu0 0.0
        %793 = vmatprep.subr.mxu0 0.0
        %794 = vmatpush1.msra.mxu0 0.0
        %795 = vmatprep.subr.mxu0 0.0
        %796 = vmatpush1.msra.mxu0 0.0
        %797 = vmatprep.subr.mxu0 0.0
        %798 = vmatpush1.msra.mxu0 0.0
        %799 = vmatprep.subr.mxu0 0.0
        %800 = vmatpush1.msra.mxu0 0.0
        %801 = vmatprep.subr.mxu0 0.0
        %802 = vmatpush1.msra.mxu0 0.0
        %803 = vmatprep.subr.mxu0 0.0
        %804 = vmatpush1.msra.mxu0 0.0
        %805 = vmatprep.subr.mxu0 0.0
        %806 = vmatpush1.msra.mxu0 0.0
        %807 = vmatprep.subr.mxu0 0.0
        %808 = vmatpush1.msra.mxu0 0.0
        %809 = vmatprep.subr.mxu0 0.0
        %810 = vmatpush1.msra.mxu0 0.0
        %811 = vmatprep.subr.mxu0 0.0
        %812 = vmatpush1.msra.mxu0 0.0
        %813 = vmatprep.subr.mxu0 0.0
        %814 = vmatpush1.msra.mxu0 0.0
        %815 = vmatprep.subr.mxu0 0.0
        %816 = vmatpush1.msra.mxu0 0.0
        %817 = vmatprep.subr.mxu0 0.0
        %818 = vmatpush1.msra.mxu0 0.0
        %819 = vmatprep.subr.mxu0 0.0
        %820 = vmatpush1.msra.mxu0 0.0
        %821 = vmatprep.subr.mxu0 0.0
        %822 = vmatpush1.msra.mxu0 0.0
        %823 = vmatprep.subr.mxu0 0.0
        %824 = vmatpush1.msra.mxu0 0.0
        %825 = vmatprep.subr.mxu0 0.0
        %826 = vmatpush1.msra.mxu0 0.0
        %827 = vmatprep.mubr.f32.mxu0 0.0
        %828 = vmatmul.mubr.f32.gmra.mrb[0].mxu0 %v554
        %v829 = vpop.f32.mrb[0].mxu0
        %v830 = vadd.f32 %v518, %v829
        %v831 = vpop.f32.mrb[0].mxu0
        %v832 = vadd.f32 %v518, %v831
        %833 = vdwg.mxu0
        %834 = vmatprep.subr.mxu0 %v571
        %835 = vmatpush1.msra.mxu0 %v569
        %836 = vmatprep.subr.mxu0 0.0
        %837 = vmatpush1.msra.mxu0 0.0
        %838 = vmatprep.subr.mxu0 0.0
        %839 = vmatpush1.msra.mxu0 0.0
        %840 = vmatprep.subr.mxu0 0.0
        %841 = vmatpush1.msra.mxu0 0.0
        %842 = vmatprep.subr.mxu0 0.0
        %843 = vmatpush1.msra.mxu0 0.0
        %844 = vmatprep.subr.mxu0 0.0
        %845 = vmatpush1.msra.mxu0 0.0
        %846 = vmatprep.subr.mxu0 0.0
        %847 = vmatpush1.msra.mxu0 0.0
        %848 = vmatprep.subr.mxu0 0.0
        %849 = vmatpush1.msra.mxu0 0.0
        %850 = vmatprep.subr.mxu0 0.0
        %851 = vmatpush1.msra.mxu0 0.0
        %852 = vmatprep.subr.mxu0 0.0
        %853 = vmatpush1.msra.mxu0 0.0
        %854 = vmatprep.subr.mxu0 0.0
        %855 = vmatpush1.msra.mxu0 0.0
        %856 = vmatprep.subr.mxu0 0.0
        %857 = vmatpush1.msra.mxu0 0.0
        %858 = vmatprep.subr.mxu0 0.0
        %859 = vmatpush1.msra.mxu0 0.0
        %860 = vmatprep.subr.mxu0 0.0
        %861 = vmatpush1.msra.mxu0 0.0
        %862 = vmatprep.subr.mxu0 0.0
        %863 = vmatpush1.msra.mxu0 0.0
        %864 = vmatprep.subr.mxu0 0.0
        %865 = vmatpush1.msra.mxu0 0.0
        %866 = vmatprep.subr.mxu0 0.0
        %867 = vmatpush1.msra.mxu0 0.0
        %868 = vmatprep.subr.mxu0 0.0
        %869 = vmatpush1.msra.mxu0 0.0
        %870 = vmatprep.subr.mxu0 0.0
        %871 = vmatpush1.msra.mxu0 0.0
        %872 = vmatprep.subr.mxu0 0.0
        %873 = vmatpush1.msra.mxu0 0.0
        %874 = vmatprep.subr.mxu0 0.0
        %875 = vmatpush1.msra.mxu0 0.0
        %876 = vmatprep.subr.mxu0 0.0
        %877 = vmatpush1.msra.mxu0 0.0
        %878 = vmatprep.subr.mxu0 0.0
        %879 = vmatpush1.msra.mxu0 0.0
        %880 = vmatprep.subr.mxu0 0.0
        %881 = vmatpush1.msra.mxu0 0.0
        %882 = vmatprep.subr.mxu0 0.0
        %883 = vmatpush1.msra.mxu0 0.0
        %884 = vmatprep.subr.mxu0 0.0
        %885 = vmatpush1.msra.mxu0 0.0
        %886 = vmatprep.subr.mxu0 0.0
        %887 = vmatpush1.msra.mxu0 0.0
        %888 = vmatprep.subr.mxu0 0.0
        %889 = vmatpush1.msra.mxu0 0.0
        %890 = vmatprep.subr.mxu0 0.0
        %891 = vmatpush1.msra.mxu0 0.0
        %892 = vmatprep.subr.mxu0 0.0
        %893 = vmatpush1.msra.mxu0 0.0
        %894 = vmatprep.subr.mxu0 0.0
        %895 = vmatpush1.msra.mxu0 0.0
        %896 = vmatprep.subr.mxu0 0.0
        %897 = vmatpush1.msra.mxu0 0.0
        %898 = vmatprep.mubr.f32.mxu0 0.0
        %899 = vmatmul.mubr.f32.gmra.mrb[0].mxu0 %v554
        %v900 = vpop.f32.mrb[0].mxu0
        %v901 = vadd.f32 %v518, %v900
        %v902 = vpop.f32.mrb[0].mxu0
        %v903 = vadd.f32 %v518, %v902
        %904 = vdwg.mxu0
        %905 = vmatprep.subr.mxu0 %v575
        %906 = vmatpush1.msra.mxu0 %v573
        %907 = vmatprep.subr.mxu0 0.0
        %908 = vmatpush1.msra.mxu0 0.0
        %909 = vmatprep.subr.mxu0 0.0
        %910 = vmatpush1.msra.mxu0 0.0
        %911 = vmatprep.subr.mxu0 0.0
        %912 = vmatpush1.msra.mxu0 0.0
        %913 = vmatprep.subr.mxu0 0.0
        %914 = vmatpush1.msra.mxu0 0.0
        %915 = vmatprep.subr.mxu0 0.0
        %916 = vmatpush1.msra.mxu0 0.0
        %917 = vmatprep.subr.mxu0 0.0
        %918 = vmatpush1.msra.mxu0 0.0
        %919 = vmatprep.subr.mxu0 0.0
        %920 = vmatpush1.msra.mxu0 0.0
        %921 = vmatprep.subr.mxu0 0.0
        %922 = vmatpush1.msra.mxu0 0.0
        %923 = vmatprep.subr.mxu0 0.0
        %924 = vmatpush1.msra.mxu0 0.0
        %925 = vmatprep.subr.mxu0 0.0
        %926 = vmatpush1.msra.mxu0 0.0
        %927 = vmatprep.subr.mxu0 0.0
        %928 = vmatpush1.msra.mxu0 0.0
        %929 = vmatprep.subr.mxu0 0.0
        %930 = vmatpush1.msra.mxu0 0.0
        %931 = vmatprep.subr.mxu0 0.0
        %932 = vmatpush1.msra.mxu0 0.0
        %933 = vmatprep.subr.mxu0 0.0
        %934 = vmatpush1.msra.mxu0 0.0
        %935 = vmatprep.subr.mxu0 0.0
        %936 = vmatpush1.msra.mxu0 0.0
        %937 = vmatprep.subr.mxu0 0.0
        %938 = vmatpush1.msra.mxu0 0.0
        %939 = vmatprep.subr.mxu0 0.0
        %940 = vmatpush1.msra.mxu0 0.0
        %941 = vmatprep.subr.mxu0 0.0
        %942 = vmatpush1.msra.mxu0 0.0
        %943 = vmatprep.subr.mxu0 0.0
        %944 = vmatpush1.msra.mxu0 0.0
        %945 = vmatprep.subr.mxu0 0.0
        %946 = vmatpush1.msra.mxu0 0.0
        %947 = vmatprep.subr.mxu0 0.0
        %948 = vmatpush1.msra.mxu0 0.0
        %949 = vmatprep.subr.mxu0 0.0
        %950 = vmatpush1.msra.mxu0 0.0
        %951 = vmatprep.subr.mxu0 0.0
        %952 = vmatpush1.msra.mxu0 0.0
        %953 = vmatprep.subr.mxu0 0.0
        %954 = vmatpush1.msra.mxu0 0.0
        %955 = vmatprep.subr.mxu0 0.0
        %956 = vmatpush1.msra.mxu0 0.0
        %957 = vmatprep.subr.mxu0 0.0
        %958 = vmatpush1.msra.mxu0 0.0
        %959 = vmatprep.subr.mxu0 0.0
        %960 = vmatpush1.msra.mxu0 0.0
        %961 = vmatprep.subr.mxu0 0.0
        %962 = vmatpush1.msra.mxu0 0.0
        %963 = vmatprep.subr.mxu0 0.0
        %964 = vmatpush1.msra.mxu0 0.0
        %965 = vmatprep.subr.mxu0 0.0
        %966 = vmatpush1.msra.mxu0 0.0
        %967 = vmatprep.subr.mxu0 0.0
        %968 = vmatpush1.msra.mxu0 0.0
        %969 = vmatprep.mubr.f32.mxu0 0.0
        %970 = vmatmul.mubr.f32.gmra.mrb[0].mxu0 %v554
        %v971 = vpop.f32.mrb[0].mxu0
        %v972 = vadd.f32 %v518, %v971
        %v973 = vpop.f32.mrb[0].mxu0
        %v974 = vadd.f32 %v518, %v973
        %975 = vdwg.mxu0
        %976 = vmatprep.subr.mxu0 %v579
        %977 = vmatpush1.msra.mxu0 %v577
        %978 = vmatprep.subr.mxu0 0.0
        %979 = vmatpush1.msra.mxu0 0.0
        %980 = vmatprep.subr.mxu0 0.0
        %981 = vmatpush1.msra.mxu0 0.0
        %982 = vmatprep.subr.mxu0 0.0
        %983 = vmatpush1.msra.mxu0 0.0
        %984 = vmatprep.subr.mxu0 0.0
        %985 = vmatpush1.msra.mxu0 0.0
        %986 = vmatprep.subr.mxu0 0.0
        %987 = vmatpush1.msra.mxu0 0.0
        %988 = vmatprep.subr.mxu0 0.0
        %989 = vmatpush1.msra.mxu0 0.0
        %990 = vmatprep.subr.mxu0 0.0
        %991 = vmatpush1.msra.mxu0 0.0
        %992 = vmatprep.subr.mxu0 0.0
        %993 = vmatpush1.msra.mxu0 0.0
        %994 = vmatprep.subr.mxu0 0.0
        %995 = vmatpush1.msra.mxu0 0.0
        %996 = vmatprep.subr.mxu0 0.0
        %997 = vmatpush1.msra.mxu0 0.0
        %998 = vmatprep.subr.mxu0 0.0
        %999 = vmatpush1.msra.mxu0 0.0
        %1000 = vmatprep.subr.mxu0 0.0
        %1001 = vmatpush1.msra.mxu0 0.0
        %1002 = vmatprep.subr.mxu0 0.0
        %1003 = vmatpush1.msra.mxu0 0.0
        %1004 = vmatprep.subr.mxu0 0.0
        %1005 = vmatpush1.msra.mxu0 0.0
        %1006 = vmatprep.subr.mxu0 0.0
        %1007 = vmatpush1.msra.mxu0 0.0
        %1008 = vmatprep.subr.mxu0 0.0
        %1009 = vmatpush1.msra.mxu0 0.0
        %1010 = vmatprep.subr.mxu0 0.0
        %1011 = vmatpush1.msra.mxu0 0.0
        %1012 = vmatprep.subr.mxu0 0.0
        %1013 = vmatpush1.msra.mxu0 0.0
        %1014 = vmatprep.subr.mxu0 0.0
        %1015 = vmatpush1.msra.mxu0 0.0
        %1016 = vmatprep.subr.mxu0 0.0
        %1017 = vmatpush1.msra.mxu0 0.0
        %1018 = vmatprep.subr.mxu0 0.0
        %1019 = vmatpush1.msra.mxu0 0.0
        %1020 = vmatprep.subr.mxu0 0.0
        %1021 = vmatpush1.msra.mxu0 0.0
        %1022 = vmatprep.subr.mxu0 0.0
        %1023 = vmatpush1.msra.mxu0 0.0
        %1024 = vmatprep.subr.mxu0 0.0
        %1025 = vmatpush1.msra.mxu0 0.0
        %1026 = vmatprep.subr.mxu0 0.0
        %1027 = vmatpush1.msra.mxu0 0.0
        %1028 = vmatprep.subr.mxu0 0.0
        %1029 = vmatpush1.msra.mxu0 0.0
        %1030 = vmatprep.subr.mxu0 0.0
        %1031 = vmatpush1.msra.mxu0 0.0
        %1032 = vmatprep.subr.mxu0 0.0
        %1033 = vmatpush1.msra.mxu0 0.0
        %1034 = vmatprep.subr.mxu0 0.0
        %1035 = vmatpush1.msra.mxu0 0.0
        %1036 = vmatprep.subr.mxu0 0.0
        %1037 = vmatpush1.msra.mxu0 0.0
        %1038 = vmatprep.subr.mxu0 0.0
        %1039 = vmatpush1.msra.mxu0 0.0
        %1040 = vmatprep.mubr.f32.mxu0 0.0
        %1041 = vmatmul.mubr.f32.gmra.mrb[0].mxu0 %v554
        %v1042 = vpop.f32.mrb[0].mxu0
        %v1043 = vadd.f32 %v518, %v1042
        %v1044 = vpop.f32.mrb[0].mxu0
        %v1045 = vadd.f32 %v518, %v1044
        %1046 = vdwg.mxu0
        %1047 = vmatprep.subr.mxu0 %v583
        %1048 = vmatpush1.msra.mxu0 %v581
        %1049 = vmatprep.subr.mxu0 0.0
        %1050 = vmatpush1.msra.mxu0 0.0
        %1051 = vmatprep.subr.mxu0 0.0
        %1052 = vmatpush1.msra.mxu0 0.0
        %1053 = vmatprep.subr.mxu0 0.0
        %1054 = vmatpush1.msra.mxu0 0.0
        %1055 = vmatprep.subr.mxu0 0.0
        %1056 = vmatpush1.msra.mxu0 0.0
        %1057 = vmatprep.subr.mxu0 0.0
        %1058 = vmatpush1.msra.mxu0 0.0
        %1059 = vmatprep.subr.mxu0 0.0
        %1060 = vmatpush1.msra.mxu0 0.0
        %1061 = vmatprep.subr.mxu0 0.0
        %1062 = vmatpush1.msra.mxu0 0.0
        %1063 = vmatprep.subr.mxu0 0.0
        %1064 = vmatpush1.msra.mxu0 0.0
        %1065 = vmatprep.subr.mxu0 0.0
        %1066 = vmatpush1.msra.mxu0 0.0
        %1067 = vmatprep.subr.mxu0 0.0
        %1068 = vmatpush1.msra.mxu0 0.0
        %1069 = vmatprep.subr.mxu0 0.0
        %1070 = vmatpush1.msra.mxu0 0.0
        %1071 = vmatprep.subr.mxu0 0.0
        %1072 = vmatpush1.msra.mxu0 0.0
        %1073 = vmatprep.subr.mxu0 0.0
        %1074 = vmatpush1.msra.mxu0 0.0
        %1075 = vmatprep.subr.mxu0 0.0
        %1076 = vmatpush1.msra.mxu0 0.0
        %1077 = vmatprep.subr.mxu0 0.0
        %1078 = vmatpush1.msra.mxu0 0.0
        %1079 = vmatprep.subr.mxu0 0.0
        %1080 = vmatpush1.msra.mxu0 0.0
        %1081 = vmatprep.subr.mxu0 0.0
        %1082 = vmatpush1.msra.mxu0 0.0
        %1083 = vmatprep.subr.mxu0 0.0
        %1084 = vmatpush1.msra.mxu0 0.0
        %1085 = vmatprep.subr.mxu0 0.0
        %1086 = vmatpush1.msra.mxu0 0.0
        %1087 = vmatprep.subr.mxu0 0.0
        %1088 = vmatpush1.msra.mxu0 0.0
        %1089 = vmatprep.subr.mxu0 0.0
        %1090 = vmatpush1.msra.mxu0 0.0
        %1091 = vmatprep.subr.mxu0 0.0
        %1092 = vmatpush1.msra.mxu0 0.0
        %1093 = vmatprep.subr.mxu0 0.0
        %1094 = vmatpush1.msra.mxu0 0.0
        %1095 = vmatprep.subr.mxu0 0.0
        %1096 = vmatpush1.msra.mxu0 0.0
        %1097 = vmatprep.subr.mxu0 0.0
        %1098 = vmatpush1.msra.mxu0 0.0
        %1099 = vmatprep.subr.mxu0 0.0
        %1100 = vmatpush1.msra.mxu0 0.0
        %1101 = vmatprep.subr.mxu0 0.0
        %1102 = vmatpush1.msra.mxu0 0.0
        %1103 = vmatprep.subr.mxu0 0.0
        %1104 = vmatpush1.msra.mxu0 0.0
        %1105 = vmatprep.subr.mxu0 0.0
        %1106 = vmatpush1.msra.mxu0 0.0
        %1107 = vmatprep.subr.mxu0 0.0
        %1108 = vmatpush1.msra.mxu0 0.0
        %1109 = vmatprep.subr.mxu0 0.0
        %1110 = vmatpush1.msra.mxu0 0.0
        %1111 = vmatprep.mubr.f32.mxu0 0.0
        %1112 = vmatmul.mubr.f32.gmra.mrb[0].mxu0 %v554
        %v1113 = vpop.f32.mrb[0].mxu0
        %v1114 = vadd.f32 %v518, %v1113
        %v1115 = vpop.f32.mrb[0].mxu0
        %v1116 = vadd.f32 %v518, %v1115
        %1117 = vdwg.mxu0
        %1118 = vmatprep.subr.mxu0 %v587
        %1119 = vmatpush1.msra.mxu0 %v585
        %1120 = vmatprep.subr.mxu0 0.0
        %1121 = vmatpush1.msra.mxu0 0.0
        %1122 = vmatprep.subr.mxu0 0.0
        %1123 = vmatpush1.msra.mxu0 0.0
        %1124 = vmatprep.subr.mxu0 0.0
        %1125 = vmatpush1.msra.mxu0 0.0
        %1126 = vmatprep.subr.mxu0 0.0
        %1127 = vmatpush1.msra.mxu0 0.0
        %1128 = vmatprep.subr.mxu0 0.0
        %1129 = vmatpush1.msra.mxu0 0.0
        %1130 = vmatprep.subr.mxu0 0.0
        %1131 = vmatpush1.msra.mxu0 0.0
        %1132 = vmatprep.subr.mxu0 0.0
        %1133 = vmatpush1.msra.mxu0 0.0
        %1134 = vmatprep.subr.mxu0 0.0
        %1135 = vmatpush1.msra.mxu0 0.0
        %1136 = vmatprep.subr.mxu0 0.0
        %1137 = vmatpush1.msra.mxu0 0.0
        %1138 = vmatprep.subr.mxu0 0.0
        %1139 = vmatpush1.msra.mxu0 0.0
        %1140 = vmatprep.subr.mxu0 0.0
        %1141 = vmatpush1.msra.mxu0 0.0
        %1142 = vmatprep.subr.mxu0 0.0
        %1143 = vmatpush1.msra.mxu0 0.0
        %1144 = vmatprep.subr.mxu0 0.0
        %1145 = vmatpush1.msra.mxu0 0.0
        %1146 = vmatprep.subr.mxu0 0.0
        %1147 = vmatpush1.msra.mxu0 0.0
        %1148 = vmatprep.subr.mxu0 0.0
        %1149 = vmatpush1.msra.mxu0 0.0
        %1150 = vmatprep.subr.mxu0 0.0
        %1151 = vmatpush1.msra.mxu0 0.0
        %1152 = vmatprep.subr.mxu0 0.0
        %1153 = vmatpush1.msra.mxu0 0.0
        %1154 = vmatprep.subr.mxu0 0.0
        %1155 = vmatpush1.msra.mxu0 0.0
        %1156 = vmatprep.subr.mxu0 0.0
        %1157 = vmatpush1.msra.mxu0 0.0
        %1158 = vmatprep.subr.mxu0 0.0
        %1159 = vmatpush1.msra.mxu0 0.0
        %1160 = vmatprep.subr.mxu0 0.0
        %1161 = vmatpush1.msra.mxu0 0.0
        %1162 = vmatprep.subr.mxu0 0.0
        %1163 = vmatpush1.msra.mxu0 0.0
        %1164 = vmatprep.subr.mxu0 0.0
        %1165 = vmatpush1.msra.mxu0 0.0
        %1166 = vmatprep.subr.mxu0 0.0
        %1167 = vmatpush1.msra.mxu0 0.0
        %1168 = vmatprep.subr.mxu0 0.0
        %1169 = vmatpush1.msra.mxu0 0.0
        %1170 = vmatprep.subr.mxu0 0.0
        %1171 = vmatpush1.msra.mxu0 0.0
        %1172 = vmatprep.subr.mxu0 0.0
        %1173 = vmatpush1.msra.mxu0 0.0
        %1174 = vmatprep.subr.mxu0 0.0
        %1175 = vmatpush1.msra.mxu0 0.0
        %1176 = vmatprep.subr.mxu0 0.0
        %1177 = vmatpush1.msra.mxu0 0.0
        %1178 = vmatprep.subr.mxu0 0.0
        %1179 = vmatpush1.msra.mxu0 0.0
        %1180 = vmatprep.subr.mxu0 0.0
        %1181 = vmatpush1.msra.mxu0 0.0
        %1182 = vmatprep.mubr.f32.mxu0 0.0
        %1183 = vmatmul.mubr.f32.gmra.mrb[0].mxu0 %v554
        %v1184 = vpop.f32.mrb[0].mxu0
        %v1185 = vadd.f32 %v518, %v1184
        %v1186 = vpop.f32.mrb[0].mxu0
        %v1187 = vadd.f32 %v518, %v1186
        %1188 = vdwg.mxu0
        %1189 = vmatprep.subr.mxu0 %v591
        %1190 = vmatpush1.msra.mxu0 %v589
        %1191 = vmatprep.subr.mxu0 0.0
        %1192 = vmatpush1.msra.mxu0 0.0
        %1193 = vmatprep.subr.mxu0 0.0
        %1194 = vmatpush1.msra.mxu0 0.0
        %1195 = vmatprep.subr.mxu0 0.0
        %1196 = vmatpush1.msra.mxu0 0.0
        %1197 = vmatprep.subr.mxu0 0.0
        %1198 = vmatpush1.msra.mxu0 0.0
        %1199 = vmatprep.subr.mxu0 0.0
        %1200 = vmatpush1.msra.mxu0 0.0
        %1201 = vmatprep.subr.mxu0 0.0
        %1202 = vmatpush1.msra.mxu0 0.0
        %1203 = vmatprep.subr.mxu0 0.0
        %1204 = vmatpush1.msra.mxu0 0.0
        %1205 = vmatprep.subr.mxu0 0.0
        %1206 = vmatpush1.msra.mxu0 0.0
        %1207 = vmatprep.subr.mxu0 0.0
        %1208 = vmatpush1.msra.mxu0 0.0
        %1209 = vmatprep.subr.mxu0 0.0
        %1210 = vmatpush1.msra.mxu0 0.0
        %1211 = vmatprep.subr.mxu0 0.0
        %1212 = vmatpush1.msra.mxu0 0.0
        %1213 = vmatprep.subr.mxu0 0.0
        %1214 = vmatpush1.msra.mxu0 0.0
        %1215 = vmatprep.subr.mxu0 0.0
        %1216 = vmatpush1.msra.mxu0 0.0
        %1217 = vmatprep.subr.mxu0 0.0
        %1218 = vmatpush1.msra.mxu0 0.0
        %1219 = vmatprep.subr.mxu0 0.0
        %1220 = vmatpush1.msra.mxu0 0.0
        %1221 = vmatprep.subr.mxu0 0.0
        %1222 = vmatpush1.msra.mxu0 0.0
        %1223 = vmatprep.subr.mxu0 0.0
        %1224 = vmatpush1.msra.mxu0 0.0
        %1225 = vmatprep.subr.mxu0 0.0
        %1226 = vmatpush1.msra.mxu0 0.0
        %1227 = vmatprep.subr.mxu0 0.0
        %1228 = vmatpush1.msra.mxu0 0.0
        %1229 = vmatprep.subr.mxu0 0.0
        %1230 = vmatpush1.msra.mxu0 0.0
        %1231 = vmatprep.subr.mxu0 0.0
        %1232 = vmatpush1.msra.mxu0 0.0
        %1233 = vmatprep.subr.mxu0 0.0
        %1234 = vmatpush1.msra.mxu0 0.0
        %1235 = vmatprep.subr.mxu0 0.0
        %1236 = vmatpush1.msra.mxu0 0.0
        %1237 = vmatprep.subr.mxu0 0.0
        %1238 = vmatpush1.msra.mxu0 0.0
        %1239 = vmatprep.subr.mxu0 0.0
        %1240 = vmatpush1.msra.mxu0 0.0
        %1241 = vmatprep.subr.mxu0 0.0
        %1242 = vmatpush1.msra.mxu0 0.0
        %1243 = vmatprep.subr.mxu0 0.0
        %1244 = vmatpush1.msra.mxu0 0.0
        %1245 = vmatprep.subr.mxu0 0.0
        %1246 = vmatpush1.msra.mxu0 0.0
        %1247 = vmatprep.subr.mxu0 0.0
        %1248 = vmatpush1.msra.mxu0 0.0
        %1249 = vmatprep.subr.mxu0 0.0
        %1250 = vmatpush1.msra.mxu0 0.0
        %1251 = vmatprep.subr.mxu0 0.0
        %1252 = vmatpush1.msra.mxu0 0.0
        %1253 = vmatprep.mubr.f32.mxu0 0.0
        %1254 = vmatmul.mubr.f32.gmra.mrb[0].mxu0 %v554
        %v1255 = vpop.f32.mrb[0].mxu0
        %v1256 = vadd.f32 %v518, %v1255
        %v1257 = vpop.f32.mrb[0].mxu0
        %v1258 = vadd.f32 %v518, %v1257
        %1259 = vdwg.mxu0
        %1260 = vmatprep.subr.mxu0 %v595
        %1261 = vmatpush1.msra.mxu0 %v593
        %1262 = vmatprep.subr.mxu0 0.0
        %1263 = vmatpush1.msra.mxu0 0.0
        %1264 = vmatprep.subr.mxu0 0.0
        %1265 = vmatpush1.msra.mxu0 0.0
        %1266 = vmatprep.subr.mxu0 0.0
        %1267 = vmatpush1.msra.mxu0 0.0
        %1268 = vmatprep.subr.mxu0 0.0
        %1269 = vmatpush1.msra.mxu0 0.0
        %1270 = vmatprep.subr.mxu0 0.0
        %1271 = vmatpush1.msra.mxu0 0.0
        %1272 = vmatprep.subr.mxu0 0.0
        %1273 = vmatpush1.msra.mxu0 0.0
        %1274 = vmatprep.subr.mxu0 0.0
        %1275 = vmatpush1.msra.mxu0 0.0
        %1276 = vmatprep.subr.mxu0 0.0
        %1277 = vmatpush1.msra.mxu0 0.0
        %1278 = vmatprep.subr.mxu0 0.0
        %1279 = vmatpush1.msra.mxu0 0.0
        %1280 = vmatprep.subr.mxu0 0.0
        %1281 = vmatpush1.msra.mxu0 0.0
        %1282 = vmatprep.subr.mxu0 0.0
        %1283 = vmatpush1.msra.mxu0 0.0
        %1284 = vmatprep.subr.mxu0 0.0
        %1285 = vmatpush1.msra.mxu0 0.0
        %1286 = vmatprep.subr.mxu0 0.0
        %1287 = vmatpush1.msra.mxu0 0.0
        %1288 = vmatprep.subr.mxu0 0.0
        %1289 = vmatpush1.msra.mxu0 0.0
        %1290 = vmatprep.subr.mxu0 0.0
        %1291 = vmatpush1.msra.mxu0 0.0
        %1292 = vmatprep.subr.mxu0 0.0
        %1293 = vmatpush1.msra.mxu0 0.0
        %1294 = vmatprep.subr.mxu0 0.0
        %1295 = vmatpush1.msra.mxu0 0.0
        %1296 = vmatprep.subr.mxu0 0.0
        %1297 = vmatpush1.msra.mxu0 0.0
        %1298 = vmatprep.subr.mxu0 0.0
        %1299 = vmatpush1.msra.mxu0 0.0
        %1300 = vmatprep.subr.mxu0 0.0
        %1301 = vmatpush1.msra.mxu0 0.0
        %1302 = vmatprep.subr.mxu0 0.0
        %1303 = vmatpush1.msra.mxu0 0.0
        %1304 = vmatprep.subr.mxu0 0.0
        %1305 = vmatpush1.msra.mxu0 0.0
        %1306 = vmatprep.subr.mxu0 0.0
        %1307 = vmatpush1.msra.mxu0 0.0
        %1308 = vmatprep.subr.mxu0 0.0
        %1309 = vmatpush1.msra.mxu0 0.0
        %1310 = vmatprep.subr.mxu0 0.0
        %1311 = vmatpush1.msra.mxu0 0.0
        %1312 = vmatprep.subr.mxu0 0.0
        %1313 = vmatpush1.msra.mxu0 0.0
        %1314 = vmatprep.subr.mxu0 0.0
        %1315 = vmatpush1.msra.mxu0 0.0
        %1316 = vmatprep.subr.mxu0 0.0
        %1317 = vmatpush1.msra.mxu0 0.0
        %1318 = vmatprep.subr.mxu0 0.0
        %1319 = vmatpush1.msra.mxu0 0.0
        %1320 = vmatprep.subr.mxu0 0.0
        %1321 = vmatpush1.msra.mxu0 0.0
        %1322 = vmatprep.subr.mxu0 0.0
        %1323 = vmatpush1.msra.mxu0 0.0
        %1324 = vmatprep.mubr.f32.mxu0 0.0
        %1325 = vmatmul.mubr.f32.gmra.mrb[0].mxu0 %v554
        %v1326 = vpop.f32.mrb[0].mxu0
        %v1327 = vadd.f32 %v518, %v1326
        %v1328 = vpop.f32.mrb[0].mxu0
        %v1329 = vadd.f32 %v518, %v1328
        %1330 = vdwg.mxu0
        %1331 = vmatprep.subr.mxu0 %v599
        %1332 = vmatpush1.msra.mxu0 %v597
        %1333 = vmatprep.subr.mxu0 0.0
        %1334 = vmatpush1.msra.mxu0 0.0
        %1335 = vmatprep.subr.mxu0 0.0
        %1336 = vmatpush1.msra.mxu0 0.0
        %1337 = vmatprep.subr.mxu0 0.0
        %1338 = vmatpush1.msra.mxu0 0.0
        %1339 = vmatprep.subr.mxu0 0.0
        %1340 = vmatpush1.msra.mxu0 0.0
        %1341 = vmatprep.subr.mxu0 0.0
        %1342 = vmatpush1.msra.mxu0 0.0
        %1343 = vmatprep.subr.mxu0 0.0
        %1344 = vmatpush1.msra.mxu0 0.0
        %1345 = vmatprep.subr.mxu0 0.0
        %1346 = vmatpush1.msra.mxu0 0.0
        %1347 = vmatprep.subr.mxu0 0.0
        %1348 = vmatpush1.msra.mxu0 0.0
        %1349 = vmatprep.subr.mxu0 0.0
        %1350 = vmatpush1.msra.mxu0 0.0
        %1351 = vmatprep.subr.mxu0 0.0
        %1352 = vmatpush1.msra.mxu0 0.0
        %1353 = vmatprep.subr.mxu0 0.0
        %1354 = vmatpush1.msra.mxu0 0.0
        %1355 = vmatprep.subr.mxu0 0.0
        %1356 = vmatpush1.msra.mxu0 0.0
        %1357 = vmatprep.subr.mxu0 0.0
        %1358 = vmatpush1.msra.mxu0 0.0
        %1359 = vmatprep.subr.mxu0 0.0
        %1360 = vmatpush1.msra.mxu0 0.0
        %1361 = vmatprep.subr.mxu0 0.0
        %1362 = vmatpush1.msra.mxu0 0.0
        %1363 = vmatprep.subr.mxu0 0.0
        %1364 = vmatpush1.msra.mxu0 0.0
        %1365 = vmatprep.subr.mxu0 0.0
        %1366 = vmatpush1.msra.mxu0 0.0
        %1367 = vmatprep.subr.mxu0 0.0
        %1368 = vmatpush1.msra.mxu0 0.0
        %1369 = vmatprep.subr.mxu0 0.0
        %1370 = vmatpush1.msra.mxu0 0.0
        %1371 = vmatprep.subr.mxu0 0.0
        %1372 = vmatpush1.msra.mxu0 0.0
        %1373 = vmatprep.subr.mxu0 0.0
        %1374 = vmatpush1.msra.mxu0 0.0
        %1375 = vmatprep.subr.mxu0 0.0
        %1376 = vmatpush1.msra.mxu0 0.0
        %1377 = vmatprep.subr.mxu0 0.0
        %1378 = vmatpush1.msra.mxu0 0.0
        %1379 = vmatprep.subr.mxu0 0.0
        %1380 = vmatpush1.msra.mxu0 0.0
        %1381 = vmatprep.subr.mxu0 0.0
        %1382 = vmatpush1.msra.mxu0 0.0
        %1383 = vmatprep.subr.mxu0 0.0
        %1384 = vmatpush1.msra.mxu0 0.0
        %1385 = vmatprep.subr.mxu0 0.0
        %1386 = vmatpush1.msra.mxu0 0.0
        %1387 = vmatprep.subr.mxu0 0.0
        %1388 = vmatpush1.msra.mxu0 0.0
        %1389 = vmatprep.subr.mxu0 0.0
        %1390 = vmatpush1.msra.mxu0 0.0
        %1391 = vmatprep.subr.mxu0 0.0
        %1392 = vmatpush1.msra.mxu0 0.0
        %1393 = vmatprep.subr.mxu0 0.0
        %1394 = vmatpush1.msra.mxu0 0.0
        %1395 = vmatprep.mubr.f32.mxu0 0.0
        %1396 = vmatmul.mubr.f32.gmra.mrb[0].mxu0 %v554
        %v1397 = vpop.f32.mrb[0].mxu0
        %v1398 = vadd.f32 %v518, %v1397
        %v1399 = vpop.f32.mrb[0].mxu0
        %v1400 = vadd.f32 %v518, %v1399
        %1401 = vdwg.mxu0
        %1402 = vmatprep.subr.mxu0 %v603
        %1403 = vmatpush1.msra.mxu0 %v601
        %1404 = vmatprep.subr.mxu0 0.0
        %1405 = vmatpush1.msra.mxu0 0.0
        %1406 = vmatprep.subr.mxu0 0.0
        %1407 = vmatpush1.msra.mxu0 0.0
        %1408 = vmatprep.subr.mxu0 0.0
        %1409 = vmatpush1.msra.mxu0 0.0
        %1410 = vmatprep.subr.mxu0 0.0
        %1411 = vmatpush1.msra.mxu0 0.0
        %1412 = vmatprep.subr.mxu0 0.0
        %1413 = vmatpush1.msra.mxu0 0.0
        %1414 = vmatprep.subr.mxu0 0.0
        %1415 = vmatpush1.msra.mxu0 0.0
        %1416 = vmatprep.subr.mxu0 0.0
        %1417 = vmatpush1.msra.mxu0 0.0
        %1418 = vmatprep.subr.mxu0 0.0
        %1419 = vmatpush1.msra.mxu0 0.0
        %1420 = vmatprep.subr.mxu0 0.0
        %1421 = vmatpush1.msra.mxu0 0.0
        %1422 = vmatprep.subr.mxu0 0.0
        %1423 = vmatpush1.msra.mxu0 0.0
        %1424 = vmatprep.subr.mxu0 0.0
        %1425 = vmatpush1.msra.mxu0 0.0
        %1426 = vmatprep.subr.mxu0 0.0
        %1427 = vmatpush1.msra.mxu0 0.0
        %1428 = vmatprep.subr.mxu0 0.0
        %1429 = vmatpush1.msra.mxu0 0.0
        %1430 = vmatprep.subr.mxu0 0.0
        %1431 = vmatpush1.msra.mxu0 0.0
        %1432 = vmatprep.subr.mxu0 0.0
        %1433 = vmatpush1.msra.mxu0 0.0
        %1434 = vmatprep.subr.mxu0 0.0
        %1435 = vmatpush1.msra.mxu0 0.0
        %1436 = vmatprep.subr.mxu0 0.0
        %1437 = vmatpush1.msra.mxu0 0.0
        %1438 = vmatprep.subr.mxu0 0.0
        %1439 = vmatpush1.msra.mxu0 0.0
        %1440 = vmatprep.subr.mxu0 0.0
        %1441 = vmatpush1.msra.mxu0 0.0
        %1442 = vmatprep.subr.mxu0 0.0
        %1443 = vmatpush1.msra.mxu0 0.0
        %1444 = vmatprep.subr.mxu0 0.0
        %1445 = vmatpush1.msra.mxu0 0.0
        %1446 = vmatprep.subr.mxu0 0.0
        %1447 = vmatpush1.msra.mxu0 0.0
        %1448 = vmatprep.subr.mxu0 0.0
        %1449 = vmatpush1.msra.mxu0 0.0
        %1450 = vmatprep.subr.mxu0 0.0
        %1451 = vmatpush1.msra.mxu0 0.0
        %1452 = vmatprep.subr.mxu0 0.0
        %1453 = vmatpush1.msra.mxu0 0.0
        %1454 = vmatprep.subr.mxu0 0.0
        %1455 = vmatpush1.msra.mxu0 0.0
        %1456 = vmatprep.subr.mxu0 0.0
        %1457 = vmatpush1.msra.mxu0 0.0
        %1458 = vmatprep.subr.mxu0 0.0
        %1459 = vmatpush1.msra.mxu0 0.0
        %1460 = vmatprep.subr.mxu0 0.0
        %1461 = vmatpush1.msra.mxu0 0.0
        %1462 = vmatprep.subr.mxu0 0.0
        %1463 = vmatpush1.msra.mxu0 0.0
        %1464 = vmatprep.subr.mxu0 0.0
        %1465 = vmatpush1.msra.mxu0 0.0
        %1466 = vmatprep.mubr.f32.mxu0 0.0
        %1467 = vmatmul.mubr.f32.gmra.mrb[0].mxu0 %v554
        %v1468 = vpop.f32.mrb[0].mxu0
        %v1469 = vadd.f32 %v518, %v1468
        %v1470 = vpop.f32.mrb[0].mxu0
        %v1471 = vadd.f32 %v518, %v1470
        %1472 = vdwg.mxu0
        %1473 = vmatprep.subr.mxu0 %v607
        %1474 = vmatpush1.msra.mxu0 %v605
        %1475 = vmatprep.subr.mxu0 0.0
        %1476 = vmatpush1.msra.mxu0 0.0
        %1477 = vmatprep.subr.mxu0 0.0
        %1478 = vmatpush1.msra.mxu0 0.0
        %1479 = vmatprep.subr.mxu0 0.0
        %1480 = vmatpush1.msra.mxu0 0.0
        %1481 = vmatprep.subr.mxu0 0.0
        %1482 = vmatpush1.msra.mxu0 0.0
        %1483 = vmatprep.subr.mxu0 0.0
        %1484 = vmatpush1.msra.mxu0 0.0
        %1485 = vmatprep.subr.mxu0 0.0
        %1486 = vmatpush1.msra.mxu0 0.0
        %1487 = vmatprep.subr.mxu0 0.0
        %1488 = vmatpush1.msra.mxu0 0.0
        %1489 = vmatprep.subr.mxu0 0.0
        %1490 = vmatpush1.msra.mxu0 0.0
        %1491 = vmatprep.subr.mxu0 0.0
        %1492 = vmatpush1.msra.mxu0 0.0
        %1493 = vmatprep.subr.mxu0 0.0
        %1494 = vmatpush1.msra.mxu0 0.0
        %1495 = vmatprep.subr.mxu0 0.0
        %1496 = vmatpush1.msra.mxu0 0.0
        %1497 = vmatprep.subr.mxu0 0.0
        %1498 = vmatpush1.msra.mxu0 0.0
        %1499 = vmatprep.subr.mxu0 0.0
        %1500 = vmatpush1.msra.mxu0 0.0
        %1501 = vmatprep.subr.mxu0 0.0
        %1502 = vmatpush1.msra.mxu0 0.0
        %1503 = vmatprep.subr.mxu0 0.0
        %1504 = vmatpush1.msra.mxu0 0.0
        %1505 = vmatprep.subr.mxu0 0.0
        %1506 = vmatpush1.msra.mxu0 0.0
        %1507 = vmatprep.subr.mxu0 0.0
        %1508 = vmatpush1.msra.mxu0 0.0
        %1509 = vmatprep.subr.mxu0 0.0
        %1510 = vmatpush1.msra.mxu0 0.0
        %1511 = vmatprep.subr.mxu0 0.0
        %1512 = vmatpush1.msra.mxu0 0.0
        %1513 = vmatprep.subr.mxu0 0.0
        %1514 = vmatpush1.msra.mxu0 0.0
        %1515 = vmatprep.subr.mxu0 0.0
        %1516 = vmatpush1.msra.mxu0 0.0
        %1517 = vmatprep.subr.mxu0 0.0
        %1518 = vmatpush1.msra.mxu0 0.0
        %1519 = vmatprep.subr.mxu0 0.0
        %1520 = vmatpush1.msra.mxu0 0.0
        %1521 = vmatprep.subr.mxu0 0.0
        %1522 = vmatpush1.msra.mxu0 0.0
        %1523 = vmatprep.subr.mxu0 0.0
        %1524 = vmatpush1.msra.mxu0 0.0
        %1525 = vmatprep.subr.mxu0 0.0
        %1526 = vmatpush1.msra.mxu0 0.0
        %1527 = vmatprep.subr.mxu0 0.0
        %1528 = vmatpush1.msra.mxu0 0.0
        %1529 = vmatprep.subr.mxu0 0.0
        %1530 = vmatpush1.msra.mxu0 0.0
        %1531 = vmatprep.subr.mxu0 0.0
        %1532 = vmatpush1.msra.mxu0 0.0
        %1533 = vmatprep.subr.mxu0 0.0
        %1534 = vmatpush1.msra.mxu0 0.0
        %1535 = vmatprep.subr.mxu0 0.0
        %1536 = vmatpush1.msra.mxu0 0.0
        %1537 = vmatprep.mubr.f32.mxu0 0.0
        %1538 = vmatmul.mubr.f32.gmra.mrb[0].mxu0 %v554
        %v1539 = vpop.f32.mrb[0].mxu0
        %v1540 = vadd.f32 %v518, %v1539
        %v1541 = vpop.f32.mrb[0].mxu0
        %v1542 = vadd.f32 %v518, %v1541
        %1543 = vdwg.mxu0
        %1544 = vmatprep.subr.mxu0 %v611
        %1545 = vmatpush1.msra.mxu0 %v609
        %1546 = vmatprep.subr.mxu0 0.0
        %1547 = vmatpush1.msra.mxu0 0.0
        %1548 = vmatprep.subr.mxu0 0.0
        %1549 = vmatpush1.msra.mxu0 0.0
        %1550 = vmatprep.subr.mxu0 0.0
        %1551 = vmatpush1.msra.mxu0 0.0
        %1552 = vmatprep.subr.mxu0 0.0
        %1553 = vmatpush1.msra.mxu0 0.0
        %1554 = vmatprep.subr.mxu0 0.0
        %1555 = vmatpush1.msra.mxu0 0.0
        %1556 = vmatprep.subr.mxu0 0.0
        %1557 = vmatpush1.msra.mxu0 0.0
        %1558 = vmatprep.subr.mxu0 0.0
        %1559 = vmatpush1.msra.mxu0 0.0
        %1560 = vmatprep.subr.mxu0 0.0
        %1561 = vmatpush1.msra.mxu0 0.0
        %1562 = vmatprep.subr.mxu0 0.0
        %1563 = vmatpush1.msra.mxu0 0.0
        %1564 = vmatprep.subr.mxu0 0.0
        %1565 = vmatpush1.msra.mxu0 0.0
        %1566 = vmatprep.subr.mxu0 0.0
        %1567 = vmatpush1.msra.mxu0 0.0
        %1568 = vmatprep.subr.mxu0 0.0
        %1569 = vmatpush1.msra.mxu0 0.0
        %1570 = vmatprep.subr.mxu0 0.0
        %1571 = vmatpush1.msra.mxu0 0.0
        %1572 = vmatprep.subr.mxu0 0.0
        %1573 = vmatpush1.msra.mxu0 0.0
        %1574 = vmatprep.subr.mxu0 0.0
        %1575 = vmatpush1.msra.mxu0 0.0
        %1576 = vmatprep.subr.mxu0 0.0
        %1577 = vmatpush1.msra.mxu0 0.0
        %1578 = vmatprep.subr.mxu0 0.0
        %1579 = vmatpush1.msra.mxu0 0.0
        %1580 = vmatprep.subr.mxu0 0.0
        %1581 = vmatpush1.msra.mxu0 0.0
        %1582 = vmatprep.subr.mxu0 0.0
        %1583 = vmatpush1.msra.mxu0 0.0
        %1584 = vmatprep.subr.mxu0 0.0
        %1585 = vmatpush1.msra.mxu0 0.0
        %1586 = vmatprep.subr.mxu0 0.0
        %1587 = vmatpush1.msra.mxu0 0.0
        %1588 = vmatprep.subr.mxu0 0.0
        %1589 = vmatpush1.msra.mxu0 0.0
        %1590 = vmatprep.subr.mxu0 0.0
        %1591 = vmatpush1.msra.mxu0 0.0
        %1592 = vmatprep.subr.mxu0 0.0
        %1593 = vmatpush1.msra.mxu0 0.0
        %1594 = vmatprep.subr.mxu0 0.0
        %1595 = vmatpush1.msra.mxu0 0.0
        %1596 = vmatprep.subr.mxu0 0.0
        %1597 = vmatpush1.msra.mxu0 0.0
        %1598 = vmatprep.subr.mxu0 0.0
        %1599 = vmatpush1.msra.mxu0 0.0
        %1600 = vmatprep.subr.mxu0 0.0
        %1601 = vmatpush1.msra.mxu0 0.0
        %1602 = vmatprep.subr.mxu0 0.0
        %1603 = vmatpush1.msra.mxu0 0.0
        %1604 = vmatprep.subr.mxu0 0.0
        %1605 = vmatpush1.msra.mxu0 0.0
        %1606 = vmatprep.subr.mxu0 0.0
        %1607 = vmatpush1.msra.mxu0 0.0
        %1608 = vmatprep.mubr.f32.mxu0 0.0
        %1609 = vmatmul.mubr.f32.gmra.mrb[0].mxu0 %v554
        %v1610 = vpop.f32.mrb[0].mxu0
        %v1611 = vadd.f32 %v518, %v1610
        %v1612 = vpop.f32.mrb[0].mxu0
        %v1613 = vadd.f32 %v518, %v1612
        %1614 = vdwg.mxu0
        %1615 = vmatprep.subr.mxu0 %v615
        %1616 = vmatpush1.msra.mxu0 %v613
        %1617 = vmatprep.subr.mxu0 0.0
        %1618 = vmatpush1.msra.mxu0 0.0
        %1619 = vmatprep.subr.mxu0 0.0
        %1620 = vmatpush1.msra.mxu0 0.0
        %1621 = vmatprep.subr.mxu0 0.0
        %1622 = vmatpush1.msra.mxu0 0.0
        %1623 = vmatprep.subr.mxu0 0.0
        %1624 = vmatpush1.msra.mxu0 0.0
        %1625 = vmatprep.subr.mxu0 0.0
        %1626 = vmatpush1.msra.mxu0 0.0
        %1627 = vmatprep.subr.mxu0 0.0
        %1628 = vmatpush1.msra.mxu0 0.0
        %1629 = vmatprep.subr.mxu0 0.0
        %1630 = vmatpush1.msra.mxu0 0.0
        %1631 = vmatprep.subr.mxu0 0.0
        %1632 = vmatpush1.msra.mxu0 0.0
        %1633 = vmatprep.subr.mxu0 0.0
        %1634 = vmatpush1.msra.mxu0 0.0
        %1635 = vmatprep.subr.mxu0 0.0
        %1636 = vmatpush1.msra.mxu0 0.0
        %1637 = vmatprep.subr.mxu0 0.0
        %1638 = vmatpush1.msra.mxu0 0.0
        %1639 = vmatprep.subr.mxu0 0.0
        %1640 = vmatpush1.msra.mxu0 0.0
        %1641 = vmatprep.subr.mxu0 0.0
        %1642 = vmatpush1.msra.mxu0 0.0
        %1643 = vmatprep.subr.mxu0 0.0
        %1644 = vmatpush1.msra.mxu0 0.0
        %1645 = vmatprep.subr.mxu0 0.0
        %1646 = vmatpush1.msra.mxu0 0.0
        %1647 = vmatprep.subr.mxu0 0.0
        %1648 = vmatpush1.msra.mxu0 0.0
        %1649 = vmatprep.subr.mxu0 0.0
        %1650 = vmatpush1.msra.mxu0 0.0
        %1651 = vmatprep.subr.mxu0 0.0
        %1652 = vmatpush1.msra.mxu0 0.0
        %1653 = vmatprep.subr.mxu0 0.0
        %1654 = vmatpush1.msra.mxu0 0.0
        %1655 = vmatprep.subr.mxu0 0.0
        %1656 = vmatpush1.msra.mxu0 0.0
        %1657 = vmatprep.subr.mxu0 0.0
        %1658 = vmatpush1.msra.mxu0 0.0
        %1659 = vmatprep.subr.mxu0 0.0
        %1660 = vmatpush1.msra.mxu0 0.0
        %1661 = vmatprep.subr.mxu0 0.0
        %1662 = vmatpush1.msra.mxu0 0.0
        %1663 = vmatprep.subr.mxu0 0.0
        %1664 = vmatpush1.msra.mxu0 0.0
        %1665 = vmatprep.subr.mxu0 0.0
        %1666 = vmatpush1.msra.mxu0 0.0
        %1667 = vmatprep.subr.mxu0 0.0
        %1668 = vmatpush1.msra.mxu0 0.0
        %1669 = vmatprep.subr.mxu0 0.0
        %1670 = vmatpush1.msra.mxu0 0.0
        %1671 = vmatprep.subr.mxu0 0.0
        %1672 = vmatpush1.msra.mxu0 0.0
        %1673 = vmatprep.subr.mxu0 0.0
        %1674 = vmatpush1.msra.mxu0 0.0
        %1675 = vmatprep.subr.mxu0 0.0
        %1676 = vmatpush1.msra.mxu0 0.0
        %1677 = vmatprep.subr.mxu0 0.0
        %1678 = vmatpush1.msra.mxu0 0.0
        %1679 = vmatprep.mubr.f32.mxu0 0.0
        %1680 = vmatmul.mubr.f32.gmra.mrb[0].mxu0 %v554
        %v1681 = vpop.f32.mrb[0].mxu0
        %v1682 = vadd.f32 %v518, %v1681
        %v1683 = vpop.f32.mrb[0].mxu0
        %v1684 = vadd.f32 %v518, %v1683
        %1685 = vdwg.mxu0
        %1686 = vmatprep.subr.mxu0 %v619
        %1687 = vmatpush1.msra.mxu0 %v617
        %1688 = vmatprep.subr.mxu0 0.0
        %1689 = vmatpush1.msra.mxu0 0.0
        %1690 = vmatprep.subr.mxu0 0.0
        %1691 = vmatpush1.msra.mxu0 0.0
        %1692 = vmatprep.subr.mxu0 0.0
        %1693 = vmatpush1.msra.mxu0 0.0
        %1694 = vmatprep.subr.mxu0 0.0
        %1695 = vmatpush1.msra.mxu0 0.0
        %1696 = vmatprep.subr.mxu0 0.0
        %1697 = vmatpush1.msra.mxu0 0.0
        %1698 = vmatprep.subr.mxu0 0.0
        %1699 = vmatpush1.msra.mxu0 0.0
        %1700 = vmatprep.subr.mxu0 0.0
        %1701 = vmatpush1.msra.mxu0 0.0
        %1702 = vmatprep.subr.mxu0 0.0
        %1703 = vmatpush1.msra.mxu0 0.0
        %1704 = vmatprep.subr.mxu0 0.0
        %1705 = vmatpush1.msra.mxu0 0.0
        %1706 = vmatprep.subr.mxu0 0.0
        %1707 = vmatpush1.msra.mxu0 0.0
        %1708 = vmatprep.subr.mxu0 0.0
        %1709 = vmatpush1.msra.mxu0 0.0
        %1710 = vmatprep.subr.mxu0 0.0
        %1711 = vmatpush1.msra.mxu0 0.0
        %1712 = vmatprep.subr.mxu0 0.0
        %1713 = vmatpush1.msra.mxu0 0.0
        %1714 = vmatprep.subr.mxu0 0.0
        %1715 = vmatpush1.msra.mxu0 0.0
        %1716 = vmatprep.subr.mxu0 0.0
        %1717 = vmatpush1.msra.mxu0 0.0
        %1718 = vmatprep.subr.mxu0 0.0
        %1719 = vmatpush1.msra.mxu0 0.0
        %1720 = vmatprep.subr.mxu0 0.0
        %1721 = vmatpush1.msra.mxu0 0.0
        %1722 = vmatprep.subr.mxu0 0.0
        %1723 = vmatpush1.msra.mxu0 0.0
        %1724 = vmatprep.subr.mxu0 0.0
        %1725 = vmatpush1.msra.mxu0 0.0
        %1726 = vmatprep.subr.mxu0 0.0
        %1727 = vmatpush1.msra.mxu0 0.0
        %1728 = vmatprep.subr.mxu0 0.0
        %1729 = vmatpush1.msra.mxu0 0.0
        %1730 = vmatprep.subr.mxu0 0.0
        %1731 = vmatpush1.msra.mxu0 0.0
        %1732 = vmatprep.subr.mxu0 0.0
        %1733 = vmatpush1.msra.mxu0 0.0
        %1734 = vmatprep.subr.mxu0 0.0
        %1735 = vmatpush1.msra.mxu0 0.0
        %1736 = vmatprep.subr.mxu0 0.0
        %1737 = vmatpush1.msra.mxu0 0.0
        %1738 = vmatprep.subr.mxu0 0.0
        %1739 = vmatpush1.msra.mxu0 0.0
        %1740 = vmatprep.subr.mxu0 0.0
        %1741 = vmatpush1.msra.mxu0 0.0
        %1742 = vmatprep.subr.mxu0 0.0
        %1743 = vmatpush1.msra.mxu0 0.0
        %1744 = vmatprep.subr.mxu0 0.0
        %1745 = vmatpush1.msra.mxu0 0.0
        %1746 = vmatprep.subr.mxu0 0.0
        %1747 = vmatpush1.msra.mxu0 0.0
        %1748 = vmatprep.subr.mxu0 0.0
        %1749 = vmatpush1.msra.mxu0 0.0
        %1750 = vmatprep.mubr.f32.mxu0 0.0
        %1751 = vmatmul.mubr.f32.gmra.mrb[0].mxu0 %v554
        %v1752 = vpop.f32.mrb[0].mxu0
        %v1753 = vadd.f32 %v518, %v1752
        %v1754 = vpop.f32.mrb[0].mxu0
        %v1755 = vadd.f32 %v518, %v1754
        %1756 = vdwg.mxu0
        %v1757 = vld [vmem:[%s426] sm:$0x1]
        %v1758 = vld [vmem:[#allocation5] sm:$0xff]
        %v1759 = vld [vmem:[#allocation7] sm:$0x1]
        %vm1760 = vcmask 64512
        %v1762 = vsel %vm1760, %v1757, 0
        %1764 = vmatprep.subr.mxu0 0.0
        %1765 = vmatpush1.msra.mxu0 %v1758
        %1766 = vmatprep.subr.mxu0 0.0
        %1767 = vmatpush1.msra.mxu0 0.0
        %1768 = vmatprep.subr.mxu0 0.0
        %1769 = vmatpush1.msra.mxu0 0.0
        %1770 = vmatprep.subr.mxu0 0.0
        %1771 = vmatpush1.msra.mxu0 0.0
        %1772 = vmatprep.subr.mxu0 0.0
        %1773 = vmatpush1.msra.mxu0 0.0
        %1774 = vmatprep.subr.mxu0 0.0
        %1775 = vmatpush1.msra.mxu0 0.0
        %1776 = vmatprep.subr.mxu0 0.0
        %1777 = vmatpush1.msra.mxu0 0.0
        %1778 = vmatprep.subr.mxu0 0.0
        %1779 = vmatpush1.msra.mxu0 0.0
        %1780 = vmatprep.subr.mxu0 0.0
        %1781 = vmatpush1.msra.mxu0 0.0
        %1782 = vmatprep.subr.mxu0 0.0
        %1783 = vmatpush1.msra.mxu0 0.0
        %1784 = vmatprep.subr.mxu0 0.0
        %1785 = vmatpush1.msra.mxu0 0.0
        %1786 = vmatprep.subr.mxu0 0.0
        %1787 = vmatpush1.msra.mxu0 0.0
        %1788 = vmatprep.subr.mxu0 0.0
        %1789 = vmatpush1.msra.mxu0 0.0
        %1790 = vmatprep.subr.mxu0 0.0
        %1791 = vmatpush1.msra.mxu0 0.0
        %1792 = vmatprep.subr.mxu0 0.0
        %1793 = vmatpush1.msra.mxu0 0.0
        %1794 = vmatprep.subr.mxu0 0.0
        %1795 = vmatpush1.msra.mxu0 0.0
        %1796 = vmatprep.subr.mxu0 0.0
        %1797 = vmatpush1.msra.mxu0 0.0
        %1798 = vmatprep.subr.mxu0 0.0
        %1799 = vmatpush1.msra.mxu0 0.0
        %1800 = vmatprep.subr.mxu0 0.0
        %1801 = vmatpush1.msra.mxu0 0.0
        %1802 = vmatprep.subr.mxu0 0.0
        %1803 = vmatpush1.msra.mxu0 0.0
        %1804 = vmatprep.subr.mxu0 0.0
        %1805 = vmatpush1.msra.mxu0 0.0
        %1806 = vmatprep.subr.mxu0 0.0
        %1807 = vmatpush1.msra.mxu0 0.0
        %1808 = vmatprep.subr.mxu0 0.0
        %1809 = vmatpush1.msra.mxu0 0.0
        %1810 = vmatprep.subr.mxu0 0.0
        %1811 = vmatpush1.msra.mxu0 0.0
        %1812 = vmatprep.subr.mxu0 0.0
        %1813 = vmatpush1.msra.mxu0 0.0
        %1814 = vmatprep.subr.mxu0 0.0
        %1815 = vmatpush1.msra.mxu0 0.0
        %1816 = vmatprep.subr.mxu0 0.0
        %1817 = vmatpush1.msra.mxu0 0.0
        %1818 = vmatprep.subr.mxu0 0.0
        %1819 = vmatpush1.msra.mxu0 0.0
        %1820 = vmatprep.subr.mxu0 0.0
        %1821 = vmatpush1.msra.mxu0 0.0
        %1822 = vmatprep.subr.mxu0 0.0
        %1823 = vmatpush1.msra.mxu0 0.0
        %1824 = vmatprep.subr.mxu0 0.0
        %1825 = vmatpush1.msra.mxu0 0.0
        %1826 = vmatprep.subr.mxu0 0.0
        %1827 = vmatpush1.msra.mxu0 0.0
        %1828 = vmatprep.mubr.f32.mxu0 0.0
        %1829 = vmatmul.mubr.f32.gmra.mrb[0].mxu0 %v1762
        %v1830 = vpop.f32.mrb[0].mxu0
        %v1831 = vadd.f32 %v1759, %v1830
        %v1832 = vpop.f32.mrb[0].mxu0
        %1833 = vdwg.mxu0
        %v1834 = vld [vmem:[#allocation8] sm:$0x1f]
        %v1835 = vld [vmem:[#allocation8 + $0x8] sm:$0x1f]
        %v1836 = vld [vmem:[#allocation8 + $0x10] sm:$0x1f]
        %v1837 = vld [vmem:[#allocation8 + $0x18] sm:$0x1f]
        %v1838 = vld [vmem:[#allocation8 + $0x20] sm:$0x1f]
        %v1839 = vld [vmem:[#allocation8 + $0x28] sm:$0x1f]
        %v1840 = vld [vmem:[#allocation8 + $0x30] sm:$0x1f]
        %v1841 = vld [vmem:[#allocation8 + $0x38] sm:$0x1f]
        %v1842 = vld [vmem:[#allocation8 + $0x40] sm:$0x1f]
        %v1843 = vld [vmem:[#allocation8 + $0x48] sm:$0x1f]
        %v1844 = vld [vmem:[#allocation8 + $0x50] sm:$0x1f]
        %v1845 = vld [vmem:[#allocation8 + $0x58] sm:$0x1f]
        %v1846 = vld [vmem:[#allocation8 + $0x60] sm:$0x1f]
        %v1847 = vld [vmem:[#allocation8 + $0x68] sm:$0x1f]
        %v1848 = vld [vmem:[#allocation8 + $0x70] sm:$0x1f]
        %v1849 = vld [vmem:[#allocation8 + $0x78] sm:$0x1f]
        %v1850 = vld [vmem:[#allocation8 + $0x80] sm:$0x1f]
        %v1851 = vld [vmem:[#allocation8 + $0x88] sm:$0x1f]
        %v1852 = vld [vmem:[#allocation8 + $0x90] sm:$0x1f]
        %v1853 = vld [vmem:[#allocation8 + $0x98] sm:$0x1f]
        %v1854 = vld [vmem:[#allocation8 + $0xa0] sm:$0x1f]
        %v1855 = vld [vmem:[#allocation8 + $0xa8] sm:$0x1f]
        %v1856 = vld [vmem:[#allocation8 + $0xb0] sm:$0x1f]
        %v1857 = vld [vmem:[#allocation8 + $0xb8] sm:$0x1f]
        %v1858 = vld [vmem:[#allocation8 + $0xc0] sm:$0x1f]
        %v1859 = vld [vmem:[#allocation8 + $0xc8] sm:$0x1f]
        %v1860 = vld [vmem:[#allocation8 + $0xd0] sm:$0x1f]
        %v1861 = vld [vmem:[#allocation8 + $0xd8] sm:$0x1f]
        %v1862 = vld [vmem:[#allocation8 + $0xe0] sm:$0x1f]
        %v1863 = vld [vmem:[#allocation8 + $0xe8] sm:$0x1f]
        %v1864 = vld [vmem:[#allocation8 + $0xf0] sm:$0x1f]
        %v1865 = vld [vmem:[#allocation8 + $0xf8] sm:$0x1f]
        %v1866 = vld [vmem:[#allocation8 + $0x100] sm:$0x1f]
        %v1867 = vld [vmem:[#allocation8 + $0x108] sm:$0x1f]
        %v1868 = vld [vmem:[#allocation8 + $0x110] sm:$0x1f]
        %v1869 = vld [vmem:[#allocation8 + $0x118] sm:$0x1f]
        %v1870 = vld [vmem:[#allocation8 + $0x120] sm:$0x1f]
        %v1871 = vld [vmem:[#allocation8 + $0x128] sm:$0x1f]
        %v1872 = vld [vmem:[#allocation8 + $0x130] sm:$0x1f]
        %v1873 = vld [vmem:[#allocation8 + $0x138] sm:$0x1f]
        %v1874 = vld [vmem:[#allocation8 + $0x140] sm:$0x1f]
        %v1875 = vld [vmem:[#allocation8 + $0x148] sm:$0x1f]
        %v1876 = vld [vmem:[#allocation8 + $0x150] sm:$0x1f]
        %v1877 = vld [vmem:[#allocation8 + $0x158] sm:$0x1f]
        %v1878 = vld [vmem:[#allocation8 + $0x160] sm:$0x1f]
        %v1879 = vld [vmem:[#allocation8 + $0x168] sm:$0x1f]
        %v1880 = vld [vmem:[#allocation8 + $0x170] sm:$0x1f]
        %v1881 = vld [vmem:[#allocation8 + $0x178] sm:$0x1f]
        %v1882 = vld [vmem:[#allocation8 + $0x180] sm:$0x1f]
        %v1883 = vld [vmem:[#allocation8 + $0x188] sm:$0x1f]
        %v1884 = vld [vmem:[#allocation8 + $0x190] sm:$0x1f]
        %v1885 = vld [vmem:[#allocation8 + $0x198] sm:$0x1f]
        %v1886 = vld [vmem:[#allocation8 + $0x1a0] sm:$0x1f]
        %v1887 = vld [vmem:[#allocation8 + $0x1a8] sm:$0x1f]
        %v1888 = vld [vmem:[#allocation8 + $0x1b0] sm:$0x1f]
        %v1889 = vld [vmem:[#allocation8 + $0x1b8] sm:$0x1f]
        %v1890 = vld [vmem:[#allocation8 + $0x1c0] sm:$0x1f]
        %v1891 = vld [vmem:[#allocation8 + $0x1c8] sm:$0x1f]
        %v1892 = vld [vmem:[#allocation8 + $0x1d0] sm:$0x1f]
        %v1893 = vld [vmem:[#allocation8 + $0x1d8] sm:$0x1f]
        %v1894 = vld [vmem:[#allocation8 + $0x1e0] sm:$0x1f]
        %v1895 = vld [vmem:[#allocation8 + $0x1e8] sm:$0x1f]
        %v1896 = vld [vmem:[#allocation8 + $0x1f0] sm:$0x1f]
        %v1897 = vld [vmem:[#allocation8 + $0x1f8] sm:$0x1f]
        %v1898 = vld [vmem:[#allocation8 + $0x200] sm:$0x1f]
        %v1899 = vld [vmem:[#allocation8 + $0x208] sm:$0x1f]
        %v1900 = vld [vmem:[#allocation8 + $0x210] sm:$0x1f]
        %v1901 = vld [vmem:[#allocation8 + $0x218] sm:$0x1f]
        %v1902 = vld [vmem:[#allocation8 + $0x220] sm:$0x1f]
        %v1903 = vld [vmem:[#allocation8 + $0x228] sm:$0x1f]
        %v1904 = vld [vmem:[#allocation8 + $0x230] sm:$0x1f]
        %v1905 = vld [vmem:[#allocation8 + $0x238] sm:$0x1f]
        %v1906 = vld [vmem:[#allocation8 + $0x240] sm:$0x1f]
        %v1907 = vld [vmem:[#allocation8 + $0x248] sm:$0x1f]
        %v1908 = vld [vmem:[#allocation8 + $0x250] sm:$0x1f]
        %v1909 = vld [vmem:[#allocation8 + $0x258] sm:$0x1f]
        %v1910 = vld [vmem:[#allocation8 + $0x260] sm:$0x1f]
        %v1911 = vld [vmem:[#allocation8 + $0x268] sm:$0x1f]
        %v1912 = vld [vmem:[#allocation8 + $0x270] sm:$0x1f]
        %v1913 = vld [vmem:[#allocation8 + $0x278] sm:$0x1f]
        %v1914 = vld [vmem:[#allocation8 + $0x280] sm:$0x1f]
        %v1915 = vld [vmem:[#allocation8 + $0x288] sm:$0x1f]
        %v1916 = vld [vmem:[#allocation8 + $0x290] sm:$0x1f]
        %v1917 = vld [vmem:[#allocation8 + $0x298] sm:$0x1f]
        %v1918 = vld [vmem:[#allocation8 + $0x2a0] sm:$0x1f]
        %v1919 = vld [vmem:[#allocation8 + $0x2a8] sm:$0x1f]
        %v1920 = vld [vmem:[#allocation8 + $0x2b0] sm:$0x1f]
        %v1921 = vld [vmem:[#allocation8 + $0x2b8] sm:$0x1f]
        %v1922 = vld [vmem:[#allocation8 + $0x2c0] sm:$0x1f]
        %v1923 = vld [vmem:[#allocation8 + $0x2c8] sm:$0x1f]
        %v1924 = vld [vmem:[#allocation8 + $0x2d0] sm:$0x1f]
        %v1925 = vld [vmem:[#allocation8 + $0x2d8] sm:$0x1f]
        %v1926 = vld [vmem:[#allocation8 + $0x2e0] sm:$0x1f]
        %v1927 = vld [vmem:[#allocation8 + $0x2e8] sm:$0x1f]
        %v1928 = vld [vmem:[#allocation8 + $0x2f0] sm:$0x1f]
        %v1929 = vld [vmem:[#allocation8 + $0x2f8] sm:$0x1f]
        %v1930 = vld [vmem:[#allocation8 + $0x300] sm:$0x1f]
        %v1931 = vld [vmem:[#allocation8 + $0x308] sm:$0x1f]
        %v1932 = vld [vmem:[#allocation8 + $0x310] sm:$0x1f]
        %v1933 = vld [vmem:[#allocation8 + $0x318] sm:$0x1f]
        %v1934 = vld [vmem:[#allocation8 + $0x320] sm:$0x1f]
        %v1935 = vld [vmem:[#allocation8 + $0x328] sm:$0x1f]
        %v1936 = vld [vmem:[#allocation8 + $0x330] sm:$0x1f]
        %v1937 = vld [vmem:[#allocation8 + $0x338] sm:$0x1f]
        %v1938 = vld [vmem:[#allocation8 + $0x340] sm:$0x1f]
        %v1939 = vld [vmem:[#allocation8 + $0x348] sm:$0x1f]
        %v1940 = vld [vmem:[#allocation8 + $0x350] sm:$0x1f]
        %v1941 = vld [vmem:[#allocation8 + $0x358] sm:$0x1f]
        %v1942 = vld [vmem:[#allocation8 + $0x360] sm:$0x1f]
        %v1943 = vld [vmem:[#allocation8 + $0x368] sm:$0x1f]
        %v1944 = vld [vmem:[#allocation8 + $0x370] sm:$0x1f]
        %v1945 = vld [vmem:[#allocation8 + $0x378] sm:$0x1f]
        %v1946 = vld [vmem:[#allocation8 + $0x380] sm:$0x1f]
        %v1947 = vld [vmem:[#allocation8 + $0x388] sm:$0x1f]
        %v1948 = vld [vmem:[#allocation8 + $0x390] sm:$0x1f]
        %v1949 = vld [vmem:[#allocation8 + $0x398] sm:$0x1f]
        %v1950 = vld [vmem:[#allocation8 + $0x3a0] sm:$0x1f]
        %v1951 = vld [vmem:[#allocation8 + $0x3a8] sm:$0x1f]
        %v1952 = vld [vmem:[#allocation8 + $0x3b0] sm:$0x1f]
        %v1953 = vld [vmem:[#allocation8 + $0x3b8] sm:$0x1f]
        %v1954 = vld [vmem:[#allocation8 + $0x3c0] sm:$0x1f]
        %v1955 = vld [vmem:[#allocation8 + $0x3c8] sm:$0x1f]
        %v1956 = vld [vmem:[#allocation8 + $0x3d0] sm:$0x1f]
        %v1957 = vld [vmem:[#allocation8 + $0x3d8] sm:$0x1f]
        %v1958 = vld [vmem:[#allocation8 + $0x3e0] sm:$0x1f]
        %v1959 = vld [vmem:[#allocation8 + $0x3e8] sm:$0x1f]
        %v1960 = vld [vmem:[#allocation8 + $0x3f0] sm:$0x1f]
        %v1961 = vld [vmem:[#allocation8 + $0x3f8] sm:$0x1f]
        %v1962 = vld [vmem:[#allocation8 + $0x400] sm:$0x1f]
        %v1963 = vld [vmem:[#allocation8 + $0x408] sm:$0x1f]
        %v1964 = vld [vmem:[#allocation8 + $0x410] sm:$0x1f]
        %v1965 = vld [vmem:[#allocation8 + $0x418] sm:$0x1f]
        %v1966 = vld [vmem:[#allocation8 + $0x420] sm:$0x1f]
        %v1967 = vld [vmem:[#allocation8 + $0x428] sm:$0x1f]
        %v1968 = vld [vmem:[#allocation8 + $0x430] sm:$0x1f]
        %v1969 = vld [vmem:[#allocation8 + $0x438] sm:$0x1f]
        %v1970 = vld [vmem:[#allocation8 + $0x440] sm:$0x1f]
        %v1971 = vld [vmem:[#allocation8 + $0x448] sm:$0x1f]
        %v1972 = vld [vmem:[#allocation8 + $0x450] sm:$0x1f]
        %v1973 = vld [vmem:[#allocation8 + $0x458] sm:$0x1f]
        %v1974 = vld [vmem:[#allocation8 + $0x460] sm:$0x1f]
        %v1975 = vld [vmem:[#allocation8 + $0x468] sm:$0x1f]
        %v1976 = vld [vmem:[#allocation8 + $0x470] sm:$0x1f]
        %v1977 = vld [vmem:[#allocation8 + $0x478] sm:$0x1f]
        %v1978 = vld [vmem:[#allocation8 + $0x480] sm:$0x1f]
        %v1979 = vld [vmem:[#allocation8 + $0x488] sm:$0x1f]
        %v1980 = vld [vmem:[#allocation8 + $0x490] sm:$0x1f]
        %v1981 = vld [vmem:[#allocation8 + $0x498] sm:$0x1f]
        %v1982 = vld [vmem:[#allocation8 + $0x4a0] sm:$0x1f]
        %v1983 = vld [vmem:[#allocation8 + $0x4a8] sm:$0x1f]
        %v1984 = vld [vmem:[#allocation8 + $0x4b0] sm:$0x1f]
        %v1985 = vld [vmem:[#allocation8 + $0x4b8] sm:$0x1f]
        %v1986 = vld [vmem:[#allocation8 + $0x4c0] sm:$0x1f]
        %v1987 = vld [vmem:[#allocation8 + $0x4c8] sm:$0x1f]
        %v1988 = vld [vmem:[#allocation8 + $0x4d0] sm:$0x1f]
        %v1989 = vld [vmem:[#allocation8 + $0x4d8] sm:$0x1f]
        %v1990 = vld [vmem:[#allocation8 + $0x4e0] sm:$0x1f]
        %v1991 = vld [vmem:[#allocation8 + $0x4e8] sm:$0x1f]
        %v1992 = vld [vmem:[#allocation8 + $0x4f0] sm:$0x1f]
        %v1993 = vld [vmem:[#allocation8 + $0x4f8] sm:$0x1f]
        %v1994 = vld [vmem:[#allocation8 + $0x500] sm:$0x1f]
        %v1995 = vld [vmem:[#allocation8 + $0x508] sm:$0x1f]
        %v1996 = vld [vmem:[#allocation8 + $0x510] sm:$0x1f]
        %v1997 = vld [vmem:[#allocation8 + $0x518] sm:$0x1f]
        %v1998 = vld [vmem:[#allocation8 + $0x520] sm:$0x1f]
        %v1999 = vld [vmem:[#allocation8 + $0x528] sm:$0x1f]
        %v2000 = vld [vmem:[#allocation8 + $0x530] sm:$0x1f]
        %v2001 = vld [vmem:[#allocation8 + $0x538] sm:$0x1f]
        %v2002 = vld [vmem:[#allocation8 + $0x540] sm:$0x1f]
        %v2003 = vld [vmem:[#allocation8 + $0x548] sm:$0x1f]
        %v2004 = vld [vmem:[#allocation8 + $0x550] sm:$0x1f]
        %v2005 = vld [vmem:[#allocation8 + $0x558] sm:$0x1f]
        %v2006 = vld [vmem:[#allocation8 + $0x560] sm:$0x1f]
        %v2007 = vld [vmem:[#allocation8 + $0x568] sm:$0x1f]
        %v2008 = vld [vmem:[#allocation8 + $0x570] sm:$0x1f]
        %v2009 = vld [vmem:[#allocation8 + $0x578] sm:$0x1f]
        %v2010 = vld [vmem:[#allocation8 + $0x580] sm:$0x1f]
        %v2011 = vld [vmem:[#allocation8 + $0x588] sm:$0x1f]
        %v2012 = vld [vmem:[#allocation8 + $0x590] sm:$0x1f]
        %v2013 = vld [vmem:[#allocation8 + $0x598] sm:$0x1f]
        %v2014 = vld [vmem:[#allocation8 + $0x5a0] sm:$0x1f]
        %v2015 = vld [vmem:[#allocation8 + $0x5a8] sm:$0x1f]
        %v2016 = vld [vmem:[#allocation8 + $0x5b0] sm:$0x1f]
        %v2017 = vld [vmem:[#allocation8 + $0x5b8] sm:$0x1f]
        %v2018 = vld [vmem:[#allocation8 + $0x5c0] sm:$0x1f]
        %v2019 = vld [vmem:[#allocation8 + $0x5c8] sm:$0x1f]
        %v2020 = vld [vmem:[#allocation8 + $0x5d0] sm:$0x1f]
        %v2021 = vld [vmem:[#allocation8 + $0x5d8] sm:$0x1f]
        %v2022 = vld [vmem:[#allocation8 + $0x5e0] sm:$0x1f]
        %v2023 = vld [vmem:[#allocation8 + $0x5e8] sm:$0x1f]
        %v2024 = vld [vmem:[#allocation8 + $0x5f0] sm:$0x1f]
        %v2025 = vld [vmem:[#allocation8 + $0x5f8] sm:$0x1f]
        %v2026 = vld [vmem:[#allocation8 + $0x600] sm:$0x1f]
        %v2027 = vld [vmem:[#allocation8 + $0x608] sm:$0x1f]
        %v2028 = vld [vmem:[#allocation8 + $0x610] sm:$0x1f]
        %v2029 = vld [vmem:[#allocation8 + $0x618] sm:$0x1f]
        %v2030 = vld [vmem:[#allocation8 + $0x620] sm:$0x1f]
        %v2031 = vld [vmem:[#allocation8 + $0x628] sm:$0x1f]
        %v2032 = vld [vmem:[#allocation8 + $0x630] sm:$0x1f]
        %v2033 = vld [vmem:[#allocation8 + $0x638] sm:$0x1f]
        %v2034 = vld [vmem:[#allocation8 + $0x640] sm:$0x1f]
        %v2035 = vld [vmem:[#allocation8 + $0x648] sm:$0x1f]
        %v2036 = vld [vmem:[#allocation8 + $0x650] sm:$0x1f]
        %v2037 = vld [vmem:[#allocation8 + $0x658] sm:$0x1f]
        %v2038 = vld [vmem:[#allocation8 + $0x660] sm:$0x1f]
        %v2039 = vld [vmem:[#allocation8 + $0x668] sm:$0x1f]
        %v2040 = vld [vmem:[#allocation8 + $0x670] sm:$0x1f]
        %v2041 = vld [vmem:[#allocation8 + $0x678] sm:$0x1f]
        %v2042 = vld [vmem:[#allocation8 + $0x680] sm:$0x1f]
        %v2043 = vld [vmem:[#allocation8 + $0x688] sm:$0x1f]
        %v2044 = vld [vmem:[#allocation8 + $0x690] sm:$0x1f]
        %v2045 = vld [vmem:[#allocation8 + $0x698] sm:$0x1f]
        %v2046 = vld [vmem:[#allocation8 + $0x6a0] sm:$0x1f]
        %v2047 = vld [vmem:[#allocation8 + $0x6a8] sm:$0x1f]
        %v2048 = vld [vmem:[#allocation8 + $0x6b0] sm:$0x1f]
        %v2049 = vld [vmem:[#allocation8 + $0x6b8] sm:$0x1f]
        %v2050 = vld [vmem:[#allocation8 + $0x6c0] sm:$0x1f]
        %v2051 = vld [vmem:[#allocation8 + $0x6c8] sm:$0x1f]
        %v2052 = vld [vmem:[#allocation8 + $0x6d0] sm:$0x1f]
        %v2053 = vld [vmem:[#allocation8 + $0x6d8] sm:$0x1f]
        %v2054 = vld [vmem:[#allocation8 + $0x6e0] sm:$0x1f]
        %v2055 = vld [vmem:[#allocation8 + $0x6e8] sm:$0x1f]
        %v2056 = vld [vmem:[#allocation8 + $0x6f0] sm:$0x1f]
        %v2057 = vld [vmem:[#allocation8 + $0x6f8] sm:$0x1f]
        %v2058 = vld [vmem:[#allocation8 + $0x700] sm:$0x1f]
        %v2059 = vld [vmem:[#allocation8 + $0x708] sm:$0x1f]
        %v2060 = vld [vmem:[#allocation8 + $0x710] sm:$0x1f]
        %v2061 = vld [vmem:[#allocation8 + $0x718] sm:$0x1f]
        %v2062 = vld [vmem:[#allocation8 + $0x720] sm:$0x1f]
        %v2063 = vld [vmem:[#allocation8 + $0x728] sm:$0x1f]
        %v2064 = vld [vmem:[#allocation8 + $0x730] sm:$0x1f]
        %v2065 = vld [vmem:[#allocation8 + $0x738] sm:$0x1f]
        %v2066 = vld [vmem:[#allocation8 + $0x740] sm:$0x1f]
        %v2067 = vld [vmem:[#allocation8 + $0x748] sm:$0x1f]
        %v2068 = vld [vmem:[#allocation8 + $0x750] sm:$0x1f]
        %v2069 = vld [vmem:[#allocation8 + $0x758] sm:$0x1f]
        %v2070 = vld [vmem:[#allocation8 + $0x760] sm:$0x1f]
        %v2071 = vld [vmem:[#allocation8 + $0x768] sm:$0x1f]
        %v2072 = vld [vmem:[#allocation8 + $0x770] sm:$0x1f]
        %v2073 = vld [vmem:[#allocation8 + $0x778] sm:$0x1f]
        %v2074 = vld [vmem:[#allocation8 + $0x780] sm:$0x1f]
        %v2075 = vld [vmem:[#allocation8 + $0x788] sm:$0x1f]
        %v2076 = vld [vmem:[#allocation8 + $0x790] sm:$0x1f]
        %v2077 = vld [vmem:[#allocation8 + $0x798] sm:$0x1f]
        %v2078 = vld [vmem:[#allocation8 + $0x7a0] sm:$0x1f]
        %v2079 = vld [vmem:[#allocation8 + $0x7a8] sm:$0x1f]
        %v2080 = vld [vmem:[#allocation8 + $0x7b0] sm:$0x1f]
        %v2081 = vld [vmem:[#allocation8 + $0x7b8] sm:$0x1f]
        %v2082 = vld [vmem:[#allocation8 + $0x7c0] sm:$0x1f]
        %v2083 = vld [vmem:[#allocation8 + $0x7c8] sm:$0x1f]
        %v2084 = vld [vmem:[#allocation8 + $0x7d0] sm:$0x1f]
        %v2085 = vld [vmem:[#allocation8 + $0x7d8] sm:$0x1f]
        %v2086 = vld [vmem:[#allocation8 + $0x7e0] sm:$0x1f]
        %v2087 = vld [vmem:[#allocation8 + $0x7e8] sm:$0x1f]
        %v2088 = vld [vmem:[#allocation8 + $0x7f0] sm:$0x1f]
        %v2089 = vld [vmem:[#allocation8 + $0x7f8] sm:$0x1f]
        %v2090 = vld [vmem:[#allocation8 + $0x800] sm:$0x1f]
        %v2091 = vld [vmem:[#allocation8 + $0x808] sm:$0x1f]
        %v2092 = vld [vmem:[#allocation8 + $0x810] sm:$0x1f]
        %v2093 = vld [vmem:[#allocation8 + $0x818] sm:$0x1f]
        %v2094 = vld [vmem:[#allocation8 + $0x820] sm:$0x1f]
        %v2095 = vld [vmem:[#allocation8 + $0x828] sm:$0x1f]
        %v2096 = vld [vmem:[#allocation8 + $0x830] sm:$0x1f]
        %v2097 = vld [vmem:[#allocation8 + $0x838] sm:$0x1f]
        %v2098 = vld [vmem:[#allocation8 + $0x840] sm:$0x1f]
        %v2099 = vld [vmem:[#allocation8 + $0x848] sm:$0x1f]
        %v2100 = vld [vmem:[#allocation8 + $0x850] sm:$0x1f]
        %v2101 = vld [vmem:[#allocation8 + $0x858] sm:$0x1f]
        %v2102 = vld [vmem:[#allocation8 + $0x860] sm:$0x1f]
        %v2103 = vld [vmem:[#allocation8 + $0x868] sm:$0x1f]
        %v2104 = vld [vmem:[#allocation8 + $0x870] sm:$0x1f]
        %v2105 = vld [vmem:[#allocation8 + $0x878] sm:$0x1f]
        %v2106 = vld [vmem:[#allocation8 + $0x880] sm:$0x1f]
        %v2107 = vld [vmem:[#allocation8 + $0x888] sm:$0x1f]
        %v2108 = vld [vmem:[#allocation8 + $0x890] sm:$0x1f]
        %v2109 = vld [vmem:[#allocation8 + $0x898] sm:$0x1f]
        %v2110 = vld [vmem:[#allocation8 + $0x8a0] sm:$0x1f]
        %v2111 = vld [vmem:[#allocation8 + $0x8a8] sm:$0x1f]
        %v2112 = vld [vmem:[#allocation8 + $0x8b0] sm:$0x1f]
        %v2113 = vld [vmem:[#allocation8 + $0x8b8] sm:$0x1f]
        %v2114 = vld [vmem:[#allocation8 + $0x8c0] sm:$0x1f]
        %v2115 = vld [vmem:[#allocation8 + $0x8c8] sm:$0x1f]
        %v2116 = vld [vmem:[#allocation8 + $0x8d0] sm:$0x1f]
        %v2117 = vld [vmem:[#allocation8 + $0x8d8] sm:$0x1f]
        %v2118 = vld [vmem:[#allocation8 + $0x8e0] sm:$0x1f]
        %v2119 = vld [vmem:[#allocation8 + $0x8e8] sm:$0x1f]
        %v2120 = vld [vmem:[#allocation8 + $0x8f0] sm:$0x1f]
        %v2121 = vld [vmem:[#allocation8 + $0x8f8] sm:$0x1f]
        %v2122 = vld [vmem:[#allocation8 + $0x900] sm:$0x1f]
        %v2123 = vld [vmem:[#allocation8 + $0x908] sm:$0x1f]
        %v2124 = vld [vmem:[#allocation8 + $0x910] sm:$0x1f]
        %v2125 = vld [vmem:[#allocation8 + $0x918] sm:$0x1f]
        %v2126 = vld [vmem:[#allocation8 + $0x920] sm:$0x1f]
        %v2127 = vld [vmem:[#allocation8 + $0x928] sm:$0x1f]
        %v2128 = vld [vmem:[#allocation8 + $0x930] sm:$0x1f]
        %v2129 = vld [vmem:[#allocation8 + $0x938] sm:$0x1f]
        %v2130 = vld [vmem:[#allocation8 + $0x940] sm:$0x1f]
        %v2131 = vld [vmem:[#allocation8 + $0x948] sm:$0x1f]
        %v2132 = vld [vmem:[#allocation8 + $0x950] sm:$0x1f]
        %v2133 = vld [vmem:[#allocation8 + $0x958] sm:$0x1f]
        %v2134 = vld [vmem:[#allocation8 + $0x960] sm:$0x1f]
        %v2135 = vld [vmem:[#allocation8 + $0x968] sm:$0x1f]
        %v2136 = vld [vmem:[#allocation8 + $0x970] sm:$0x1f]
        %v2137 = vld [vmem:[#allocation8 + $0x978] sm:$0x1f]
        %v2138 = vld [vmem:[#allocation8 + $0x980] sm:$0x1f]
        %v2139 = vld [vmem:[#allocation8 + $0x988] sm:$0x1f]
        %v2140 = vld [vmem:[#allocation8 + $0x990] sm:$0x1f]
        %v2141 = vld [vmem:[#allocation8 + $0x998] sm:$0x1f]
        %v2142 = vld [vmem:[#allocation8 + $0x9a0] sm:$0x1f]
        %v2143 = vld [vmem:[#allocation8 + $0x9a8] sm:$0x1f]
        %v2144 = vld [vmem:[#allocation8 + $0x9b0] sm:$0x1f]
        %v2145 = vld [vmem:[#allocation8 + $0x9b8] sm:$0x1f]
        %v2146 = vld [vmem:[#allocation8 + $0x9c0] sm:$0x1f]
        %v2147 = vld [vmem:[#allocation8 + $0x9c8] sm:$0x1f]
        %v2148 = vld [vmem:[#allocation8 + $0x9d0] sm:$0x1f]
        %v2149 = vld [vmem:[#allocation8 + $0x9d8] sm:$0x1f]
        %v2150 = vld [vmem:[#allocation8 + $0x9e0] sm:$0x1f]
        %v2151 = vld [vmem:[#allocation8 + $0x9e8] sm:$0x1f]
        %v2152 = vld [vmem:[#allocation8 + $0x9f0] sm:$0x1f]
        %v2153 = vld [vmem:[#allocation8 + $0x9f8] sm:$0x1f]
        %v2154 = vmul.f32 %v1834, %v688
        %v2155 = vmul.f32 %v1835, %v690
        %v2156 = vmul.f32 %v1836, %v759
        %v2157 = vmul.f32 %v1837, %v761
        %v2158 = vmul.f32 %v1838, %v830
        %v2159 = vmul.f32 %v1839, %v832
        %v2160 = vmul.f32 %v1840, %v901
        %v2161 = vmul.f32 %v1841, %v903
        %v2162 = vmul.f32 %v1842, %v972
        %v2163 = vmul.f32 %v1843, %v974
        %v2164 = vmul.f32 %v1844, %v1043
        %v2165 = vmul.f32 %v1845, %v1045
        %v2166 = vmul.f32 %v1846, %v1114
        %v2167 = vmul.f32 %v1847, %v1116
        %v2168 = vmul.f32 %v1848, %v1185
        %v2169 = vmul.f32 %v1849, %v1187
        %v2170 = vmul.f32 %v1850, %v1256
        %v2171 = vmul.f32 %v1851, %v1258
        %v2172 = vmul.f32 %v1852, %v1327
        %v2173 = vmul.f32 %v1853, %v1329
        %v2174 = vmul.f32 %v1854, %v1398
        %v2175 = vmul.f32 %v1855, %v1400
        %v2176 = vmul.f32 %v1856, %v1469
        %v2177 = vmul.f32 %v1857, %v1471
        %v2178 = vmul.f32 %v1858, %v1540
        %v2179 = vmul.f32 %v1859, %v1542
        %v2180 = vmul.f32 %v1860, %v1611
        %v2181 = vmul.f32 %v1861, %v1613
        %v2182 = vmul.f32 %v1862, %v1682
        %v2183 = vmul.f32 %v1863, %v1684
        %v2184 = vmul.f32 %v1864, %v1753
        %v2185 = vmul.f32 %v1865, %v1755
        %v2186 = vmul.f32 %v1866, %v688
        %v2187 = vmul.f32 %v1867, %v690
        %v2188 = vmul.f32 %v1868, %v759
        %v2189 = vmul.f32 %v1869, %v761
        %v2190 = vmul.f32 %v1870, %v830
        %v2191 = vmul.f32 %v1871, %v832
        %v2192 = vmul.f32 %v1872, %v901
        %v2193 = vmul.f32 %v1873, %v903
        %v2194 = vmul.f32 %v1874, %v972
        %v2195 = vmul.f32 %v1875, %v974
        %v2196 = vmul.f32 %v1876, %v1043
        %v2197 = vmul.f32 %v1877, %v1045
        %v2198 = vmul.f32 %v1878, %v1114
        %v2199 = vmul.f32 %v1879, %v1116
        %v2200 = vmul.f32 %v1880, %v1185
        %v2201 = vmul.f32 %v1881, %v1187
        %v2202 = vmul.f32 %v1882, %v1256
        %v2203 = vmul.f32 %v1883, %v1258
        %v2204 = vmul.f32 %v1884, %v1327
        %v2205 = vmul.f32 %v1885, %v1329
        %v2206 = vmul.f32 %v1886, %v1398
        %v2207 = vmul.f32 %v1887, %v1400
        %v2208 = vmul.f32 %v1888, %v1469
        %v2209 = vmul.f32 %v1889, %v1471
        %v2210 = vmul.f32 %v1890, %v1540
        %v2211 = vmul.f32 %v1891, %v1542
        %v2212 = vmul.f32 %v1892, %v1611
        %v2213 = vmul.f32 %v1893, %v1613
        %v2214 = vmul.f32 %v1894, %v1682
        %v2215 = vmul.f32 %v1895, %v1684
        %v2216 = vmul.f32 %v1896, %v1753
        %v2217 = vmul.f32 %v1897, %v1755
        %v2218 = vmul.f32 %v1898, %v688
        %v2219 = vmul.f32 %v1899, %v690
        %v2220 = vmul.f32 %v1900, %v759
        %v2221 = vmul.f32 %v1901, %v761
        %v2222 = vmul.f32 %v1902, %v830
        %v2223 = vmul.f32 %v1903, %v832
        %v2224 = vmul.f32 %v1904, %v901
        %v2225 = vmul.f32 %v1905, %v903
        %v2226 = vmul.f32 %v1906, %v972
        %v2227 = vmul.f32 %v1907, %v974
        %v2228 = vmul.f32 %v1908, %v1043
        %v2229 = vmul.f32 %v1909, %v1045
        %v2230 = vmul.f32 %v1910, %v1114
        %v2231 = vmul.f32 %v1911, %v1116
        %v2232 = vmul.f32 %v1912, %v1185
        %v2233 = vmul.f32 %v1913, %v1187
        %v2234 = vmul.f32 %v1914, %v1256
        %v2235 = vmul.f32 %v1915, %v1258
        %v2236 = vmul.f32 %v1916, %v1327
        %v2237 = vmul.f32 %v1917, %v1329
        %v2238 = vmul.f32 %v1918, %v1398
        %v2239 = vmul.f32 %v1919, %v1400
        %v2240 = vmul.f32 %v1920, %v1469
        %v2241 = vmul.f32 %v1921, %v1471
        %v2242 = vmul.f32 %v1922, %v1540
        %v2243 = vmul.f32 %v1923, %v1542
        %v2244 = vmul.f32 %v1924, %v1611
        %v2245 = vmul.f32 %v1925, %v1613
        %v2246 = vmul.f32 %v1926, %v1682
        %v2247 = vmul.f32 %v1927, %v1684
        %v2248 = vmul.f32 %v1928, %v1753
        %v2249 = vmul.f32 %v1929, %v1755
        %v2250 = vmul.f32 %v1930, %v688
        %v2251 = vmul.f32 %v1931, %v690
        %v2252 = vmul.f32 %v1932, %v759
        %v2253 = vmul.f32 %v1933, %v761
        %v2254 = vmul.f32 %v1934, %v830
        %v2255 = vmul.f32 %v1935, %v832
        %v2256 = vmul.f32 %v1936, %v901
        %v2257 = vmul.f32 %v1937, %v903
        %v2258 = vmul.f32 %v1938, %v972
        %v2259 = vmul.f32 %v1939, %v974
        %v2260 = vmul.f32 %v1940, %v1043
        %v2261 = vmul.f32 %v1941, %v1045
        %v2262 = vmul.f32 %v1942, %v1114
        %v2263 = vmul.f32 %v1943, %v1116
        %v2264 = vmul.f32 %v1944, %v1185
        %v2265 = vmul.f32 %v1945, %v1187
        %v2266 = vmul.f32 %v1946, %v1256
        %v2267 = vmul.f32 %v1947, %v1258
        %v2268 = vmul.f32 %v1948, %v1327
        %v2269 = vmul.f32 %v1949, %v1329
        %v2270 = vmul.f32 %v1950, %v1398
        %v2271 = vmul.f32 %v1951, %v1400
        %v2272 = vmul.f32 %v1952, %v1469
        %v2273 = vmul.f32 %v1953, %v1471
        %v2274 = vmul.f32 %v1954, %v1540
        %v2275 = vmul.f32 %v1955, %v1542
        %v2276 = vmul.f32 %v1956, %v1611
        %v2277 = vmul.f32 %v1957, %v1613
        %v2278 = vmul.f32 %v1958, %v1682
        %v2279 = vmul.f32 %v1959, %v1684
        %v2280 = vmul.f32 %v1960, %v1753
        %v2281 = vmul.f32 %v1961, %v1755
        %v2282 = vmul.f32 %v1962, %v688
        %v2283 = vmul.f32 %v1963, %v690
        %v2284 = vmul.f32 %v1964, %v759
        %v2285 = vmul.f32 %v1965, %v761
        %v2286 = vmul.f32 %v1966, %v830
        %v2287 = vmul.f32 %v1967, %v832
        %v2288 = vmul.f32 %v1968, %v901
        %v2289 = vmul.f32 %v1969, %v903
        %v2290 = vmul.f32 %v1970, %v972
        %v2291 = vmul.f32 %v1971, %v974
        %v2292 = vmul.f32 %v1972, %v1043
        %v2293 = vmul.f32 %v1973, %v1045
        %v2294 = vmul.f32 %v1974, %v1114
        %v2295 = vmul.f32 %v1975, %v1116
        %v2296 = vmul.f32 %v1976, %v1185
        %v2297 = vmul.f32 %v1977, %v1187
        %v2298 = vmul.f32 %v1978, %v1256
        %v2299 = vmul.f32 %v1979, %v1258
        %v2300 = vmul.f32 %v1980, %v1327
        %v2301 = vmul.f32 %v1981, %v1329
        %v2302 = vmul.f32 %v1982, %v1398
        %v2303 = vmul.f32 %v1983, %v1400
        %v2304 = vmul.f32 %v1984, %v1469
        %v2305 = vmul.f32 %v1985, %v1471
        %v2306 = vmul.f32 %v1986, %v1540
        %v2307 = vmul.f32 %v1987, %v1542
        %v2308 = vmul.f32 %v1988, %v1611
        %v2309 = vmul.f32 %v1989, %v1613
        %v2310 = vmul.f32 %v1990, %v1682
        %v2311 = vmul.f32 %v1991, %v1684
        %v2312 = vmul.f32 %v1992, %v1753
        %v2313 = vmul.f32 %v1993, %v1755
        %v2314 = vmul.f32 %v1994, %v688
        %v2315 = vmul.f32 %v1995, %v690
        %v2316 = vmul.f32 %v1996, %v759
        %v2317 = vmul.f32 %v1997, %v761
        %v2318 = vmul.f32 %v1998, %v830
        %v2319 = vmul.f32 %v1999, %v832
        %v2320 = vmul.f32 %v2000, %v901
        %v2321 = vmul.f32 %v2001, %v903
        %v2322 = vmul.f32 %v2002, %v972
        %v2323 = vmul.f32 %v2003, %v974
        %v2324 = vmul.f32 %v2004, %v1043
        %v2325 = vmul.f32 %v2005, %v1045
        %v2326 = vmul.f32 %v2006, %v1114
        %v2327 = vmul.f32 %v2007, %v1116
        %v2328 = vmul.f32 %v2008, %v1185
        %v2329 = vmul.f32 %v2009, %v1187
        %v2330 = vmul.f32 %v2010, %v1256
        %v2331 = vmul.f32 %v2011, %v1258
        %v2332 = vmul.f32 %v2012, %v1327
        %v2333 = vmul.f32 %v2013, %v1329
        %v2334 = vmul.f32 %v2014, %v1398
        %v2335 = vmul.f32 %v2015, %v1400
        %v2336 = vmul.f32 %v2016, %v1469
        %v2337 = vmul.f32 %v2017, %v1471
        %v2338 = vmul.f32 %v2018, %v1540
        %v2339 = vmul.f32 %v2019, %v1542
        %v2340 = vmul.f32 %v2020, %v1611
        %v2341 = vmul.f32 %v2021, %v1613
        %v2342 = vmul.f32 %v2022, %v1682
        %v2343 = vmul.f32 %v2023, %v1684
        %v2344 = vmul.f32 %v2024, %v1753
        %v2345 = vmul.f32 %v2025, %v1755
        %v2346 = vmul.f32 %v2026, %v688
        %v2347 = vmul.f32 %v2027, %v690
        %v2348 = vmul.f32 %v2028, %v759
        %v2349 = vmul.f32 %v2029, %v761
        %v2350 = vmul.f32 %v2030, %v830
        %v2351 = vmul.f32 %v2031, %v832
        %v2352 = vmul.f32 %v2032, %v901
        %v2353 = vmul.f32 %v2033, %v903
        %v2354 = vmul.f32 %v2034, %v972
        %v2355 = vmul.f32 %v2035, %v974
        %v2356 = vmul.f32 %v2036, %v1043
        %v2357 = vmul.f32 %v2037, %v1045
        %v2358 = vmul.f32 %v2038, %v1114
        %v2359 = vmul.f32 %v2039, %v1116
        %v2360 = vmul.f32 %v2040, %v1185
        %v2361 = vmul.f32 %v2041, %v1187
        %v2362 = vmul.f32 %v2042, %v1256
        %v2363 = vmul.f32 %v2043, %v1258
        %v2364 = vmul.f32 %v2044, %v1327
        %v2365 = vmul.f32 %v2045, %v1329
        %v2366 = vmul.f32 %v2046, %v1398
        %v2367 = vmul.f32 %v2047, %v1400
        %v2368 = vmul.f32 %v2048, %v1469
        %v2369 = vmul.f32 %v2049, %v1471
        %v2370 = vmul.f32 %v2050, %v1540
        %v2371 = vmul.f32 %v2051, %v1542
        %v2372 = vmul.f32 %v2052, %v1611
        %v2373 = vmul.f32 %v2053, %v1613
        %v2374 = vmul.f32 %v2054, %v1682
        %v2375 = vmul.f32 %v2055, %v1684
        %v2376 = vmul.f32 %v2056, %v1753
        %v2377 = vmul.f32 %v2057, %v1755
        %v2378 = vmul.f32 %v2058, %v688
        %v2379 = vmul.f32 %v2059, %v690
        %v2380 = vmul.f32 %v2060, %v759
        %v2381 = vmul.f32 %v2061, %v761
        %v2382 = vmul.f32 %v2062, %v830
        %v2383 = vmul.f32 %v2063, %v832
        %v2384 = vmul.f32 %v2064, %v901
        %v2385 = vmul.f32 %v2065, %v903
        %v2386 = vmul.f32 %v2066, %v972
        %v2387 = vmul.f32 %v2067, %v974
        %v2388 = vmul.f32 %v2068, %v1043
        %v2389 = vmul.f32 %v2069, %v1045
        %v2390 = vmul.f32 %v2070, %v1114
        %v2391 = vmul.f32 %v2071, %v1116
        %v2392 = vmul.f32 %v2072, %v1185
        %v2393 = vmul.f32 %v2073, %v1187
        %v2394 = vmul.f32 %v2074, %v1256
        %v2395 = vmul.f32 %v2075, %v1258
        %v2396 = vmul.f32 %v2076, %v1327
        %v2397 = vmul.f32 %v2077, %v1329
        %v2398 = vmul.f32 %v2078, %v1398
        %v2399 = vmul.f32 %v2079, %v1400
        %v2400 = vmul.f32 %v2080, %v1469
        %v2401 = vmul.f32 %v2081, %v1471
        %v2402 = vmul.f32 %v2082, %v1540
        %v2403 = vmul.f32 %v2083, %v1542
        %v2404 = vmul.f32 %v2084, %v1611
        %v2405 = vmul.f32 %v2085, %v1613
        %v2406 = vmul.f32 %v2086, %v1682
        %v2407 = vmul.f32 %v2087, %v1684
        %v2408 = vmul.f32 %v2088, %v1753
        %v2409 = vmul.f32 %v2089, %v1755
        %v2410 = vmul.f32 %v2090, %v688
        %v2411 = vmul.f32 %v2091, %v690
        %v2412 = vmul.f32 %v2092, %v759
        %v2413 = vmul.f32 %v2093, %v761
        %v2414 = vmul.f32 %v2094, %v830
        %v2415 = vmul.f32 %v2095, %v832
        %v2416 = vmul.f32 %v2096, %v901
        %v2417 = vmul.f32 %v2097, %v903
        %v2418 = vmul.f32 %v2098, %v972
        %v2419 = vmul.f32 %v2099, %v974
        %v2420 = vmul.f32 %v2100, %v1043
        %v2421 = vmul.f32 %v2101, %v1045
        %v2422 = vmul.f32 %v2102, %v1114
        %v2423 = vmul.f32 %v2103, %v1116
        %v2424 = vmul.f32 %v2104, %v1185
        %v2425 = vmul.f32 %v2105, %v1187
        %v2426 = vmul.f32 %v2106, %v1256
        %v2427 = vmul.f32 %v2107, %v1258
        %v2428 = vmul.f32 %v2108, %v1327
        %v2429 = vmul.f32 %v2109, %v1329
        %v2430 = vmul.f32 %v2110, %v1398
        %v2431 = vmul.f32 %v2111, %v1400
        %v2432 = vmul.f32 %v2112, %v1469
        %v2433 = vmul.f32 %v2113, %v1471
        %v2434 = vmul.f32 %v2114, %v1540
        %v2435 = vmul.f32 %v2115, %v1542
        %v2436 = vmul.f32 %v2116, %v1611
        %v2437 = vmul.f32 %v2117, %v1613
        %v2438 = vmul.f32 %v2118, %v1682
        %v2439 = vmul.f32 %v2119, %v1684
        %v2440 = vmul.f32 %v2120, %v1753
        %v2441 = vmul.f32 %v2121, %v1755
        %v2442 = vmul.f32 %v2122, %v688
        %v2443 = vmul.f32 %v2123, %v690
        %v2444 = vmul.f32 %v2124, %v759
        %v2445 = vmul.f32 %v2125, %v761
        %v2446 = vmul.f32 %v2126, %v830
        %v2447 = vmul.f32 %v2127, %v832
        %v2448 = vmul.f32 %v2128, %v901
        %v2449 = vmul.f32 %v2129, %v903
        %v2450 = vmul.f32 %v2130, %v972
        %v2451 = vmul.f32 %v2131, %v974
        %v2452 = vmul.f32 %v2132, %v1043
        %v2453 = vmul.f32 %v2133, %v1045
        %v2454 = vmul.f32 %v2134, %v1114
        %v2455 = vmul.f32 %v2135, %v1116
        %v2456 = vmul.f32 %v2136, %v1185
        %v2457 = vmul.f32 %v2137, %v1187
        %v2458 = vmul.f32 %v2138, %v1256
        %v2459 = vmul.f32 %v2139, %v1258
        %v2460 = vmul.f32 %v2140, %v1327
        %v2461 = vmul.f32 %v2141, %v1329
        %v2462 = vmul.f32 %v2142, %v1398
        %v2463 = vmul.f32 %v2143, %v1400
        %v2464 = vmul.f32 %v2144, %v1469
        %v2465 = vmul.f32 %v2145, %v1471
        %v2466 = vmul.f32 %v2146, %v1540
        %v2467 = vmul.f32 %v2147, %v1542
        %v2468 = vmul.f32 %v2148, %v1611
        %v2469 = vmul.f32 %v2149, %v1613
        %v2470 = vmul.f32 %v2150, %v1682
        %v2471 = vmul.f32 %v2151, %v1684
        %v2472 = vmul.f32 %v2152, %v1753
        %v2473 = vmul.f32 %v2153, %v1755
        %vm2474 = vcmask 1044480
        %v2475 = vsel %vm2474, %v2154, 0.0
        %v2476 = vsel %vm2474, %v2155, 0.0
        %v2477 = vadd.f32 %v2475, %v2476
        %v2478 = vsel %vm2474, %v2156, 0.0
        %v2479 = vadd.f32 %v2477, %v2478
        %v2480 = vsel %vm2474, %v2157, 0.0
        %v2481 = vadd.f32 %v2479, %v2480
        %v2482 = vsel %vm2474, %v2158, 0.0
        %v2483 = vadd.f32 %v2481, %v2482
        %v2484 = vsel %vm2474, %v2159, 0.0
        %v2485 = vadd.f32 %v2483, %v2484
        %v2486 = vsel %vm2474, %v2160, 0.0
        %v2487 = vadd.f32 %v2485, %v2486
        %v2488 = vsel %vm2474, %v2161, 0.0
        %v2489 = vadd.f32 %v2487, %v2488
        %v2490 = vsel %vm2474, %v2162, 0.0
        %v2491 = vadd.f32 %v2489, %v2490
        %v2492 = vsel %vm2474, %v2163, 0.0
        %v2493 = vadd.f32 %v2491, %v2492
        %v2494 = vsel %vm2474, %v2164, 0.0
        %v2495 = vadd.f32 %v2493, %v2494
        %v2496 = vsel %vm2474, %v2165, 0.0
        %v2497 = vadd.f32 %v2495, %v2496
        %v2498 = vsel %vm2474, %v2166, 0.0
        %v2499 = vadd.f32 %v2497, %v2498
        %v2500 = vsel %vm2474, %v2167, 0.0
        %v2501 = vadd.f32 %v2499, %v2500
        %v2502 = vsel %vm2474, %v2168, 0.0
        %v2503 = vadd.f32 %v2501, %v2502
        %v2504 = vsel %vm2474, %v2169, 0.0
        %v2505 = vadd.f32 %v2503, %v2504
        %v2506 = vsel %vm2474, %v2170, 0.0
        %v2507 = vadd.f32 %v2505, %v2506
        %v2508 = vsel %vm2474, %v2171, 0.0
        %v2509 = vadd.f32 %v2507, %v2508
        %v2510 = vsel %vm2474, %v2172, 0.0
        %v2511 = vadd.f32 %v2509, %v2510
        %v2512 = vsel %vm2474, %v2173, 0.0
        %v2513 = vadd.f32 %v2511, %v2512
        %v2514 = vsel %vm2474, %v2174, 0.0
        %v2515 = vadd.f32 %v2513, %v2514
        %v2516 = vsel %vm2474, %v2175, 0.0
        %v2517 = vadd.f32 %v2515, %v2516
        %v2518 = vsel %vm2474, %v2176, 0.0
        %v2519 = vadd.f32 %v2517, %v2518
        %v2520 = vsel %vm2474, %v2177, 0.0
        %v2521 = vadd.f32 %v2519, %v2520
        %v2522 = vsel %vm2474, %v2178, 0.0
        %v2523 = vadd.f32 %v2521, %v2522
        %v2524 = vsel %vm2474, %v2179, 0.0
        %v2525 = vadd.f32 %v2523, %v2524
        %v2526 = vsel %vm2474, %v2180, 0.0
        %v2527 = vadd.f32 %v2525, %v2526
        %v2528 = vsel %vm2474, %v2181, 0.0
        %v2529 = vadd.f32 %v2527, %v2528
        %v2530 = vsel %vm2474, %v2182, 0.0
        %v2531 = vadd.f32 %v2529, %v2530
        %v2532 = vsel %vm2474, %v2183, 0.0
        %v2533 = vadd.f32 %v2531, %v2532
        %v2534 = vsel %vm2474, %v2184, 0.0
        %v2535 = vadd.f32 %v2533, %v2534
        %v2536 = vsel %vm2474, %v2185, 0.0
        %v2537 = vadd.f32 %v2535, %v2536
        %2538 = vadd.xlane.f32.xlu0 %v2537
        %v2539 = vpop.xlane.xlu0 %2538
        %v2540 = vsel %vm2474, %v2186, 0.0
        %v2541 = vsel %vm2474, %v2187, 0.0
        %v2542 = vadd.f32 %v2540, %v2541
        %v2543 = vsel %vm2474, %v2188, 0.0
        %v2544 = vadd.f32 %v2542, %v2543
        %v2545 = vsel %vm2474, %v2189, 0.0
        %v2546 = vadd.f32 %v2544, %v2545
        %v2547 = vsel %vm2474, %v2190, 0.0
        %v2548 = vadd.f32 %v2546, %v2547
        %v2549 = vsel %vm2474, %v2191, 0.0
        %v2550 = vadd.f32 %v2548, %v2549
        %v2551 = vsel %vm2474, %v2192, 0.0
        %v2552 = vadd.f32 %v2550, %v2551
        %v2553 = vsel %vm2474, %v2193, 0.0
        %v2554 = vadd.f32 %v2552, %v2553
        %v2555 = vsel %vm2474, %v2194, 0.0
        %v2556 = vadd.f32 %v2554, %v2555
        %v2557 = vsel %vm2474, %v2195, 0.0
        %v2558 = vadd.f32 %v2556, %v2557
        %v2559 = vsel %vm2474, %v2196, 0.0
        %v2560 = vadd.f32 %v2558, %v2559
        %v2561 = vsel %vm2474, %v2197, 0.0
        %v2562 = vadd.f32 %v2560, %v2561
        %v2563 = vsel %vm2474, %v2198, 0.0
        %v2564 = vadd.f32 %v2562, %v2563
        %v2565 = vsel %vm2474, %v2199, 0.0
        %v2566 = vadd.f32 %v2564, %v2565
        %v2567 = vsel %vm2474, %v2200, 0.0
        %v2568 = vadd.f32 %v2566, %v2567
        %v2569 = vsel %vm2474, %v2201, 0.0
        %v2570 = vadd.f32 %v2568, %v2569
        %v2571 = vsel %vm2474, %v2202, 0.0
        %v2572 = vadd.f32 %v2570, %v2571
        %v2573 = vsel %vm2474, %v2203, 0.0
        %v2574 = vadd.f32 %v2572, %v2573
        %v2575 = vsel %vm2474, %v2204, 0.0
        %v2576 = vadd.f32 %v2574, %v2575
        %v2577 = vsel %vm2474, %v2205, 0.0
        %v2578 = vadd.f32 %v2576, %v2577
        %v2579 = vsel %vm2474, %v2206, 0.0
        %v2580 = vadd.f32 %v2578, %v2579
        %v2581 = vsel %vm2474, %v2207, 0.0
        %v2582 = vadd.f32 %v2580, %v2581
        %v2583 = vsel %vm2474, %v2208, 0.0
        %v2584 = vadd.f32 %v2582, %v2583
        %v2585 = vsel %vm2474, %v2209, 0.0
        %v2586 = vadd.f32 %v2584, %v2585
        %v2587 = vsel %vm2474, %v2210, 0.0
        %v2588 = vadd.f32 %v2586, %v2587
        %v2589 = vsel %vm2474, %v2211, 0.0
        %v2590 = vadd.f32 %v2588, %v2589
        %v2591 = vsel %vm2474, %v2212, 0.0
        %v2592 = vadd.f32 %v2590, %v2591
        %v2593 = vsel %vm2474, %v2213, 0.0
        %v2594 = vadd.f32 %v2592, %v2593
        %v2595 = vsel %vm2474, %v2214, 0.0
        %v2596 = vadd.f32 %v2594, %v2595
        %v2597 = vsel %vm2474, %v2215, 0.0
        %v2598 = vadd.f32 %v2596, %v2597
        %v2599 = vsel %vm2474, %v2216, 0.0
        %v2600 = vadd.f32 %v2598, %v2599
        %v2601 = vsel %vm2474, %v2217, 0.0
        %v2602 = vadd.f32 %v2600, %v2601
        %2603 = vadd.xlane.f32.xlu0 %v2602
        %v2604 = vpop.xlane.xlu0 %2603
        %v2605 = vsel %vm2474, %v2218, 0.0
        %v2606 = vsel %vm2474, %v2219, 0.0
        %v2607 = vadd.f32 %v2605, %v2606
        %v2608 = vsel %vm2474, %v2220, 0.0
        %v2609 = vadd.f32 %v2607, %v2608
        %v2610 = vsel %vm2474, %v2221, 0.0
        %v2611 = vadd.f32 %v2609, %v2610
        %v2612 = vsel %vm2474, %v2222, 0.0
        %v2613 = vadd.f32 %v2611, %v2612
        %v2614 = vsel %vm2474, %v2223, 0.0
        %v2615 = vadd.f32 %v2613, %v2614
        %v2616 = vsel %vm2474, %v2224, 0.0
        %v2617 = vadd.f32 %v2615, %v2616
        %v2618 = vsel %vm2474, %v2225, 0.0
        %v2619 = vadd.f32 %v2617, %v2618
        %v2620 = vsel %vm2474, %v2226, 0.0
        %v2621 = vadd.f32 %v2619, %v2620
        %v2622 = vsel %vm2474, %v2227, 0.0
        %v2623 = vadd.f32 %v2621, %v2622
        %v2624 = vsel %vm2474, %v2228, 0.0
        %v2625 = vadd.f32 %v2623, %v2624
        %v2626 = vsel %vm2474, %v2229, 0.0
        %v2627 = vadd.f32 %v2625, %v2626
        %v2628 = vsel %vm2474, %v2230, 0.0
        %v2629 = vadd.f32 %v2627, %v2628
        %v2630 = vsel %vm2474, %v2231, 0.0
        %v2631 = vadd.f32 %v2629, %v2630
        %v2632 = vsel %vm2474, %v2232, 0.0
        %v2633 = vadd.f32 %v2631, %v2632
        %v2634 = vsel %vm2474, %v2233, 0.0
        %v2635 = vadd.f32 %v2633, %v2634
        %v2636 = vsel %vm2474, %v2234, 0.0
        %v2637 = vadd.f32 %v2635, %v2636
        %v2638 = vsel %vm2474, %v2235, 0.0
        %v2639 = vadd.f32 %v2637, %v2638
        %v2640 = vsel %vm2474, %v2236, 0.0
        %v2641 = vadd.f32 %v2639, %v2640
        %v2642 = vsel %vm2474, %v2237, 0.0
        %v2643 = vadd.f32 %v2641, %v2642
        %v2644 = vsel %vm2474, %v2238, 0.0
        %v2645 = vadd.f32 %v2643, %v2644
        %v2646 = vsel %vm2474, %v2239, 0.0
        %v2647 = vadd.f32 %v2645, %v2646
        %v2648 = vsel %vm2474, %v2240, 0.0
        %v2649 = vadd.f32 %v2647, %v2648
        %v2650 = vsel %vm2474, %v2241, 0.0
        %v2651 = vadd.f32 %v2649, %v2650
        %v2652 = vsel %vm2474, %v2242, 0.0
        %v2653 = vadd.f32 %v2651, %v2652
        %v2654 = vsel %vm2474, %v2243, 0.0
        %v2655 = vadd.f32 %v2653, %v2654
        %v2656 = vsel %vm2474, %v2244, 0.0
        %v2657 = vadd.f32 %v2655, %v2656
        %v2658 = vsel %vm2474, %v2245, 0.0
        %v2659 = vadd.f32 %v2657, %v2658
        %v2660 = vsel %vm2474, %v2246, 0.0
        %v2661 = vadd.f32 %v2659, %v2660
        %v2662 = vsel %vm2474, %v2247, 0.0
        %v2663 = vadd.f32 %v2661, %v2662
        %v2664 = vsel %vm2474, %v2248, 0.0
        %v2665 = vadd.f32 %v2663, %v2664
        %v2666 = vsel %vm2474, %v2249, 0.0
        %v2667 = vadd.f32 %v2665, %v2666
        %2668 = vadd.xlane.f32.xlu0 %v2667
        %v2669 = vpop.xlane.xlu0 %2668
        %v2670 = vsel %vm2474, %v2250, 0.0
        %v2671 = vsel %vm2474, %v2251, 0.0
        %v2672 = vadd.f32 %v2670, %v2671
        %v2673 = vsel %vm2474, %v2252, 0.0
        %v2674 = vadd.f32 %v2672, %v2673
        %v2675 = vsel %vm2474, %v2253, 0.0
        %v2676 = vadd.f32 %v2674, %v2675
        %v2677 = vsel %vm2474, %v2254, 0.0
        %v2678 = vadd.f32 %v2676, %v2677
        %v2679 = vsel %vm2474, %v2255, 0.0
        %v2680 = vadd.f32 %v2678, %v2679
        %v2681 = vsel %vm2474, %v2256, 0.0
        %v2682 = vadd.f32 %v2680, %v2681
        %v2683 = vsel %vm2474, %v2257, 0.0
        %v2684 = vadd.f32 %v2682, %v2683
        %v2685 = vsel %vm2474, %v2258, 0.0
        %v2686 = vadd.f32 %v2684, %v2685
        %v2687 = vsel %vm2474, %v2259, 0.0
        %v2688 = vadd.f32 %v2686, %v2687
        %v2689 = vsel %vm2474, %v2260, 0.0
        %v2690 = vadd.f32 %v2688, %v2689
        %v2691 = vsel %vm2474, %v2261, 0.0
        %v2692 = vadd.f32 %v2690, %v2691
        %v2693 = vsel %vm2474, %v2262, 0.0
        %v2694 = vadd.f32 %v2692, %v2693
        %v2695 = vsel %vm2474, %v2263, 0.0
        %v2696 = vadd.f32 %v2694, %v2695
        %v2697 = vsel %vm2474, %v2264, 0.0
        %v2698 = vadd.f32 %v2696, %v2697
        %v2699 = vsel %vm2474, %v2265, 0.0
        %v2700 = vadd.f32 %v2698, %v2699
        %v2701 = vsel %vm2474, %v2266, 0.0
        %v2702 = vadd.f32 %v2700, %v2701
        %v2703 = vsel %vm2474, %v2267, 0.0
        %v2704 = vadd.f32 %v2702, %v2703
        %v2705 = vsel %vm2474, %v2268, 0.0
        %v2706 = vadd.f32 %v2704, %v2705
        %v2707 = vsel %vm2474, %v2269, 0.0
        %v2708 = vadd.f32 %v2706, %v2707
        %v2709 = vsel %vm2474, %v2270, 0.0
        %v2710 = vadd.f32 %v2708, %v2709
        %v2711 = vsel %vm2474, %v2271, 0.0
        %v2712 = vadd.f32 %v2710, %v2711
        %v2713 = vsel %vm2474, %v2272, 0.0
        %v2714 = vadd.f32 %v2712, %v2713
        %v2715 = vsel %vm2474, %v2273, 0.0
        %v2716 = vadd.f32 %v2714, %v2715
        %v2717 = vsel %vm2474, %v2274, 0.0
        %v2718 = vadd.f32 %v2716, %v2717
        %v2719 = vsel %vm2474, %v2275, 0.0
        %v2720 = vadd.f32 %v2718, %v2719
        %v2721 = vsel %vm2474, %v2276, 0.0
        %v2722 = vadd.f32 %v2720, %v2721
        %v2723 = vsel %vm2474, %v2277, 0.0
        %v2724 = vadd.f32 %v2722, %v2723
        %v2725 = vsel %vm2474, %v2278, 0.0
        %v2726 = vadd.f32 %v2724, %v2725
        %v2727 = vsel %vm2474, %v2279, 0.0
        %v2728 = vadd.f32 %v2726, %v2727
        %v2729 = vsel %vm2474, %v2280, 0.0
        %v2730 = vadd.f32 %v2728, %v2729
        %v2731 = vsel %vm2474, %v2281, 0.0
        %v2732 = vadd.f32 %v2730, %v2731
        %2733 = vadd.xlane.f32.xlu0 %v2732
        %v2734 = vpop.xlane.xlu0 %2733
        %v2735 = vsel %vm2474, %v2282, 0.0
        %v2736 = vsel %vm2474, %v2283, 0.0
        %v2737 = vadd.f32 %v2735, %v2736
        %v2738 = vsel %vm2474, %v2284, 0.0
        %v2739 = vadd.f32 %v2737, %v2738
        %v2740 = vsel %vm2474, %v2285, 0.0
        %v2741 = vadd.f32 %v2739, %v2740
        %v2742 = vsel %vm2474, %v2286, 0.0
        %v2743 = vadd.f32 %v2741, %v2742
        %v2744 = vsel %vm2474, %v2287, 0.0
        %v2745 = vadd.f32 %v2743, %v2744
        %v2746 = vsel %vm2474, %v2288, 0.0
        %v2747 = vadd.f32 %v2745, %v2746
        %v2748 = vsel %vm2474, %v2289, 0.0
        %v2749 = vadd.f32 %v2747, %v2748
        %v2750 = vsel %vm2474, %v2290, 0.0
        %v2751 = vadd.f32 %v2749, %v2750
        %v2752 = vsel %vm2474, %v2291, 0.0
        %v2753 = vadd.f32 %v2751, %v2752
        %v2754 = vsel %vm2474, %v2292, 0.0
        %v2755 = vadd.f32 %v2753, %v2754
        %v2756 = vsel %vm2474, %v2293, 0.0
        %v2757 = vadd.f32 %v2755, %v2756
        %v2758 = vsel %vm2474, %v2294, 0.0
        %v2759 = vadd.f32 %v2757, %v2758
        %v2760 = vsel %vm2474, %v2295, 0.0
        %v2761 = vadd.f32 %v2759, %v2760
        %v2762 = vsel %vm2474, %v2296, 0.0
        %v2763 = vadd.f32 %v2761, %v2762
        %v2764 = vsel %vm2474, %v2297, 0.0
        %v2765 = vadd.f32 %v2763, %v2764
        %v2766 = vsel %vm2474, %v2298, 0.0
        %v2767 = vadd.f32 %v2765, %v2766
        %v2768 = vsel %vm2474, %v2299, 0.0
        %v2769 = vadd.f32 %v2767, %v2768
        %v2770 = vsel %vm2474, %v2300, 0.0
        %v2771 = vadd.f32 %v2769, %v2770
        %v2772 = vsel %vm2474, %v2301, 0.0
        %v2773 = vadd.f32 %v2771, %v2772
        %v2774 = vsel %vm2474, %v2302, 0.0
        %v2775 = vadd.f32 %v2773, %v2774
        %v2776 = vsel %vm2474, %v2303, 0.0
        %v2777 = vadd.f32 %v2775, %v2776
        %v2778 = vsel %vm2474, %v2304, 0.0
        %v2779 = vadd.f32 %v2777, %v2778
        %v2780 = vsel %vm2474, %v2305, 0.0
        %v2781 = vadd.f32 %v2779, %v2780
        %v2782 = vsel %vm2474, %v2306, 0.0
        %v2783 = vadd.f32 %v2781, %v2782
        %v2784 = vsel %vm2474, %v2307, 0.0
        %v2785 = vadd.f32 %v2783, %v2784
        %v2786 = vsel %vm2474, %v2308, 0.0
        %v2787 = vadd.f32 %v2785, %v2786
        %v2788 = vsel %vm2474, %v2309, 0.0
        %v2789 = vadd.f32 %v2787, %v2788
        %v2790 = vsel %vm2474, %v2310, 0.0
        %v2791 = vadd.f32 %v2789, %v2790
        %v2792 = vsel %vm2474, %v2311, 0.0
        %v2793 = vadd.f32 %v2791, %v2792
        %v2794 = vsel %vm2474, %v2312, 0.0
        %v2795 = vadd.f32 %v2793, %v2794
        %v2796 = vsel %vm2474, %v2313, 0.0
        %v2797 = vadd.f32 %v2795, %v2796
        %2798 = vadd.xlane.f32.xlu0 %v2797
        %v2799 = vpop.xlane.xlu0 %2798
        %v2800 = vsel %vm2474, %v2314, 0.0
        %v2801 = vsel %vm2474, %v2315, 0.0
        %v2802 = vadd.f32 %v2800, %v2801
        %v2803 = vsel %vm2474, %v2316, 0.0
        %v2804 = vadd.f32 %v2802, %v2803
        %v2805 = vsel %vm2474, %v2317, 0.0
        %v2806 = vadd.f32 %v2804, %v2805
        %v2807 = vsel %vm2474, %v2318, 0.0
        %v2808 = vadd.f32 %v2806, %v2807
        %v2809 = vsel %vm2474, %v2319, 0.0
        %v2810 = vadd.f32 %v2808, %v2809
        %v2811 = vsel %vm2474, %v2320, 0.0
        %v2812 = vadd.f32 %v2810, %v2811
        %v2813 = vsel %vm2474, %v2321, 0.0
        %v2814 = vadd.f32 %v2812, %v2813
        %v2815 = vsel %vm2474, %v2322, 0.0
        %v2816 = vadd.f32 %v2814, %v2815
        %v2817 = vsel %vm2474, %v2323, 0.0
        %v2818 = vadd.f32 %v2816, %v2817
        %v2819 = vsel %vm2474, %v2324, 0.0
        %v2820 = vadd.f32 %v2818, %v2819
        %v2821 = vsel %vm2474, %v2325, 0.0
        %v2822 = vadd.f32 %v2820, %v2821
        %v2823 = vsel %vm2474, %v2326, 0.0
        %v2824 = vadd.f32 %v2822, %v2823
        %v2825 = vsel %vm2474, %v2327, 0.0
        %v2826 = vadd.f32 %v2824, %v2825
        %v2827 = vsel %vm2474, %v2328, 0.0
        %v2828 = vadd.f32 %v2826, %v2827
        %v2829 = vsel %vm2474, %v2329, 0.0
        %v2830 = vadd.f32 %v2828, %v2829
        %v2831 = vsel %vm2474, %v2330, 0.0
        %v2832 = vadd.f32 %v2830, %v2831
        %v2833 = vsel %vm2474, %v2331, 0.0
        %v2834 = vadd.f32 %v2832, %v2833
        %v2835 = vsel %vm2474, %v2332, 0.0
        %v2836 = vadd.f32 %v2834, %v2835
        %v2837 = vsel %vm2474, %v2333, 0.0
        %v2838 = vadd.f32 %v2836, %v2837
        %v2839 = vsel %vm2474, %v2334, 0.0
        %v2840 = vadd.f32 %v2838, %v2839
        %v2841 = vsel %vm2474, %v2335, 0.0
        %v2842 = vadd.f32 %v2840, %v2841
        %v2843 = vsel %vm2474, %v2336, 0.0
        %v2844 = vadd.f32 %v2842, %v2843
        %v2845 = vsel %vm2474, %v2337, 0.0
        %v2846 = vadd.f32 %v2844, %v2845
        %v2847 = vsel %vm2474, %v2338, 0.0
        %v2848 = vadd.f32 %v2846, %v2847
        %v2849 = vsel %vm2474, %v2339, 0.0
        %v2850 = vadd.f32 %v2848, %v2849
        %v2851 = vsel %vm2474, %v2340, 0.0
        %v2852 = vadd.f32 %v2850, %v2851
        %v2853 = vsel %vm2474, %v2341, 0.0
        %v2854 = vadd.f32 %v2852, %v2853
        %v2855 = vsel %vm2474, %v2342, 0.0
        %v2856 = vadd.f32 %v2854, %v2855
        %v2857 = vsel %vm2474, %v2343, 0.0
        %v2858 = vadd.f32 %v2856, %v2857
        %v2859 = vsel %vm2474, %v2344, 0.0
        %v2860 = vadd.f32 %v2858, %v2859
        %v2861 = vsel %vm2474, %v2345, 0.0
        %v2862 = vadd.f32 %v2860, %v2861
        %2863 = vadd.xlane.f32.xlu0 %v2862
        %v2864 = vpop.xlane.xlu0 %2863
        %v2865 = vsel %vm2474, %v2346, 0.0
        %v2866 = vsel %vm2474, %v2347, 0.0
        %v2867 = vadd.f32 %v2865, %v2866
        %v2868 = vsel %vm2474, %v2348, 0.0
        %v2869 = vadd.f32 %v2867, %v2868
        %v2870 = vsel %vm2474, %v2349, 0.0
        %v2871 = vadd.f32 %v2869, %v2870
        %v2872 = vsel %vm2474, %v2350, 0.0
        %v2873 = vadd.f32 %v2871, %v2872
        %v2874 = vsel %vm2474, %v2351, 0.0
        %v2875 = vadd.f32 %v2873, %v2874
        %v2876 = vsel %vm2474, %v2352, 0.0
        %v2877 = vadd.f32 %v2875, %v2876
        %v2878 = vsel %vm2474, %v2353, 0.0
        %v2879 = vadd.f32 %v2877, %v2878
        %v2880 = vsel %vm2474, %v2354, 0.0
        %v2881 = vadd.f32 %v2879, %v2880
        %v2882 = vsel %vm2474, %v2355, 0.0
        %v2883 = vadd.f32 %v2881, %v2882
        %v2884 = vsel %vm2474, %v2356, 0.0
        %v2885 = vadd.f32 %v2883, %v2884
        %v2886 = vsel %vm2474, %v2357, 0.0
        %v2887 = vadd.f32 %v2885, %v2886
        %v2888 = vsel %vm2474, %v2358, 0.0
        %v2889 = vadd.f32 %v2887, %v2888
        %v2890 = vsel %vm2474, %v2359, 0.0
        %v2891 = vadd.f32 %v2889, %v2890
        %v2892 = vsel %vm2474, %v2360, 0.0
        %v2893 = vadd.f32 %v2891, %v2892
        %v2894 = vsel %vm2474, %v2361, 0.0
        %v2895 = vadd.f32 %v2893, %v2894
        %v2896 = vsel %vm2474, %v2362, 0.0
        %v2897 = vadd.f32 %v2895, %v2896
        %v2898 = vsel %vm2474, %v2363, 0.0
        %v2899 = vadd.f32 %v2897, %v2898
        %v2900 = vsel %vm2474, %v2364, 0.0
        %v2901 = vadd.f32 %v2899, %v2900
        %v2902 = vsel %vm2474, %v2365, 0.0
        %v2903 = vadd.f32 %v2901, %v2902
        %v2904 = vsel %vm2474, %v2366, 0.0
        %v2905 = vadd.f32 %v2903, %v2904
        %v2906 = vsel %vm2474, %v2367, 0.0
        %v2907 = vadd.f32 %v2905, %v2906
        %v2908 = vsel %vm2474, %v2368, 0.0
        %v2909 = vadd.f32 %v2907, %v2908
        %v2910 = vsel %vm2474, %v2369, 0.0
        %v2911 = vadd.f32 %v2909, %v2910
        %v2912 = vsel %vm2474, %v2370, 0.0
        %v2913 = vadd.f32 %v2911, %v2912
        %v2914 = vsel %vm2474, %v2371, 0.0
        %v2915 = vadd.f32 %v2913, %v2914
        %v2916 = vsel %vm2474, %v2372, 0.0
        %v2917 = vadd.f32 %v2915, %v2916
        %v2918 = vsel %vm2474, %v2373, 0.0
        %v2919 = vadd.f32 %v2917, %v2918
        %v2920 = vsel %vm2474, %v2374, 0.0
        %v2921 = vadd.f32 %v2919, %v2920
        %v2922 = vsel %vm2474, %v2375, 0.0
        %v2923 = vadd.f32 %v2921, %v2922
        %v2924 = vsel %vm2474, %v2376, 0.0
        %v2925 = vadd.f32 %v2923, %v2924
        %v2926 = vsel %vm2474, %v2377, 0.0
        %v2927 = vadd.f32 %v2925, %v2926
        %2928 = vadd.xlane.f32.xlu0 %v2927
        %v2929 = vpop.xlane.xlu0 %2928
        %v2930 = vsel %vm2474, %v2378, 0.0
        %v2931 = vsel %vm2474, %v2379, 0.0
        %v2932 = vadd.f32 %v2930, %v2931
        %v2933 = vsel %vm2474, %v2380, 0.0
        %v2934 = vadd.f32 %v2932, %v2933
        %v2935 = vsel %vm2474, %v2381, 0.0
        %v2936 = vadd.f32 %v2934, %v2935
        %v2937 = vsel %vm2474, %v2382, 0.0
        %v2938 = vadd.f32 %v2936, %v2937
        %v2939 = vsel %vm2474, %v2383, 0.0
        %v2940 = vadd.f32 %v2938, %v2939
        %v2941 = vsel %vm2474, %v2384, 0.0
        %v2942 = vadd.f32 %v2940, %v2941
        %v2943 = vsel %vm2474, %v2385, 0.0
        %v2944 = vadd.f32 %v2942, %v2943
        %v2945 = vsel %vm2474, %v2386, 0.0
        %v2946 = vadd.f32 %v2944, %v2945
        %v2947 = vsel %vm2474, %v2387, 0.0
        %v2948 = vadd.f32 %v2946, %v2947
        %v2949 = vsel %vm2474, %v2388, 0.0
        %v2950 = vadd.f32 %v2948, %v2949
        %v2951 = vsel %vm2474, %v2389, 0.0
        %v2952 = vadd.f32 %v2950, %v2951
        %v2953 = vsel %vm2474, %v2390, 0.0
        %v2954 = vadd.f32 %v2952, %v2953
        %v2955 = vsel %vm2474, %v2391, 0.0
        %v2956 = vadd.f32 %v2954, %v2955
        %v2957 = vsel %vm2474, %v2392, 0.0
        %v2958 = vadd.f32 %v2956, %v2957
        %v2959 = vsel %vm2474, %v2393, 0.0
        %v2960 = vadd.f32 %v2958, %v2959
        %v2961 = vsel %vm2474, %v2394, 0.0
        %v2962 = vadd.f32 %v2960, %v2961
        %v2963 = vsel %vm2474, %v2395, 0.0
        %v2964 = vadd.f32 %v2962, %v2963
        %v2965 = vsel %vm2474, %v2396, 0.0
        %v2966 = vadd.f32 %v2964, %v2965
        %v2967 = vsel %vm2474, %v2397, 0.0
        %v2968 = vadd.f32 %v2966, %v2967
        %v2969 = vsel %vm2474, %v2398, 0.0
        %v2970 = vadd.f32 %v2968, %v2969
        %v2971 = vsel %vm2474, %v2399, 0.0
        %v2972 = vadd.f32 %v2970, %v2971
        %v2973 = vsel %vm2474, %v2400, 0.0
        %v2974 = vadd.f32 %v2972, %v2973
        %v2975 = vsel %vm2474, %v2401, 0.0
        %v2976 = vadd.f32 %v2974, %v2975
        %v2977 = vsel %vm2474, %v2402, 0.0
        %v2978 = vadd.f32 %v2976, %v2977
        %v2979 = vsel %vm2474, %v2403, 0.0
        %v2980 = vadd.f32 %v2978, %v2979
        %v2981 = vsel %vm2474, %v2404, 0.0
        %v2982 = vadd.f32 %v2980, %v2981
        %v2983 = vsel %vm2474, %v2405, 0.0
        %v2984 = vadd.f32 %v2982, %v2983
        %v2985 = vsel %vm2474, %v2406, 0.0
        %v2986 = vadd.f32 %v2984, %v2985
        %v2987 = vsel %vm2474, %v2407, 0.0
        %v2988 = vadd.f32 %v2986, %v2987
        %v2989 = vsel %vm2474, %v2408, 0.0
        %v2990 = vadd.f32 %v2988, %v2989
        %v2991 = vsel %vm2474, %v2409, 0.0
        %v2992 = vadd.f32 %v2990, %v2991
        %2993 = vadd.xlane.f32.xlu0 %v2992
        %v2994 = vpop.xlane.xlu0 %2993
        %v2995 = vsel %vm2474, %v2410, 0.0
        %v2996 = vsel %vm2474, %v2411, 0.0
        %v2997 = vadd.f32 %v2995, %v2996
        %v2998 = vsel %vm2474, %v2412, 0.0
        %v2999 = vadd.f32 %v2997, %v2998
        %v3000 = vsel %vm2474, %v2413, 0.0
        %v3001 = vadd.f32 %v2999, %v3000
        %v3002 = vsel %vm2474, %v2414, 0.0
        %v3003 = vadd.f32 %v3001, %v3002
        %v3004 = vsel %vm2474, %v2415, 0.0
        %v3005 = vadd.f32 %v3003, %v3004
        %v3006 = vsel %vm2474, %v2416, 0.0
        %v3007 = vadd.f32 %v3005, %v3006
        %v3008 = vsel %vm2474, %v2417, 0.0
        %v3009 = vadd.f32 %v3007, %v3008
        %v3010 = vsel %vm2474, %v2418, 0.0
        %v3011 = vadd.f32 %v3009, %v3010
        %v3012 = vsel %vm2474, %v2419, 0.0
        %v3013 = vadd.f32 %v3011, %v3012
        %v3014 = vsel %vm2474, %v2420, 0.0
        %v3015 = vadd.f32 %v3013, %v3014
        %v3016 = vsel %vm2474, %v2421, 0.0
        %v3017 = vadd.f32 %v3015, %v3016
        %v3018 = vsel %vm2474, %v2422, 0.0
        %v3019 = vadd.f32 %v3017, %v3018
        %v3020 = vsel %vm2474, %v2423, 0.0
        %v3021 = vadd.f32 %v3019, %v3020
        %v3022 = vsel %vm2474, %v2424, 0.0
        %v3023 = vadd.f32 %v3021, %v3022
        %v3024 = vsel %vm2474, %v2425, 0.0
        %v3025 = vadd.f32 %v3023, %v3024
        %v3026 = vsel %vm2474, %v2426, 0.0
        %v3027 = vadd.f32 %v3025, %v3026
        %v3028 = vsel %vm2474, %v2427, 0.0
        %v3029 = vadd.f32 %v3027, %v3028
        %v3030 = vsel %vm2474, %v2428, 0.0
        %v3031 = vadd.f32 %v3029, %v3030
        %v3032 = vsel %vm2474, %v2429, 0.0
        %v3033 = vadd.f32 %v3031, %v3032
        %v3034 = vsel %vm2474, %v2430, 0.0
        %v3035 = vadd.f32 %v3033, %v3034
        %v3036 = vsel %vm2474, %v2431, 0.0
        %v3037 = vadd.f32 %v3035, %v3036
        %v3038 = vsel %vm2474, %v2432, 0.0
        %v3039 = vadd.f32 %v3037, %v3038
        %v3040 = vsel %vm2474, %v2433, 0.0
        %v3041 = vadd.f32 %v3039, %v3040
        %v3042 = vsel %vm2474, %v2434, 0.0
        %v3043 = vadd.f32 %v3041, %v3042
        %v3044 = vsel %vm2474, %v2435, 0.0
        %v3045 = vadd.f32 %v3043, %v3044
        %v3046 = vsel %vm2474, %v2436, 0.0
        %v3047 = vadd.f32 %v3045, %v3046
        %v3048 = vsel %vm2474, %v2437, 0.0
        %v3049 = vadd.f32 %v3047, %v3048
        %v3050 = vsel %vm2474, %v2438, 0.0
        %v3051 = vadd.f32 %v3049, %v3050
        %v3052 = vsel %vm2474, %v2439, 0.0
        %v3053 = vadd.f32 %v3051, %v3052
        %v3054 = vsel %vm2474, %v2440, 0.0
        %v3055 = vadd.f32 %v3053, %v3054
        %v3056 = vsel %vm2474, %v2441, 0.0
        %v3057 = vadd.f32 %v3055, %v3056
        %3058 = vadd.xlane.f32.xlu0 %v3057
        %v3059 = vpop.xlane.xlu0 %3058
        %v3060 = vsel %vm2474, %v2442, 0.0
        %v3061 = vsel %vm2474, %v2443, 0.0
        %v3062 = vadd.f32 %v3060, %v3061
        %v3063 = vsel %vm2474, %v2444, 0.0
        %v3064 = vadd.f32 %v3062, %v3063
        %v3065 = vsel %vm2474, %v2445, 0.0
        %v3066 = vadd.f32 %v3064, %v3065
        %v3067 = vsel %vm2474, %v2446, 0.0
        %v3068 = vadd.f32 %v3066, %v3067
        %v3069 = vsel %vm2474, %v2447, 0.0
        %v3070 = vadd.f32 %v3068, %v3069
        %v3071 = vsel %vm2474, %v2448, 0.0
        %v3072 = vadd.f32 %v3070, %v3071
        %v3073 = vsel %vm2474, %v2449, 0.0
        %v3074 = vadd.f32 %v3072, %v3073
        %v3075 = vsel %vm2474, %v2450, 0.0
        %v3076 = vadd.f32 %v3074, %v3075
        %v3077 = vsel %vm2474, %v2451, 0.0
        %v3078 = vadd.f32 %v3076, %v3077
        %v3079 = vsel %vm2474, %v2452, 0.0
        %v3080 = vadd.f32 %v3078, %v3079
        %v3081 = vsel %vm2474, %v2453, 0.0
        %v3082 = vadd.f32 %v3080, %v3081
        %v3083 = vsel %vm2474, %v2454, 0.0
        %v3084 = vadd.f32 %v3082, %v3083
        %v3085 = vsel %vm2474, %v2455, 0.0
        %v3086 = vadd.f32 %v3084, %v3085
        %v3087 = vsel %vm2474, %v2456, 0.0
        %v3088 = vadd.f32 %v3086, %v3087
        %v3089 = vsel %vm2474, %v2457, 0.0
        %v3090 = vadd.f32 %v3088, %v3089
        %v3091 = vsel %vm2474, %v2458, 0.0
        %v3092 = vadd.f32 %v3090, %v3091
        %v3093 = vsel %vm2474, %v2459, 0.0
        %v3094 = vadd.f32 %v3092, %v3093
        %v3095 = vsel %vm2474, %v2460, 0.0
        %v3096 = vadd.f32 %v3094, %v3095
        %v3097 = vsel %vm2474, %v2461, 0.0
        %v3098 = vadd.f32 %v3096, %v3097
        %v3099 = vsel %vm2474, %v2462, 0.0
        %v3100 = vadd.f32 %v3098, %v3099
        %v3101 = vsel %vm2474, %v2463, 0.0
        %v3102 = vadd.f32 %v3100, %v3101
        %v3103 = vsel %vm2474, %v2464, 0.0
        %v3104 = vadd.f32 %v3102, %v3103
        %v3105 = vsel %vm2474, %v2465, 0.0
        %v3106 = vadd.f32 %v3104, %v3105
        %v3107 = vsel %vm2474, %v2466, 0.0
        %v3108 = vadd.f32 %v3106, %v3107
        %v3109 = vsel %vm2474, %v2467, 0.0
        %v3110 = vadd.f32 %v3108, %v3109
        %v3111 = vsel %vm2474, %v2468, 0.0
        %v3112 = vadd.f32 %v3110, %v3111
        %v3113 = vsel %vm2474, %v2469, 0.0
        %v3114 = vadd.f32 %v3112, %v3113
        %v3115 = vsel %vm2474, %v2470, 0.0
        %v3116 = vadd.f32 %v3114, %v3115
        %v3117 = vsel %vm2474, %v2471, 0.0
        %v3118 = vadd.f32 %v3116, %v3117
        %v3119 = vsel %vm2474, %v2472, 0.0
        %v3120 = vadd.f32 %v3118, %v3119
        %v3121 = vsel %vm2474, %v2473, 0.0
        %v3122 = vadd.f32 %v3120, %v3121
        %3123 = vadd.xlane.f32.xlu0 %v3122
        %v3124 = vpop.xlane.xlu0 %3123
        %v3135 = vlaneseq
        %v3136 = vand.u32 %v3135, 127
        %v3137 = vlaneseq
        %v3138 = vshrl.u32 %v3137, 7
        %v3139 = vsub.s32 %v3136, %v3138
        %v3140 = vrot.slane %v2539, %v3139
        %v3141 = vlaneseq
        %v3142 = vshrl.u32 %v3141, 7
        %v3143 = vsub.s32 %v3136, %v3142
        %v3144 = vrot.slane %v2604, %v3143
        %v3145 = vlaneseq
        %v3146 = vshrl.u32 %v3145, 7
        %v3147 = vsub.s32 %v3136, %v3146
        %v3148 = vrot.slane %v2669, %v3147
        %v3149 = vlaneseq
        %v3150 = vshrl.u32 %v3149, 7
        %v3151 = vsub.s32 %v3136, %v3150
        %v3152 = vrot.slane %v2734, %v3151
        %v3153 = vlaneseq
        %v3154 = vshrl.u32 %v3153, 7
        %v3155 = vsub.s32 %v3136, %v3154
        %v3156 = vrot.slane %v2799, %v3155
        %v3157 = vlaneseq
        %v3158 = vshrl.u32 %v3157, 7
        %v3159 = vsub.s32 %v3136, %v3158
        %v3160 = vrot.slane %v2864, %v3159
        %v3161 = vlaneseq
        %v3162 = vshrl.u32 %v3161, 7
        %v3163 = vsub.s32 %v3136, %v3162
        %v3164 = vrot.slane %v2929, %v3163
        %v3165 = vlaneseq
        %v3166 = vshrl.u32 %v3165, 7
        %v3167 = vsub.s32 %v3136, %v3166
        %v3168 = vrot.slane %v2994, %v3167
        %v3169 = vlaneseq
        %v3170 = vshrl.u32 %v3169, 7
        %v3171 = vsub.s32 %v3136, %v3170
        %v3172 = vrot.slane %v3059, %v3171
        %v3173 = vlaneseq
        %v3174 = vshrl.u32 %v3173, 7
        %v3175 = vsub.s32 %v3136, %v3174
        %v3176 = vrot.slane %v3124, %v3175
        %vm3177 = vcmask 1041409
        %v3178 = vsel %vm3177, %v3144, %v3140
        %vm3179 = vcmask 1042434
        %v3180 = vsel %vm3179, %v3148, %v3178
        %vm3181 = vcmask 1043459
        %v3182 = vsel %vm3181, %v3152, %v3180
        %vm3183 = vcmask 1044484
        %v3184 = vsel %vm3183, %v3156, %v3182
        %vm3185 = vcmask 1045509
        %v3186 = vsel %vm3185, %v3160, %v3184
        %vm3187 = vcmask 1046534
        %v3188 = vsel %vm3187, %v3164, %v3186
        %vm3189 = vcmask 1047559
        %v3190 = vsel %vm3189, %v3168, %v3188
        %v3191 = vsel %vm3177, %v3176, %v3172
        %vm3194 = vcmask 39936
        %v3195 = vsel %vm3194, %v3190, 0.0
        %3196 = vadd.xlane.f32.xlu0 %v3195
        %v3197 = vpop.xlane.xlu0 %3196
        %vm3198 = vcmask 33792
        %v3199 = vsel %vm3198, %v3191, 0.0
        %3200 = vadd.xlane.f32.xlu0 %v3199
        %v3201 = vpop.xlane.xlu0 %3200
        %v3202 = vld [vmem:[#allocation10] sm:$0xff]
        %v3203 = vld [vmem:[#allocation10 + $0x8] sm:$0x3]
        %vm3204 = vcmask 80896
        %v3206 = vsel %vm3204, %v1831, 0
        %vm3208 = vcmask 1041408
        %v3210 = vsel %vm3208, %v3203, 0
        %3212 = vmatprep.subr.mxu0 0.0
        %3213 = vmatpush1.msra.mxu0 %v3202
        %3214 = vmatprep.subr.mxu0 0.0
        %3215 = vmatpush1.msra.mxu0 %v3210
        %3216 = vmatprep.subr.mxu0 0.0
        %3217 = vmatpush1.msra.mxu0 0.0
        %3218 = vmatprep.subr.mxu0 0.0
        %3219 = vmatpush1.msra.mxu0 0.0
        %3220 = vmatprep.subr.mxu0 0.0
        %3221 = vmatpush1.msra.mxu0 0.0
        %3222 = vmatprep.subr.mxu0 0.0
        %3223 = vmatpush1.msra.mxu0 0.0
        %3224 = vmatprep.subr.mxu0 0.0
        %3225 = vmatpush1.msra.mxu0 0.0
        %3226 = vmatprep.subr.mxu0 0.0
        %3227 = vmatpush1.msra.mxu0 0.0
        %3228 = vmatprep.subr.mxu0 0.0
        %3229 = vmatpush1.msra.mxu0 0.0
        %3230 = vmatprep.subr.mxu0 0.0
        %3231 = vmatpush1.msra.mxu0 0.0
        %3232 = vmatprep.subr.mxu0 0.0
        %3233 = vmatpush1.msra.mxu0 0.0
        %3234 = vmatprep.subr.mxu0 0.0
        %3235 = vmatpush1.msra.mxu0 0.0
        %3236 = vmatprep.subr.mxu0 0.0
        %3237 = vmatpush1.msra.mxu0 0.0
        %3238 = vmatprep.subr.mxu0 0.0
        %3239 = vmatpush1.msra.mxu0 0.0
        %3240 = vmatprep.subr.mxu0 0.0
        %3241 = vmatpush1.msra.mxu0 0.0
        %3242 = vmatprep.subr.mxu0 0.0
        %3243 = vmatpush1.msra.mxu0 0.0
        %3244 = vmatprep.subr.mxu0 0.0
        %3245 = vmatpush1.msra.mxu0 0.0
        %3246 = vmatprep.subr.mxu0 0.0
        %3247 = vmatpush1.msra.mxu0 0.0
        %3248 = vmatprep.subr.mxu0 0.0
        %3249 = vmatpush1.msra.mxu0 0.0
        %3250 = vmatprep.subr.mxu0 0.0
        %3251 = vmatpush1.msra.mxu0 0.0
        %3252 = vmatprep.subr.mxu0 0.0
        %3253 = vmatpush1.msra.mxu0 0.0
        %3254 = vmatprep.subr.mxu0 0.0
        %3255 = vmatpush1.msra.mxu0 0.0
        %3256 = vmatprep.subr.mxu0 0.0
        %3257 = vmatpush1.msra.mxu0 0.0
        %3258 = vmatprep.subr.mxu0 0.0
        %3259 = vmatpush1.msra.mxu0 0.0
        %3260 = vmatprep.subr.mxu0 0.0
        %3261 = vmatpush1.msra.mxu0 0.0
        %3262 = vmatprep.subr.mxu0 0.0
        %3263 = vmatpush1.msra.mxu0 0.0
        %3264 = vmatprep.subr.mxu0 0.0
        %3265 = vmatpush1.msra.mxu0 0.0
        %3266 = vmatprep.subr.mxu0 0.0
        %3267 = vmatpush1.msra.mxu0 0.0
        %3268 = vmatprep.subr.mxu0 0.0
        %3269 = vmatpush1.msra.mxu0 0.0
        %3270 = vmatprep.subr.mxu0 0.0
        %3271 = vmatpush1.msra.mxu0 0.0
        %3272 = vmatprep.subr.mxu0 0.0
        %3273 = vmatpush1.msra.mxu0 0.0
        %3274 = vmatprep.subr.mxu0 0.0
        %3275 = vmatpush1.msra.mxu0 0.0
        %3276 = vmatprep.mubr.f32.mxu0 0.0
        %3277 = vmatmul.mubr.f32.gmra.mrb[0].mxu0 %v3206
        %v3278 = vpop.f32.mrb[0].mxu0
        %v3279 = vadd.f32 0.0, %v3278
        %v3280 = vpop.f32.mrb[0].mxu0
        %3281 = vdwg.mxu0
        %v3283 = vlaneseq
        %v3284 = vshrl.u32 %v3283, 7
        %v3285 = vsub.s32 0, %v3284
        %v3286 = vrot.slane %v3279, %v3285
        %3288 = vbcast.lane.b32.xlu0 %v3286, 256
        %v3289 = vpop.permute.xlu0 %3288
        %s3291 = sor.u32 256, 8
        %3292 = vbcast.lane.b32.xlu0 %v3286, %s3291
        %v3293 = vpop.permute.xlu0 %3292
        %v3296 = vadd.f32 %v3197, %v3289
        %v3297 = vadd.f32 %v3201, %v3293
        %v3298 = vld [vmem:[#allocation11] sm:$0x1]
        %v3300 = vlaneseq
        %v3301 = vshrl.u32 %v3300, 7
        %v3302 = vsub.s32 0, %v3301
        %v3303 = vrot.slane %v3298, %v3302
        %3305 = vbcast.lane.b32.xlu0 %v3303, 256
        %v3306 = vpop.permute.xlu0 %3305
        %s3308 = sor.u32 256, 8
        %3309 = vbcast.lane.b32.xlu0 %v3303, %s3308
        %v3310 = vpop.permute.xlu0 %3309
        %v3313 = vadd.f32 %v3296, %v3306
        %v3314 = vadd.f32 %v3297, %v3310
        %v3315 = vld [vmem:[%s9] sm:$0xff]
        %v3316 = vld [vmem:[%s9 + $0x8] sm:$0x3]
        %v3317 = vld [vmem:[#allocation13] sm:$0x1]
        %3320 = vset.pattern.permute.xlu0 0
        %3321 = vperm.xlu0 %3320, %v3313
        %v3322 = vpop.permute.xlu0 %3321
        %3323 = vset.pattern.permute.xlu0 0
        %3324 = vperm.xlu0 %3323, %v3314
        %v3325 = vpop.permute.xlu0 %3324
        %v3326 = vlaneseq
        %v3327 = vshrl.u32 %v3326, 7
        %v3328 = vsub.s32 %v3136, %v3327
        %v3329 = vrot.slane %v3322, %v3328
        %v3330 = vadd.s32 %v3136, 4294967288
        %v3331 = vlaneseq
        %v3332 = vshrl.u32 %v3331, 7
        %v3333 = vsub.s32 %v3330, %v3332
        %v3334 = vrot.slane %v3325, %v3333
        %vm3335 = vcmask 130112
        %v3336 = vsel %vm3335, %v3334, %v3329
        %v3337 = vsel %vm3204, %v3336, 0
        %v3340 = vsel %vm3208, %v3316, 0
        %3342 = vmatprep.subr.mxu0 0.0
        %3343 = vmatpush1.msra.mxu0 %v3315
        %3344 = vmatprep.subr.mxu0 0.0
        %3345 = vmatpush1.msra.mxu0 %v3340
        %3346 = vmatprep.subr.mxu0 0.0
        %3347 = vmatpush1.msra.mxu0 0.0
        %3348 = vmatprep.subr.mxu0 0.0
        %3349 = vmatpush1.msra.mxu0 0.0
        %3350 = vmatprep.subr.mxu0 0.0
        %3351 = vmatpush1.msra.mxu0 0.0
        %3352 = vmatprep.subr.mxu0 0.0
        %3353 = vmatpush1.msra.mxu0 0.0
        %3354 = vmatprep.subr.mxu0 0.0
        %3355 = vmatpush1.msra.mxu0 0.0
        %3356 = vmatprep.subr.mxu0 0.0
        %3357 = vmatpush1.msra.mxu0 0.0
        %3358 = vmatprep.subr.mxu0 0.0
        %3359 = vmatpush1.msra.mxu0 0.0
        %3360 = vmatprep.subr.mxu0 0.0
        %3361 = vmatpush1.msra.mxu0 0.0
        %3362 = vmatprep.subr.mxu0 0.0
        %3363 = vmatpush1.msra.mxu0 0.0
        %3364 = vmatprep.subr.mxu0 0.0
        %3365 = vmatpush1.msra.mxu0 0.0
        %3366 = vmatprep.subr.mxu0 0.0
        %3367 = vmatpush1.msra.mxu0 0.0
        %3368 = vmatprep.subr.mxu0 0.0
        %3369 = vmatpush1.msra.mxu0 0.0
        %3370 = vmatprep.subr.mxu0 0.0
        %3371 = vmatpush1.msra.mxu0 0.0
        %3372 = vmatprep.subr.mxu0 0.0
        %3373 = vmatpush1.msra.mxu0 0.0
        %3374 = vmatprep.subr.mxu0 0.0
        %3375 = vmatpush1.msra.mxu0 0.0
        %3376 = vmatprep.subr.mxu0 0.0
        %3377 = vmatpush1.msra.mxu0 0.0
        %3378 = vmatprep.subr.mxu0 0.0
        %3379 = vmatpush1.msra.mxu0 0.0
        %3380 = vmatprep.subr.mxu0 0.0
        %3381 = vmatpush1.msra.mxu0 0.0
        %3382 = vmatprep.subr.mxu0 0.0
        %3383 = vmatpush1.msra.mxu0 0.0
        %3384 = vmatprep.subr.mxu0 0.0
        %3385 = vmatpush1.msra.mxu0 0.0
        %3386 = vmatprep.subr.mxu0 0.0
        %3387 = vmatpush1.msra.mxu0 0.0
        %3388 = vmatprep.subr.mxu0 0.0
        %3389 = vmatpush1.msra.mxu0 0.0
        %3390 = vmatprep.subr.mxu0 0.0
        %3391 = vmatpush1.msra.mxu0 0.0
        %3392 = vmatprep.subr.mxu0 0.0
        %3393 = vmatpush1.msra.mxu0 0.0
        %3394 = vmatprep.subr.mxu0 0.0
        %3395 = vmatpush1.msra.mxu0 0.0
        %3396 = vmatprep.subr.mxu0 0.0
        %3397 = vmatpush1.msra.mxu0 0.0
        %3398 = vmatprep.subr.mxu0 0.0
        %3399 = vmatpush1.msra.mxu0 0.0
        %3400 = vmatprep.subr.mxu0 0.0
        %3401 = vmatpush1.msra.mxu0 0.0
        %3402 = vmatprep.subr.mxu0 0.0
        %3403 = vmatpush1.msra.mxu0 0.0
        %3404 = vmatprep.subr.mxu0 0.0
        %3405 = vmatpush1.msra.mxu0 0.0
        %3406 = vmatprep.mubr.f32.mxu0 0.0
        %3407 = vmatmul.mubr.f32.gmra.mrb[0].mxu0 %v3337
        %v3408 = vpop.f32.mrb[0].mxu0
        %v3409 = vadd.f32 %v3317, %v3408
        %v3410 = vpop.f32.mrb[0].mxu0
        %3411 = vdwg.mxu0
        %vm3412 = vcmask 32768
        %3413 = vst.msk [vmem:[%s491] sm:$0x1] %vm3412, %v3409
        %s3414 = sand.u32 %s280, 1
        %s3415 = scalar_lea.sflag [#allocation4], %s3414
        %s3416 = sand.u32 %s280, 1
        %s3417 = scalar_lea.vmem [#allocation14], %s3416
        // Predicated region
        $region93: #{survival_net_forward.1} parent=63 // pred_check
          %p3418 = pneg %p290
        $region94: #{survival_net_forward.1} parent=63 // pred_check_branch
          %3420 = sbr.rel (%p3418) target = $region96
        $region95: #{survival_net_forward.1} parent=63 // pred_region
          %s3422 = ssub.s32 16, 16
          %3423 = vsyncadd %s3415, %s3422
          %s3424 = smul.addr %s31, 16
          %s3425 = scalar_lea.hbm %s11, %s3424
          %s3427 = sshll.u32 %s3417, 4
          %s3428 = int_to_ptr.vmem [resolvable:$true] %s3427
          %3430 = dma.vmem_to_hbm [thread:$0]  %s3428, 16, %s3425, %s3415
        $region96: #{survival_net_forward.1} parent=63 // pred_fallthru
          _
      $region64: #{survival_net_forward.1} parent=5 // pred_fallthru
        _
      %p3431 = scmp.le.s32.totalorder 2, %s26
      // Predicated region
      $region97: #{survival_net_forward.1} parent=5 // pred_check
        %p3432 = pneg %p3431
      $region98: #{survival_net_forward.1} parent=5 // pred_check_branch
        %3434 = sbr.rel (%p3432) target = $region100
      $region99: #{survival_net_forward.1} parent=5 // pred_region
        %s3435 = ssub.s32 %s26, 2
        // Predicated region
        $region101: #{survival_net_forward.1} parent=99 // pred_check
          %p3436 = pneg %p296
        $region102: #{survival_net_forward.1} parent=99 // pred_check_branch
          %3438 = sbr.rel (%p3436) target = $region104
        $region103: #{survival_net_forward.1} parent=99 // pred_region
          %s3439 = sand.u32 %s281, 1
          %s3440 = scalar_lea.sflag [#allocation4], %s3439
          %s3441 = sand.u32 %s281, 1
          %s3442 = scalar_lea.vmem [#allocation14], %s3441
          %3443 = dma.done %s3440, 16
        $region104: #{survival_net_forward.1} parent=99 // pred_fallthru
          _
      $region100: #{survival_net_forward.1} parent=5 // pred_fallthru
        _
    $region6: #{survival_net_forward.1} parent=1 // loop_footer
      %s30 = sadd.s32 1, %s26
    $region7: #{survival_net_forward.1} parent=1 // loop_footer_branch
      %25 = sbr.rel target = $region3
    $region8: #{survival_net_forward.1} parent=1 // loop_exit
      _
    %3444 = vsyncpa [#allocation3], 1
    %s3445 = scalar_lea.sflag [#allocation3], 1
    %3446 = vsyncpa %s3445, 1
    %3447 = vsyncpa [#allocation6], 1
    %3448 = vsyncpa [#allocation9], 1
    %3449 = vsyncpa [#allocation12], 1
    %3450 = vsyncpa [#allocation4], 1
    %s3451 = scalar_lea.sflag [#allocation4], 1
    %3452 = vsyncpa %s3451, 1

</llo_original>
